<compile_context>
chip_gen: v5e
topology: v5e:2x2
jax: 0.10.0
libtpu: 0.0.40
codegen_flags: <defaults>
</compile_context>

<pallas_src>
import functools

import jax
import jax.numpy as jnp
from jax import lax
from jax.experimental import pallas as pl
from jax.experimental.pallas import tpu as pltpu


def _cdiv(a, b):
    return -(-a // b)


def _round_up(a, b):
    return _cdiv(a, b) * b


# -----------------------------------------------------------------------------
# Fused Pallas kernel: conv1(+bias,+pad) -> ReLU -> conv2(+bias) -> ReLU -> GAP
# -----------------------------------------------------------------------------
def _backbone_kernel(patches_ref, w1_ref, w2_ref, o_ref, h1p_ref):
    """B_BLK batch elements per grid step.

    patches_ref : (B_BLK, m1, KP)  bf16  wrapper-side im2col of the input on the
                                         extended (H+2, W+2) grid; column 9*Cin
                                         is the interior indicator (1 interior /
                                         0 ring), remaining K columns are zeros.
    w1_ref      : (KP, C1P)        bf16  conv1 taps; row 9*Cin carries b1 and a
                                         1.0 into channel C1P-1 (indicator).
    w2_ref      : (9, C1P, C2P)    bf16  conv2 taps; the centre tap's row for
                                         channel C1P-1 carries b2.
    o_ref       : (1, B_BLK, C2P)  f32   pooled features for this step.
    h1p_ref     : (H+2, W+2, C1P)  bf16  VMEM scratch: zero-bordered conv1
                                         output (reused across the B_BLK loop).
    """
    b_blk, m1, _ = patches_ref.shape
    hp2, wp2, c1p = h1p_ref.shape
    h, w = hp2 - 2, wp2 - 2
    m2 = h * w
    c2p = o_ref.shape[-1]
    inv_m2 = 1.0 / m2

    pooled_rows = []
    for b in range(b_blk):                       # static unroll, B_BLK <= 8
        # ---- conv1 + bias + ReLU + zero ring: ONE lane-dense MXU matmul -----
        acc1 = jnp.dot(patches_ref[b], w1_ref[...],
                       preferred_element_type=jnp.float32)         # (m1, C1P)
        h1 = jnp.maximum(acc1, 0.0).astype(h1p_ref.dtype)
        # Full aligned store of the zero-padded conv1 activation.  Ring rows
        # are exactly zero because their patch rows (incl. the bias column)
        # were zeroed in the wrapper, so this IS the padding conv2 needs.
        h1p_ref[...] = h1.reshape(hp2, wp2, c1p)

        # ---- conv2 + bias + ReLU: 9 per-tap lane-dense matmuls --------------
        # (bias arrives through the centre tap x the indicator channel).
        acc2 = jnp.zeros((m2, c2p), jnp.float32)
        for k in range(9):
            dy, dx = divmod(k, 3)
            tap = h1p_ref[dy:dy + h, dx:dx + w, :].reshape(m2, c1p)
            acc2 = acc2 + jnp.dot(tap, w2_ref[k],
                                  preferred_element_type=jnp.float32)
        h2 = jnp.maximum(acc2, 0.0)                                 # (m2, C2P)

        # ---- fused global-average-pool epilogue (XLU reduction) -------------
        pooled_rows.append(jnp.sum(h2, axis=0, keepdims=True) * inv_m2)

    pooled = (pooled_rows[0] if b_blk == 1
              else jnp.concatenate(pooled_rows, axis=0))           # (B_BLK,C2P)
    o_ref[...] = pooled.reshape(1, b_blk, c2p).astype(o_ref.dtype)


# -----------------------------------------------------------------------------
# Wrapper: one pallas_call for the whole backbone
# -----------------------------------------------------------------------------
@jax.jit
def cnn_backbone_forward(x_nchw, params):
    """x_nchw: (N, Cin, H, W) float32 -> features (N, num_out_features=C2)."""
    n, cin, hgt, wid = x_nchw.shape
    c1 = params["w1"].shape[-1]
    c2 = params["w2"].shape[-1]
    hp2, wp2 = hgt + 2, wid + 2
    m1 = hp2 * wp2

    # Lane-dense padded sizes.
    kp = _round_up(9 * cin + 1, 128)     # conv1 contraction depth (+ bias col)
    c1p = _round_up(c1 + 1, 128)         # conv1 out channels (+ indicator ch)
    c2p = _round_up(c2, 128)             # conv2 out channels

    # Batch folding: amortise the per-step grid overhead, but keep >=2 steps
    # (when N >= 2) so the "parallel" batch axis shards across v7x's 2 TCs.
    max_b_blk = 8                        # cap the in-kernel unroll
    num_steps = max(2, _cdiv(n, max_b_blk)) if n > 1 else 1
    b_blk = _cdiv(n, num_steps)
    n_pad = num_steps * b_blk

    # ---- wrapper-side im2col for conv1 on the extended (H+2, W+2) grid ------
    x = jnp.transpose(x_nchw, (0, 2, 3, 1)).astype(jnp.float32)    # NHWC
    xp = jnp.pad(x, ((0, 0), (2, 2), (2, 2), (0, 0)))              # pad by 2
    taps = [xp[:, dy:dy + hp2, dx:dx + wp2, :]
            for dy in range(3) for dx in range(3)]
    patches = jnp.concatenate(taps, axis=-1).reshape(n, m1, 9 * cin)

    row_in = (jnp.arange(hp2) >= 1) & (jnp.arange(hp2) <= hgt)
    col_in = (jnp.arange(wp2) >= 1) & (jnp.arange(wp2) <= wid)
    interior = (row_in[:, None] & col_in[None, :]).reshape(m1)
    interior_f = interior.astype(jnp.float32)                      # (m1,)

    patches = patches * interior_f[None, :, None]     # zero the ring rows
    bias_col = jnp.broadcast_to(interior_f[None, :, None], (n, m1, 1))
    patches = jnp.concatenate([patches, bias_col], axis=-1)        # + bias col
    patches = jnp.pad(patches,
                      ((0, n_pad - n), (0, 0), (0, kp - 9 * cin - 1)))
    patches = patches.astype(jnp.bfloat16)                         # (n_pad,m1,kp)

    # ---- padded weights with both biases folded in ---------------------------
    w1 = params["w1"].reshape(9 * cin, c1).astype(jnp.float32)
    b1 = params["b1"].reshape(c1).astype(jnp.float32)
    w1p = jnp.zeros((kp, c1p), jnp.float32)
    w1p = w1p.at[:9 * cin, :c1].set(w1)
    w1p = w1p.at[9 * cin, :c1].set(b1)          # bias row (hits interior only)
    w1p = w1p.at[9 * cin, c1p - 1].set(1.0)     # interior-indicator channel
    w1p = w1p.astype(jnp.bfloat16)

    w2 = params["w2"].astype(jnp.float32)                          # (9, c1, c2)
    b2 = params["b2"].reshape(c2).astype(jnp.float32)
    w2p = jnp.zeros((9, c1p, c2p), jnp.float32)
    w2p = w2p.at[:, :c1, :c2].set(w2)
    w2p = w2p.at[4, c1p - 1, :c2].set(b2)       # centre tap x indicator = +b2
    w2p = w2p.astype(jnp.bfloat16)

    out = pl.pallas_call(
        _backbone_kernel,
        out_shape=jax.ShapeDtypeStruct((num_steps, b_blk, c2p), jnp.float32),
        grid=(num_steps,),
        in_specs=[
            pl.BlockSpec((b_blk, m1, kp), lambda i: (i, 0, 0)),
            pl.BlockSpec((kp, c1p), lambda i: (0, 0)),
            pl.BlockSpec((9, c1p, c2p), lambda i: (0, 0, 0)),
        ],
        out_specs=pl.BlockSpec((1, b_blk, c2p), lambda i: (i, 0, 0)),
        scratch_shapes=[pltpu.VMEM((hp2, wp2, c1p), jnp.bfloat16)],
        compiler_params=pltpu.CompilerParams(
            dimension_semantics=("parallel",)),
    )(patches, w1p, w2p)
    # TODO(synk): for large H/W add an H-tile grid axis with halo blocks; size
    #             that tile against v7x's 64 MiB VMEM (not v5e/v6e's 128 MiB).
    return out.reshape(n_pad, c2p)[:n, :c2]


# -----------------------------------------------------------------------------
# Params (deterministic He-style init) and plain-JAX reference
# -----------------------------------------------------------------------------
def init_params(key, in_channels=4, c1=32, c2=64):
    """Weights stored as (9, Cin, Cout) taps in row-major (dy, dx) order."""
    k1, k2, k3, k4 = jax.random.split(key, 4)
    w1 = jax.random.normal(k1, (9, in_channels, c1), jnp.float32) * (
        2.0 / (9 * in_channels)) ** 0.5
    b1 = 0.1 * jax.random.normal(k2, (1, c1), jnp.float32)
    w2 = jax.random.normal(k3, (9, c1, c2), jnp.float32) * (
        2.0 / (9 * c1)) ** 0.5
    b2 = 0.1 * jax.random.normal(k4, (1, c2), jnp.float32)
    return {"w1": w1, "b1": b1, "w2": w2, "b2": b2}


def _ref_forward(x_nchw, params):
    x = jnp.transpose(x_nchw, (0, 2, 3, 1))
    dn = lax.conv_dimension_numbers(x.shape, (3, 3, 1, 1),
                                    ("NHWC", "HWIO", "NHWC"))

    def conv(x, w_taps, b):
        cin, cout = w_taps.shape[1], w_taps.shape[2]
        w_hwio = w_taps.reshape(3, 3, cin, cout)
        y = lax.conv_general_dilated(x, w_hwio, (1, 1), "SAME",
                                     dimension_numbers=dn)
        return jnp.maximum(y + b.reshape(1, 1, 1, cout), 0.0)

    h1 = conv(x, params["w1"], params["b1"])
    h2 = conv(h1, params["w2"], params["b2"])
    return jnp.mean(h2, axis=(1, 2))


if __name__ == "__main__":
    key = jax.random.PRNGKey(0)
    kx, kparams = jax.random.split(key)

    # Small shapes consistent with the module: batch=2, in_channels=4, 16x16.
    x = jax.random.normal(kx, (2, 4, 16, 16), jnp.float32)   # NCHW (PyTorch)
    params = init_params(kparams, in_channels=4, c1=32, c2=64)

    feats = jax.block_until_ready(cnn_backbone_forward(x, params))

    ref = _ref_forward(x, params)
    assert feats.shape == (2, 64), feats.shape
    max_err = float(jnp.max(jnp.abs(feats - ref)))
    # bf16 MXU inputs/weights with f32 accumulation vs. a pure-f32 reference.
    assert jnp.allclose(feats, ref, atol=5e-2, rtol=5e-2), max_err
    print("KERNEL_OK")
</pallas_src>

<mosaic_0001>
module attributes {stable_mosaic.version = 11 : i64} {
  func.func @_backbone_kernel(%arg0: i32, %arg1: memref<1x324x128xbf16, #tpu.memory_space<vmem>>, %arg2: memref<128x128xbf16, #tpu.memory_space<vmem>>, %arg3: memref<9x128x128xbf16, #tpu.memory_space<vmem>>, %arg4: memref<1x1x128xf32, #tpu.memory_space<vmem>>, %arg5: memref<18x18x128xbf16, #tpu.memory_space<vmem>>) attributes {dimension_semantics = [#tpu.dimension_semantics<parallel>], iteration_bounds = array<i64: 2>, scalar_prefetch = 0 : i64, scratch_operands = 1 : i64, tpu.core_type = #tpu.core_type<tc>, window_params = [{transform_indices = @transform_0, window_bounds = array<i64: 1, 324, 128>}, {pipeline_mode = #tpu.pipeline_mode<synchronous>, transform_indices = @transform_1, window_bounds = array<i64: 128, 128>}, {pipeline_mode = #tpu.pipeline_mode<synchronous>, transform_indices = @transform_2, window_bounds = array<i64: 9, 128, 128>}, {transform_indices = @transform_3, window_bounds = array<i64: 1, 1, 128>}]} {
    %c0 = arith.constant 0 : index
    %c0_0 = arith.constant 0 : index
    %c0_1 = arith.constant 0 : index
    %0 = vector.load %arg1[%c0, %c0_0, %c0_1] : memref<1x324x128xbf16, #tpu.memory_space<vmem>>, vector<1x324x128xbf16>
    %1 = vector.shape_cast %0 : vector<1x324x128xbf16> to vector<324x128xbf16>
    %c0_2 = arith.constant 0 : index
    %c0_3 = arith.constant 0 : index
    %2 = vector.load %arg2[%c0_2, %c0_3] : memref<128x128xbf16, #tpu.memory_space<vmem>>, vector<128x128xbf16>
    %cst = arith.constant dense<0.000000e+00> : vector<324x128xf32>
    %3 = tpu.matmul %1, %2, %cst {dimension_numbers = #tpu.dot_dimension_numbers<[1], [0], [0], [1], [0, 0, 1, 1], [], []>} : vector<324x128xbf16>, vector<128x128xbf16>, vector<324x128xf32> -> vector<324x128xf32>
    %cst_4 = arith.constant 0.000000e+00 : f32
    %4 = vector.broadcast %cst_4 : f32 to vector<324x128xf32>
    %5 = arith.maximumf %3, %4 : vector<324x128xf32>
    %6 = arith.truncf %5 : vector<324x128xf32> to vector<324x128xbf16>
    %7 = vector.shape_cast %6 : vector<324x128xbf16> to vector<18x18x128xbf16>
    %c0_5 = arith.constant 0 : index
    %c0_6 = arith.constant 0 : index
    %c0_7 = arith.constant 0 : index
    %8 = vector.load %arg5[%c0_5, %c0_6, %c0_7] : memref<18x18x128xbf16, #tpu.memory_space<vmem>>, vector<18x18x128xbf16>
    tpu.vector_store %arg5[%c0_5, %c0_6, %c0_7], %7 {strides = array<i32>} : memref<18x18x128xbf16, #tpu.memory_space<vmem>>, vector<18x18x128xbf16>,
    %cst_8 = arith.constant 0.000000e+00 : f32
    %9 = vector.broadcast %cst_8 : f32 to vector<256x128xf32>
    %c0_9 = arith.constant 0 : index
    %c0_10 = arith.constant 0 : index
    %c0_11 = arith.constant 0 : index
    %10 = vector.load %arg5[%c0_9, %c0_10, %c0_11] : memref<18x18x128xbf16, #tpu.memory_space<vmem>>, vector<16x16x128xbf16>
    %11 = vector.shape_cast %10 : vector<16x16x128xbf16> to vector<256x128xbf16>
    %c0_12 = arith.constant 0 : index
    %c0_13 = arith.constant 0 : index
    %c0_14 = arith.constant 0 : index
    %12 = vector.load %arg3[%c0_12, %c0_13, %c0_14] : memref<9x128x128xbf16, #tpu.memory_space<vmem>>, vector<1x128x128xbf16>
    %13 = vector.shape_cast %12 : vector<1x128x128xbf16> to vector<128x128xbf16>
    %cst_15 = arith.constant dense<0.000000e+00> : vector<256x128xf32>
    %14 = tpu.matmul %11, %13, %cst_15 {dimension_numbers = #tpu.dot_dimension_numbers<[1], [0], [0], [1], [0, 0, 1, 1], [], []>} : vector<256x128xbf16>, vector<128x128xbf16>, vector<256x128xf32> -> vector<256x128xf32>
    %15 = arith.addf %9, %14 : vector<256x128xf32>
    %c0_16 = arith.constant 0 : index
    %c1 = arith.constant 1 : index
    %c0_17 = arith.constant 0 : index
    %16 = vector.load %arg5[%c0_16, %c1, %c0_17] : memref<18x18x128xbf16, #tpu.memory_space<vmem>>, vector<16x16x128xbf16>
    %17 = vector.shape_cast %16 : vector<16x16x128xbf16> to vector<256x128xbf16>
    %c1_18 = arith.constant 1 : index
    %c0_19 = arith.constant 0 : index
    %c0_20 = arith.constant 0 : index
    %18 = vector.load %arg3[%c1_18, %c0_19, %c0_20] : memref<9x128x128xbf16, #tpu.memory_space<vmem>>, vector<1x128x128xbf16>
    %19 = vector.shape_cast %18 : vector<1x128x128xbf16> to vector<128x128xbf16>
    %cst_21 = arith.constant dense<0.000000e+00> : vector<256x128xf32>
    %20 = tpu.matmul %17, %19, %cst_21 {dimension_numbers = #tpu.dot_dimension_numbers<[1], [0], [0], [1], [0, 0, 1, 1], [], []>} : vector<256x128xbf16>, vector<128x128xbf16>, vector<256x128xf32> -> vector<256x128xf32>
    %21 = arith.addf %15, %20 : vector<256x128xf32>
    %c0_22 = arith.constant 0 : index
    %c2 = arith.constant 2 : index
    %c0_23 = arith.constant 0 : index
    %22 = vector.load %arg5[%c0_22, %c2, %c0_23] : memref<18x18x128xbf16, #tpu.memory_space<vmem>>, vector<16x16x128xbf16>
    %23 = vector.shape_cast %22 : vector<16x16x128xbf16> to vector<256x128xbf16>
    %c2_24 = arith.constant 2 : index
    %c0_25 = arith.constant 0 : index
    %c0_26 = arith.constant 0 : index
    %24 = vector.load %arg3[%c2_24, %c0_25, %c0_26] : memref<9x128x128xbf16, #tpu.memory_space<vmem>>, vector<1x128x128xbf16>
    %25 = vector.shape_cast %24 : vector<1x128x128xbf16> to vector<128x128xbf16>
    %cst_27 = arith.constant dense<0.000000e+00> : vector<256x128xf32>
    %26 = tpu.matmul %23, %25, %cst_27 {dimension_numbers = #tpu.dot_dimension_numbers<[1], [0], [0], [1], [0, 0, 1, 1], [], []>} : vector<256x128xbf16>, vector<128x128xbf16>, vector<256x128xf32> -> vector<256x128xf32>
    %27 = arith.addf %21, %26 : vector<256x128xf32>
    %c1_28 = arith.constant 1 : index
    %c0_29 = arith.constant 0 : index
    %c0_30 = arith.constant 0 : index
    %28 = vector.load %arg5[%c1_28, %c0_29, %c0_30] : memref<18x18x128xbf16, #tpu.memory_space<vmem>>, vector<16x16x128xbf16>
    %29 = vector.shape_cast %28 : vector<16x16x128xbf16> to vector<256x128xbf16>
    %c3 = arith.constant 3 : index
    %c0_31 = arith.constant 0 : index
    %c0_32 = arith.constant 0 : index
    %30 = vector.load %arg3[%c3, %c0_31, %c0_32] : memref<9x128x128xbf16, #tpu.memory_space<vmem>>, vector<1x128x128xbf16>
    %31 = vector.shape_cast %30 : vector<1x128x128xbf16> to vector<128x128xbf16>
    %cst_33 = arith.constant dense<0.000000e+00> : vector<256x128xf32>
    %32 = tpu.matmul %29, %31, %cst_33 {dimension_numbers = #tpu.dot_dimension_numbers<[1], [0], [0], [1], [0, 0, 1, 1], [], []>} : vector<256x128xbf16>, vector<128x128xbf16>, vector<256x128xf32> -> vector<256x128xf32>
    %33 = arith.addf %27, %32 : vector<256x128xf32>
    %c1_34 = arith.constant 1 : index
    %c1_35 = arith.constant 1 : index
    %c0_36 = arith.constant 0 : index
    %34 = vector.load %arg5[%c1_34, %c1_35, %c0_36] : memref<18x18x128xbf16, #tpu.memory_space<vmem>>, vector<16x16x128xbf16>
    %35 = vector.shape_cast %34 : vector<16x16x128xbf16> to vector<256x128xbf16>
    %c4 = arith.constant 4 : index
    %c0_37 = arith.constant 0 : index
    %c0_38 = arith.constant 0 : index
    %36 = vector.load %arg3[%c4, %c0_37, %c0_38] : memref<9x128x128xbf16, #tpu.memory_space<vmem>>, vector<1x128x128xbf16>
    %37 = vector.shape_cast %36 : vector<1x128x128xbf16> to vector<128x128xbf16>
    %cst_39 = arith.constant dense<0.000000e+00> : vector<256x128xf32>
    %38 = tpu.matmul %35, %37, %cst_39 {dimension_numbers = #tpu.dot_dimension_numbers<[1], [0], [0], [1], [0, 0, 1, 1], [], []>} : vector<256x128xbf16>, vector<128x128xbf16>, vector<256x128xf32> -> vector<256x128xf32>
    %39 = arith.addf %33, %38 : vector<256x128xf32>
    %c1_40 = arith.constant 1 : index
    %c2_41 = arith.constant 2 : index
    %c0_42 = arith.constant 0 : index
    %40 = vector.load %arg5[%c1_40, %c2_41, %c0_42] : memref<18x18x128xbf16, #tpu.memory_space<vmem>>, vector<16x16x128xbf16>
    %41 = vector.shape_cast %40 : vector<16x16x128xbf16> to vector<256x128xbf16>
    %c5 = arith.constant 5 : index
    %c0_43 = arith.constant 0 : index
    %c0_44 = arith.constant 0 : index
    %42 = vector.load %arg3[%c5, %c0_43, %c0_44] : memref<9x128x128xbf16, #tpu.memory_space<vmem>>, vector<1x128x128xbf16>
    %43 = vector.shape_cast %42 : vector<1x128x128xbf16> to vector<128x128xbf16>
    %cst_45 = arith.constant dense<0.000000e+00> : vector<256x128xf32>
    %44 = tpu.matmul %41, %43, %cst_45 {dimension_numbers = #tpu.dot_dimension_numbers<[1], [0], [0], [1], [0, 0, 1, 1], [], []>} : vector<256x128xbf16>, vector<128x128xbf16>, vector<256x128xf32> -> vector<256x128xf32>
    %45 = arith.addf %39, %44 : vector<256x128xf32>
    %c2_46 = arith.constant 2 : index
    %c0_47 = arith.constant 0 : index
    %c0_48 = arith.constant 0 : index
    %46 = vector.load %arg5[%c2_46, %c0_47, %c0_48] : memref<18x18x128xbf16, #tpu.memory_space<vmem>>, vector<16x16x128xbf16>
    %47 = vector.shape_cast %46 : vector<16x16x128xbf16> to vector<256x128xbf16>
    %c6 = arith.constant 6 : index
    %c0_49 = arith.constant 0 : index
    %c0_50 = arith.constant 0 : index
    %48 = vector.load %arg3[%c6, %c0_49, %c0_50] : memref<9x128x128xbf16, #tpu.memory_space<vmem>>, vector<1x128x128xbf16>
    %49 = vector.shape_cast %48 : vector<1x128x128xbf16> to vector<128x128xbf16>
    %cst_51 = arith.constant dense<0.000000e+00> : vector<256x128xf32>
    %50 = tpu.matmul %47, %49, %cst_51 {dimension_numbers = #tpu.dot_dimension_numbers<[1], [0], [0], [1], [0, 0, 1, 1], [], []>} : vector<256x128xbf16>, vector<128x128xbf16>, vector<256x128xf32> -> vector<256x128xf32>
    %51 = arith.addf %45, %50 : vector<256x128xf32>
    %c2_52 = arith.constant 2 : index
    %c1_53 = arith.constant 1 : index
    %c0_54 = arith.constant 0 : index
    %52 = vector.load %arg5[%c2_52, %c1_53, %c0_54] : memref<18x18x128xbf16, #tpu.memory_space<vmem>>, vector<16x16x128xbf16>
    %53 = vector.shape_cast %52 : vector<16x16x128xbf16> to vector<256x128xbf16>
    %c7 = arith.constant 7 : index
    %c0_55 = arith.constant 0 : index
    %c0_56 = arith.constant 0 : index
    %54 = vector.load %arg3[%c7, %c0_55, %c0_56] : memref<9x128x128xbf16, #tpu.memory_space<vmem>>, vector<1x128x128xbf16>
    %55 = vector.shape_cast %54 : vector<1x128x128xbf16> to vector<128x128xbf16>
    %cst_57 = arith.constant dense<0.000000e+00> : vector<256x128xf32>
    %56 = tpu.matmul %53, %55, %cst_57 {dimension_numbers = #tpu.dot_dimension_numbers<[1], [0], [0], [1], [0, 0, 1, 1], [], []>} : vector<256x128xbf16>, vector<128x128xbf16>, vector<256x128xf32> -> vector<256x128xf32>
    %57 = arith.addf %51, %56 : vector<256x128xf32>
    %c2_58 = arith.constant 2 : index
    %c2_59 = arith.constant 2 : index
    %c0_60 = arith.constant 0 : index
    %58 = vector.load %arg5[%c2_58, %c2_59, %c0_60] : memref<18x18x128xbf16, #tpu.memory_space<vmem>>, vector<16x16x128xbf16>
    %59 = vector.shape_cast %58 : vector<16x16x128xbf16> to vector<256x128xbf16>
    %c8 = arith.constant 8 : index
    %c0_61 = arith.constant 0 : index
    %c0_62 = arith.constant 0 : index
    %60 = vector.load %arg3[%c8, %c0_61, %c0_62] : memref<9x128x128xbf16, #tpu.memory_space<vmem>>, vector<1x128x128xbf16>
    %61 = vector.shape_cast %60 : vector<1x128x128xbf16> to vector<128x128xbf16>
    %cst_63 = arith.constant dense<0.000000e+00> : vector<256x128xf32>
    %62 = tpu.matmul %59, %61, %cst_63 {dimension_numbers = #tpu.dot_dimension_numbers<[1], [0], [0], [1], [0, 0, 1, 1], [], []>} : vector<256x128xbf16>, vector<128x128xbf16>, vector<256x128xf32> -> vector<256x128xf32>
    %63 = arith.addf %57, %62 : vector<256x128xf32>
    %cst_64 = arith.constant 0.000000e+00 : f32
    %64 = vector.broadcast %cst_64 : f32 to vector<256x128xf32>
    %65 = arith.maximumf %63, %64 : vector<256x128xf32>
    %cst_65 = arith.constant dense<0.000000e+00> : vector<128xf32>
    %66 = vector.multi_reduction <add>, %65, %cst_65 [0] : vector<256x128xf32> to vector<128xf32>
    %67 = vector.shape_cast %66 : vector<128xf32> to vector<1x128xf32>
    %cst_66 = arith.constant 3.906250e-03 : f32
    %68 = vector.broadcast %cst_66 : f32 to vector<1x128xf32>
    %69 = arith.mulf %67, %68 : vector<1x128xf32>
    %70 = vector.shape_cast %69 : vector<1x128xf32> to vector<1x1x128xf32>
    %c0_67 = arith.constant 0 : index
    %c0_68 = arith.constant 0 : index
    %c0_69 = arith.constant 0 : index
    %71 = vector.load %arg4[%c0_67, %c0_68, %c0_69] : memref<1x1x128xf32, #tpu.memory_space<vmem>>, vector<1x1x128xf32>
    tpu.vector_store %arg4[%c0_67, %c0_68, %c0_69], %70 {strides = array<i32>} : memref<1x1x128xf32, #tpu.memory_space<vmem>>, vector<1x1x128xf32>,
    return
  }
  func.func @transform_0(%arg0: i32) -> (i32, i32, i32) {
    %c0_i32 = arith.constant 0 : i32
    %c0_i32_0 = arith.constant 0 : i32
    %c0_i32_1 = arith.constant 0 : i32
    return %arg0, %c0_i32, %c0_i32_0 : i32, i32, i32
  }
  func.func @transform_1(%arg0: i32) -> (i32, i32) {
    %c0_i32 = arith.constant 0 : i32
    %c0_i32_0 = arith.constant 0 : i32
    %c0_i32_1 = arith.constant 0 : i32
    return %c0_i32, %c0_i32_0 : i32, i32
  }
  func.func @transform_2(%arg0: i32) -> (i32, i32, i32) {
    %c0_i32 = arith.constant 0 : i32
    %c0_i32_0 = arith.constant 0 : i32
    %c0_i32_1 = arith.constant 0 : i32
    %c0_i32_2 = arith.constant 0 : i32
    return %c0_i32, %c0_i32_0, %c0_i32_1 : i32, i32, i32
  }
  func.func @transform_3(%arg0: i32) -> (i32, i32, i32) {
    %c0_i32 = arith.constant 0 : i32
    %c0_i32_0 = arith.constant 0 : i32
    %c0_i32_1 = arith.constant 0 : i32
    return %arg0, %c0_i32, %c0_i32_0 : i32, i32, i32
  }
}

</mosaic_0001>

<llo_original>
// kernel: cnn_backbone_forward.1
$region0: #{cnn_backbone_forward.1}
  #allocation0 [shape = 'u32[]', space=smem, size = 0x4, offset = 0x4, fixed_abs, tag = 'smem constant byte address 0x4 - core index']
  #allocation1 [shape = 'u32[72,128]{1,0:T(1,128)}', space=vmem, size = 0x9000, scoped, tag = 'internal scratch']
  #allocation2 [shape = 'bf16[18,18,128]{2,1,0:T(8,128)(2,1)}', space=vmem, size = 0x1b000, scoped, tag = 'scratch operand']
  %s0 = inlined_call_operand.vmem [shape: bf16[2,324,128], index: 0, kind: input, shape index: {}]
  %s1 = inlined_call_operand.vmem [shape: bf16[128,128], index: 1, kind: input, shape index: {}]
  %s2 = inlined_call_operand.vmem [shape: bf16[9,128,128], index: 2, kind: input, shape index: {}]
  %s3 = inlined_call_operand.hbm [shape: f32[2,1,128], index: 3, kind: output, shape index: {}]
  %s4 = sld [smem:[#allocation0]]
  $region45: #{cnn_backbone_forward.1} parent=0
    _
  %s6 = ssub.s32 1, %s4
  %s7 = scalar_select 0, %s6, %s4
  $region1: #{cnn_backbone_forward.1} parent=0
    #allocation3 [shape = 'u8[1024]{0}', space=vmem, size = 0x400, scoped, tag = 'output window, operand 0']
    #allocation4 [shape = 's32[2]{0}', space=sflag, size = 0x8, scoped, tag = 'scoped memory for cnn_backbone_forward.1']
    %8 = vsyncpa [#allocation4], 0
    %s9 = scalar_lea.sflag [#allocation4], 1
    %10 = vsyncpa %s9, 0
    loop: start=0, step=1, limit=4
    $region2: #{cnn_backbone_forward.1} parent=1 // loop_pre_header
      _
    $region3: #{cnn_backbone_forward.1} parent=1 // loop_header
      %s12 = sphi 0, %s16
      %p13 = scmp.ge.s32.totalorder %s12, 4
      %s22 = sphi 0, %s24
      %s25 = sphi 0, %s22
      %s26 = sphi 0, %s25
      %s42 = sphi 0, %s26
      %s46 = sphi 0, %s46
      %s48 = sphi 0, %s46
      %s49 = sphi 0, %s48
      %s63 = sphi 0, %s49
      %s67 = sphi 0, %s67
      %s69 = sphi 0, %s67
      %s70 = sphi 0, %s69
      %s84 = sphi 0, %s70
      %s90 = sphi 0, %s92
      %s93 = sphi 0, %s90
      %s94 = sphi 0, %s93
      %s110 = sphi 0, %s94
    $region4: #{cnn_backbone_forward.1} parent=1 // loop_header_branch
      %15 = sbr.rel (%p13) target = $region8
    $region5: #{cnn_backbone_forward.1} parent=1 // loop_body
      %s17 = ssub.s32 %s12, 1
      %s18 = ssub.s32 %s12, 2
      %s19 = sadd.s32 %s12, 1
      %s20 = ssub.s32 %s12, %s19
      %p21 = scmp.eq.s32.totalorder %s20, 0
      %s23 = sadd.s32 %s22, 1
      %s24 = scalar_select %p21, %s22, %s23
      %p27 = pneg %p21
      %p28 = scmp.eq.s32.totalorder %s12, 1
      %p29 = por %p27, %p28
      %p30 = scmp.ne.s32.totalorder %s22, %s25
      %p31 = scmp.eq.s32.totalorder %s12, 0
      %p32 = por %p30, %p31
      %p33 = scmp.ne.s32.totalorder %s22, %s25
      %p34 = scmp.eq.s32.totalorder %s17, 1
      %p35 = por %p33, %p34
      %p36 = scmp.ne.s32.totalorder %s25, %s26
      %p37 = scmp.eq.s32.totalorder %s17, 0
      %p38 = por %p36, %p37
      %p39 = scmp.ne.s32.totalorder %s25, %s26
      %p40 = scmp.eq.s32.totalorder %s18, 1
      %p41 = por %p39, %p40
      %p43 = scmp.ne.s32.totalorder %s26, %s42
      %p44 = scmp.eq.s32.totalorder %s18, 0
      %p45 = por %p43, %p44
      %s47 = sadd.s32 %s46, 1
      %p50 = scmp.eq.s32.totalorder %s12, 1
      %p51 = scmp.ne.s32.totalorder %s46, %s48
      %p52 = scmp.eq.s32.totalorder %s12, 0
      %p53 = por %p51, %p52
      %p54 = scmp.ne.s32.totalorder %s46, %s48
      %p55 = scmp.eq.s32.totalorder %s17, 1
      %p56 = por %p54, %p55
      %p57 = scmp.ne.s32.totalorder %s48, %s49
      %p58 = scmp.eq.s32.totalorder %s17, 0
      %p59 = por %p57, %p58
      %p60 = scmp.ne.s32.totalorder %s48, %s49
      %p61 = scmp.eq.s32.totalorder %s18, 1
      %p62 = por %p60, %p61
      %p64 = scmp.ne.s32.totalorder %s49, %s63
      %p65 = scmp.eq.s32.totalorder %s18, 0
      %p66 = por %p64, %p65
      %s68 = sadd.s32 %s67, 1
      %p71 = scmp.eq.s32.totalorder %s12, 1
      %p72 = scmp.ne.s32.totalorder %s67, %s69
      %p73 = scmp.eq.s32.totalorder %s12, 0
      %p74 = por %p72, %p73
      %p75 = scmp.ne.s32.totalorder %s67, %s69
      %p76 = scmp.eq.s32.totalorder %s17, 1
      %p77 = por %p75, %p76
      %p78 = scmp.ne.s32.totalorder %s69, %s70
      %p79 = scmp.eq.s32.totalorder %s17, 0
      %p80 = por %p78, %p79
      %p81 = scmp.ne.s32.totalorder %s69, %s70
      %p82 = scmp.eq.s32.totalorder %s18, 1
      %p83 = por %p81, %p82
      %p85 = scmp.ne.s32.totalorder %s70, %s84
      %p86 = scmp.eq.s32.totalorder %s18, 0
      %p87 = por %p85, %p86
      %s88 = ssub.s32 %s12, %s19
      %p89 = scmp.eq.s32.totalorder %s88, 0
      %s91 = sadd.s32 %s90, 1
      %s92 = scalar_select %p89, %s90, %s91
      %p95 = pneg %p89
      %p96 = scmp.eq.s32.totalorder %s12, 1
      %p97 = por %p95, %p96
      %p98 = scmp.ne.s32.totalorder %s90, %s93
      %p99 = scmp.eq.s32.totalorder %s12, 0
      %p100 = por %p98, %p99
      %p101 = scmp.ne.s32.totalorder %s90, %s93
      %p102 = scmp.eq.s32.totalorder %s17, 1
      %p103 = por %p101, %p102
      %p104 = scmp.ne.s32.totalorder %s93, %s94
      %p105 = scmp.eq.s32.totalorder %s17, 0
      %p106 = por %p104, %p105
      %p107 = scmp.ne.s32.totalorder %s93, %s94
      %p108 = scmp.eq.s32.totalorder %s18, 1
      %p109 = por %p107, %p108
      %p111 = scmp.ne.s32.totalorder %s94, %s110
      %p112 = scmp.eq.s32.totalorder %s18, 0
      %p113 = por %p111, %p112
      %p114 = scmp.le.s32.totalorder 1, %s12
      %p115 = scmp.lt.s32.totalorder %s12, 3
      %p116 = pnand %p114, %p115
      %p117 = pneg %p116
      // Predicated region
      $region9: #{cnn_backbone_forward.1} parent=5 // pred_check
        _
      $region10: #{cnn_backbone_forward.1} parent=5 // pred_check_branch
        %119 = sbr.rel (%p116) target = $region12
      $region11: #{cnn_backbone_forward.1} parent=5 // pred_region
        %s120 = ssub.s32 %s12, 1
        // Predicated region
        $region13: #{cnn_backbone_forward.1} parent=11 // pred_check
          %p121 = pneg %p59
        $region14: #{cnn_backbone_forward.1} parent=11 // pred_check_branch
          %123 = sbr.rel (%p121) target = $region16
        $region15: #{cnn_backbone_forward.1} parent=11 // pred_region
          _
        $region16: #{cnn_backbone_forward.1} parent=11 // pred_fallthru
          _
        // Predicated region
        $region17: #{cnn_backbone_forward.1} parent=11 // pred_check
          %p124 = pneg %p80
        $region18: #{cnn_backbone_forward.1} parent=11 // pred_check_branch
          %126 = sbr.rel (%p124) target = $region20
        $region19: #{cnn_backbone_forward.1} parent=11 // pred_region
          _
        $region20: #{cnn_backbone_forward.1} parent=11 // pred_fallthru
          _
      $region12: #{cnn_backbone_forward.1} parent=5 // pred_fallthru
        _
      %p127 = scmp.lt.s32.totalorder %s12, 2
      // Predicated region
      $region21: #{cnn_backbone_forward.1} parent=5 // pred_check
        %p128 = pneg %p127
      $region22: #{cnn_backbone_forward.1} parent=5 // pred_check_branch
        %130 = sbr.rel (%p128) target = $region24
      $region23: #{cnn_backbone_forward.1} parent=5 // pred_region
        // Predicated region
        $region25: #{cnn_backbone_forward.1} parent=23 // pred_check
          %p131 = pneg %p32
        $region26: #{cnn_backbone_forward.1} parent=23 // pred_check_branch
          %133 = sbr.rel (%p131) target = $region28
        $region27: #{cnn_backbone_forward.1} parent=23 // pred_region
          %p134 = scmp.lt.s32.totalorder %s12, 1
          %s135 = scalar_select %p134, %s12, 1
          %s136 = smul.addr %s135, 41
          %s137 = smul.addr %s136, 4
          %s138 = scalar_lea.vmem %s0, %s137
        $region28: #{cnn_backbone_forward.1} parent=23 // pred_fallthru
          _
      $region24: #{cnn_backbone_forward.1} parent=5 // pred_fallthru
        _
      %p139 = scmp.le.s32.totalorder 1, %s12
      %p140 = scmp.lt.s32.totalorder %s12, 3
      %p141 = pnand %p139, %p140
      %p142 = pneg %p141
      // Predicated region
      $region29: #{cnn_backbone_forward.1} parent=5 // pred_check
        _
      $region30: #{cnn_backbone_forward.1} parent=5 // pred_check_branch
        %144 = sbr.rel (%p141) target = $region32
      $region31: #{cnn_backbone_forward.1} parent=5 // pred_region
        %s145 = ssub.s32 %s12, 1
        %p146 = scmp.lt.s32.totalorder %s17, 1
        %s147 = scalar_select %p146, %s17, 1
        %s148 = smul.addr %s147, 41
        %s149 = smul.addr %s148, 4
        %s150 = scalar_lea.vmem %s0, %s149
        %p151 = pneg %p38
        %p152 = pneg %p35
        %p153 = pneg %p59
        %p154 = pneg %p56
        %p155 = pneg %p80
        %p156 = pneg %p77
        %p157 = pneg %p106
        %p158 = pneg %p103
        %s159 = sand.u32 %s93, 1
        %s160 = scalar_lea.sflag [#allocation4], %s159
        %s161 = sand.u32 %s93, 1
        %s162 = scalar_lea.vmem [#allocation3], %s161
        %p163 = scmp.lt.s32.totalorder %s17, 1
        %s164 = scalar_select %p163, %s17, 1
        %s165 = smul.addr %s164, 41
        %s166 = smul.addr %s165, 4
        %s167 = scalar_lea.vmem %s0, %s166
        %v168 = vld [vmem:[%s167] sm:$0xf]
        %v169 = vld [vmem:[%s167 + $0x4] sm:$0xf]
        %v170 = vld [vmem:[%s167 + $0x8] sm:$0xf]
        %v171 = vld [vmem:[%s167 + $0xc] sm:$0xf]
        %v172 = vld [vmem:[%s167 + $0x10] sm:$0xf]
        %v173 = vld [vmem:[%s167 + $0x14] sm:$0xf]
        %v174 = vld [vmem:[%s167 + $0x18] sm:$0xf]
        %v175 = vld [vmem:[%s167 + $0x1c] sm:$0xf]
        %v176 = vld [vmem:[%s167 + $0x20] sm:$0xf]
        %v177 = vld [vmem:[%s167 + $0x24] sm:$0xf]
        %v178 = vld [vmem:[%s167 + $0x28] sm:$0xf]
        %v179 = vld [vmem:[%s167 + $0x2c] sm:$0xf]
        %v180 = vld [vmem:[%s167 + $0x30] sm:$0xf]
        %v181 = vld [vmem:[%s167 + $0x34] sm:$0xf]
        %v182 = vld [vmem:[%s167 + $0x38] sm:$0xf]
        %v183 = vld [vmem:[%s167 + $0x3c] sm:$0xf]
        %v184 = vld [vmem:[%s167 + $0x40] sm:$0xf]
        %v185 = vld [vmem:[%s167 + $0x44] sm:$0xf]
        %v186 = vld [vmem:[%s167 + $0x48] sm:$0xf]
        %v187 = vld [vmem:[%s167 + $0x4c] sm:$0xf]
        %v188 = vld [vmem:[%s167 + $0x50] sm:$0xf]
        %v189 = vld [vmem:[%s167 + $0x54] sm:$0xf]
        %v190 = vld [vmem:[%s167 + $0x58] sm:$0xf]
        %v191 = vld [vmem:[%s167 + $0x5c] sm:$0xf]
        %v192 = vld [vmem:[%s167 + $0x60] sm:$0xf]
        %v193 = vld [vmem:[%s167 + $0x64] sm:$0xf]
        %v194 = vld [vmem:[%s167 + $0x68] sm:$0xf]
        %v195 = vld [vmem:[%s167 + $0x6c] sm:$0xf]
        %v196 = vld [vmem:[%s167 + $0x70] sm:$0xf]
        %v197 = vld [vmem:[%s167 + $0x74] sm:$0xf]
        %v198 = vld [vmem:[%s167 + $0x78] sm:$0xf]
        %v199 = vld [vmem:[%s167 + $0x7c] sm:$0xf]
        %v200 = vld [vmem:[%s167 + $0x80] sm:$0xf]
        %v201 = vld [vmem:[%s167 + $0x84] sm:$0xf]
        %v202 = vld [vmem:[%s167 + $0x88] sm:$0xf]
        %v203 = vld [vmem:[%s167 + $0x8c] sm:$0xf]
        %v204 = vld [vmem:[%s167 + $0x90] sm:$0xf]
        %v205 = vld [vmem:[%s167 + $0x94] sm:$0xf]
        %v206 = vld [vmem:[%s167 + $0x98] sm:$0xf]
        %v207 = vld [vmem:[%s167 + $0x9c] sm:$0xf]
        %v208 = vld [vmem:[%s167 + $0xa0] sm:$0x3]
        %v209 = vld [vmem:[%s1] sm:$0xf]
        %v210 = vld [vmem:[%s1 + $0x4] sm:$0xf]
        %v211 = vld [vmem:[%s1 + $0x8] sm:$0xf]
        %v212 = vld [vmem:[%s1 + $0xc] sm:$0xf]
        %v213 = vld [vmem:[%s1 + $0x10] sm:$0xf]
        %v214 = vld [vmem:[%s1 + $0x14] sm:$0xf]
        %v215 = vld [vmem:[%s1 + $0x18] sm:$0xf]
        %v216 = vld [vmem:[%s1 + $0x1c] sm:$0xf]
        %v217 = vld [vmem:[%s1 + $0x20] sm:$0xf]
        %v218 = vld [vmem:[%s1 + $0x24] sm:$0xf]
        %v219 = vld [vmem:[%s1 + $0x28] sm:$0xf]
        %v220 = vld [vmem:[%s1 + $0x2c] sm:$0xf]
        %v221 = vld [vmem:[%s1 + $0x30] sm:$0xf]
        %v222 = vld [vmem:[%s1 + $0x34] sm:$0xf]
        %v223 = vld [vmem:[%s1 + $0x38] sm:$0xf]
        %v224 = vld [vmem:[%s1 + $0x3c] sm:$0xf]
        %v266 = vunpack.c.l.b16 %v168
        %v267 = vunpack.c.l.b16 %v169
        %v268 = vunpack.c.l.b16 %v170
        %v269 = vunpack.c.l.b16 %v171
        %v270 = vunpack.c.l.b16 %v172
        %v271 = vunpack.c.l.b16 %v173
        %v272 = vunpack.c.l.b16 %v174
        %v273 = vunpack.c.l.b16 %v175
        %v274 = vunpack.c.l.b16 %v176
        %v275 = vunpack.c.l.b16 %v177
        %v276 = vunpack.c.l.b16 %v178
        %v277 = vunpack.c.l.b16 %v179
        %v278 = vunpack.c.l.b16 %v180
        %v279 = vunpack.c.l.b16 %v181
        %v280 = vunpack.c.l.b16 %v182
        %v281 = vunpack.c.l.b16 %v183
        %v282 = vunpack.c.l.b16 %v184
        %v283 = vunpack.c.l.b16 %v185
        %v284 = vunpack.c.l.b16 %v186
        %v285 = vunpack.c.l.b16 %v187
        %v286 = vunpack.c.l.b16 %v188
        %v287 = vunpack.c.l.b16 %v189
        %v288 = vunpack.c.l.b16 %v190
        %v289 = vunpack.c.l.b16 %v191
        %v290 = vunpack.c.l.b16 %v192
        %v291 = vunpack.c.l.b16 %v193
        %v292 = vunpack.c.l.b16 %v194
        %v293 = vunpack.c.l.b16 %v195
        %v294 = vunpack.c.l.b16 %v196
        %v295 = vunpack.c.l.b16 %v197
        %v296 = vunpack.c.l.b16 %v198
        %v297 = vunpack.c.l.b16 %v199
        %v298 = vunpack.c.l.b16 %v200
        %v299 = vunpack.c.l.b16 %v201
        %v300 = vunpack.c.l.b16 %v202
        %v301 = vunpack.c.l.b16 %v203
        %v302 = vunpack.c.l.b16 %v204
        %v303 = vunpack.c.l.b16 %v205
        %v304 = vunpack.c.l.b16 %v206
        %v305 = vunpack.c.l.b16 %v207
        %v306 = vunpack.c.l.b16 %v208
        %v307 = vpack.c.b16 %v267, %v266
        %v308 = vpack.c.b16 %v269, %v268
        %v309 = vpack.c.b16 %v271, %v270
        %v310 = vpack.c.b16 %v273, %v272
        %v311 = vpack.c.b16 %v275, %v274
        %v312 = vpack.c.b16 %v277, %v276
        %v313 = vpack.c.b16 %v279, %v278
        %v314 = vpack.c.b16 %v281, %v280
        %v315 = vpack.c.b16 %v283, %v282
        %v316 = vpack.c.b16 %v285, %v284
        %v317 = vpack.c.b16 %v287, %v286
        %v318 = vpack.c.b16 %v289, %v288
        %v319 = vpack.c.b16 %v291, %v290
        %v320 = vpack.c.b16 %v293, %v292
        %v321 = vpack.c.b16 %v295, %v294
        %v322 = vpack.c.b16 %v297, %v296
        %v323 = vpack.c.b16 %v299, %v298
        %v324 = vpack.c.b16 %v301, %v300
        %v325 = vpack.c.b16 %v303, %v302
        %v326 = vpack.c.b16 %v305, %v304
        %v327 = vpack.c.b16 %v306, %v306
        %v365 = vunpack.c.l.b16 %v209
        %v366 = vunpack.c.l.b16 %v210
        %v367 = vunpack.c.l.b16 %v211
        %v368 = vunpack.c.l.b16 %v212
        %v369 = vunpack.c.l.b16 %v213
        %v370 = vunpack.c.l.b16 %v214
        %v371 = vunpack.c.l.b16 %v215
        %v372 = vunpack.c.l.b16 %v216
        %v373 = vunpack.c.l.b16 %v217
        %v374 = vunpack.c.l.b16 %v218
        %v375 = vunpack.c.l.b16 %v219
        %v376 = vunpack.c.l.b16 %v220
        %v377 = vunpack.c.l.b16 %v221
        %v378 = vunpack.c.l.b16 %v222
        %v379 = vunpack.c.l.b16 %v223
        %v380 = vunpack.c.l.b16 %v224
        %v381 = vpack.c.b16 %v366, %v365
        %v382 = vpack.c.b16 %v368, %v367
        %v383 = vpack.c.b16 %v370, %v369
        %v384 = vpack.c.b16 %v372, %v371
        %v385 = vpack.c.b16 %v374, %v373
        %v386 = vpack.c.b16 %v376, %v375
        %v387 = vpack.c.b16 %v378, %v377
        %v388 = vpack.c.b16 %v380, %v379
        %397 = vmatpush.bf16.msra.mxu0 %v388
        %398 = vmatpush.bf16.msra.mxu0 %v387
        %399 = vmatpush.bf16.msra.mxu0 %v386
        %400 = vmatpush.bf16.msra.mxu0 %v385
        %401 = vmatpush.bf16.msra.mxu0 %v384
        %402 = vmatpush.bf16.msra.mxu0 %v383
        %403 = vmatpush.bf16.msra.mxu0 %v382
        %404 = vmatpush.bf16.msra.mxu0 %v381
        %405 = vmatmul.bf16.gmra.mxu0 %v307
        %v406 = vpop.f32.mrf.mxu0
        %v407 = vadd.f32 0.0, %v406
        %v408 = vpop.f32.mrf.mxu0
        %v409 = vadd.f32 0.0, %v408
        %410 = vmatmul.bf16.gmra.mxu0 %v308
        %v411 = vpop.f32.mrf.mxu0
        %v412 = vadd.f32 0.0, %v411
        %v413 = vpop.f32.mrf.mxu0
        %v414 = vadd.f32 0.0, %v413
        %415 = vmatmul.bf16.gmra.mxu0 %v309
        %v416 = vpop.f32.mrf.mxu0
        %v417 = vadd.f32 0.0, %v416
        %v418 = vpop.f32.mrf.mxu0
        %v419 = vadd.f32 0.0, %v418
        %420 = vmatmul.bf16.gmra.mxu0 %v310
        %v421 = vpop.f32.mrf.mxu0
        %v422 = vadd.f32 0.0, %v421
        %v423 = vpop.f32.mrf.mxu0
        %v424 = vadd.f32 0.0, %v423
        %425 = vmatmul.bf16.gmra.mxu0 %v311
        %v426 = vpop.f32.mrf.mxu0
        %v427 = vadd.f32 0.0, %v426
        %v428 = vpop.f32.mrf.mxu0
        %v429 = vadd.f32 0.0, %v428
        %430 = vmatmul.bf16.gmra.mxu0 %v312
        %v431 = vpop.f32.mrf.mxu0
        %v432 = vadd.f32 0.0, %v431
        %v433 = vpop.f32.mrf.mxu0
        %v434 = vadd.f32 0.0, %v433
        %435 = vmatmul.bf16.gmra.mxu0 %v313
        %v436 = vpop.f32.mrf.mxu0
        %v437 = vadd.f32 0.0, %v436
        %v438 = vpop.f32.mrf.mxu0
        %v439 = vadd.f32 0.0, %v438
        %440 = vmatmul.bf16.gmra.mxu0 %v314
        %v441 = vpop.f32.mrf.mxu0
        %v442 = vadd.f32 0.0, %v441
        %v443 = vpop.f32.mrf.mxu0
        %v444 = vadd.f32 0.0, %v443
        %445 = vmatmul.bf16.gmra.mxu0 %v315
        %v446 = vpop.f32.mrf.mxu0
        %v447 = vadd.f32 0.0, %v446
        %v448 = vpop.f32.mrf.mxu0
        %v449 = vadd.f32 0.0, %v448
        %450 = vmatmul.bf16.gmra.mxu0 %v316
        %v451 = vpop.f32.mrf.mxu0
        %v452 = vadd.f32 0.0, %v451
        %v453 = vpop.f32.mrf.mxu0
        %v454 = vadd.f32 0.0, %v453
        %455 = vmatmul.bf16.gmra.mxu0 %v317
        %v456 = vpop.f32.mrf.mxu0
        %v457 = vadd.f32 0.0, %v456
        %v458 = vpop.f32.mrf.mxu0
        %v459 = vadd.f32 0.0, %v458
        %460 = vmatmul.bf16.gmra.mxu0 %v318
        %v461 = vpop.f32.mrf.mxu0
        %v462 = vadd.f32 0.0, %v461
        %v463 = vpop.f32.mrf.mxu0
        %v464 = vadd.f32 0.0, %v463
        %465 = vmatmul.bf16.gmra.mxu0 %v319
        %v466 = vpop.f32.mrf.mxu0
        %v467 = vadd.f32 0.0, %v466
        %v468 = vpop.f32.mrf.mxu0
        %v469 = vadd.f32 0.0, %v468
        %470 = vmatmul.bf16.gmra.mxu0 %v320
        %v471 = vpop.f32.mrf.mxu0
        %v472 = vadd.f32 0.0, %v471
        %v473 = vpop.f32.mrf.mxu0
        %v474 = vadd.f32 0.0, %v473
        %475 = vmatmul.bf16.gmra.mxu0 %v321
        %v476 = vpop.f32.mrf.mxu0
        %v477 = vadd.f32 0.0, %v476
        %v478 = vpop.f32.mrf.mxu0
        %v479 = vadd.f32 0.0, %v478
        %480 = vmatmul.bf16.gmra.mxu0 %v322
        %v481 = vpop.f32.mrf.mxu0
        %v482 = vadd.f32 0.0, %v481
        %v483 = vpop.f32.mrf.mxu0
        %v484 = vadd.f32 0.0, %v483
        %485 = vmatmul.bf16.gmra.mxu0 %v323
        %v486 = vpop.f32.mrf.mxu0
        %v487 = vadd.f32 0.0, %v486
        %v488 = vpop.f32.mrf.mxu0
        %v489 = vadd.f32 0.0, %v488
        %490 = vmatmul.bf16.gmra.mxu0 %v324
        %v491 = vpop.f32.mrf.mxu0
        %v492 = vadd.f32 0.0, %v491
        %v493 = vpop.f32.mrf.mxu0
        %v494 = vadd.f32 0.0, %v493
        %495 = vmatmul.bf16.gmra.mxu0 %v325
        %v496 = vpop.f32.mrf.mxu0
        %v497 = vadd.f32 0.0, %v496
        %v498 = vpop.f32.mrf.mxu0
        %v499 = vadd.f32 0.0, %v498
        %500 = vmatmul.bf16.gmra.mxu0 %v326
        %v501 = vpop.f32.mrf.mxu0
        %v502 = vadd.f32 0.0, %v501
        %v503 = vpop.f32.mrf.mxu0
        %v504 = vadd.f32 0.0, %v503
        %505 = vmatmul.bf16.gmra.mxu0 %v327
        %v506 = vpop.f32.mrf.mxu0
        %v507 = vadd.f32 0.0, %v506
        %v508 = vpop.f32.mrf.mxu0
        %509 = vdwg.mxu0
        %v510 = vmax.f32 %v407, 0.0
        %v511 = vmax.f32 %v409, 0.0
        %v512 = vmax.f32 %v412, 0.0
        %v513 = vmax.f32 %v414, 0.0
        %v514 = vmax.f32 %v417, 0.0
        %v515 = vmax.f32 %v419, 0.0
        %v516 = vmax.f32 %v422, 0.0
        %v517 = vmax.f32 %v424, 0.0
        %v518 = vmax.f32 %v427, 0.0
        %v519 = vmax.f32 %v429, 0.0
        %v520 = vmax.f32 %v432, 0.0
        %v521 = vmax.f32 %v434, 0.0
        %v522 = vmax.f32 %v437, 0.0
        %v523 = vmax.f32 %v439, 0.0
        %v524 = vmax.f32 %v442, 0.0
        %v525 = vmax.f32 %v444, 0.0
        %v526 = vmax.f32 %v447, 0.0
        %v527 = vmax.f32 %v449, 0.0
        %v528 = vmax.f32 %v452, 0.0
        %v529 = vmax.f32 %v454, 0.0
        %v530 = vmax.f32 %v457, 0.0
        %v531 = vmax.f32 %v459, 0.0
        %v532 = vmax.f32 %v462, 0.0
        %v533 = vmax.f32 %v464, 0.0
        %v534 = vmax.f32 %v467, 0.0
        %v535 = vmax.f32 %v469, 0.0
        %v536 = vmax.f32 %v472, 0.0
        %v537 = vmax.f32 %v474, 0.0
        %v538 = vmax.f32 %v477, 0.0
        %v539 = vmax.f32 %v479, 0.0
        %v540 = vmax.f32 %v482, 0.0
        %v541 = vmax.f32 %v484, 0.0
        %v542 = vmax.f32 %v487, 0.0
        %v543 = vmax.f32 %v489, 0.0
        %v544 = vmax.f32 %v492, 0.0
        %v545 = vmax.f32 %v494, 0.0
        %v546 = vmax.f32 %v497, 0.0
        %v547 = vmax.f32 %v499, 0.0
        %v548 = vmax.f32 %v502, 0.0
        %v549 = vmax.f32 %v504, 0.0
        %v550 = vmax.f32 %v507, 0.0
        %v551 = vpack.c.bf16 %v510, %v510
        %v552 = vpack.c.bf16 %v511, %v511
        %v553 = vpack.c.bf16 %v512, %v512
        %v554 = vpack.c.bf16 %v513, %v513
        %v555 = vpack.c.bf16 %v514, %v514
        %v556 = vpack.c.bf16 %v515, %v515
        %v557 = vpack.c.bf16 %v516, %v516
        %v558 = vpack.c.bf16 %v517, %v517
        %v559 = vpack.c.bf16 %v518, %v518
        %v560 = vpack.c.bf16 %v519, %v519
        %v561 = vpack.c.bf16 %v520, %v520
        %v562 = vpack.c.bf16 %v521, %v521
        %v563 = vpack.c.bf16 %v522, %v522
        %v564 = vpack.c.bf16 %v523, %v523
        %v565 = vpack.c.bf16 %v524, %v524
        %v566 = vpack.c.bf16 %v525, %v525
        %v567 = vpack.c.bf16 %v526, %v526
        %v568 = vpack.c.bf16 %v527, %v527
        %v569 = vpack.c.bf16 %v528, %v528
        %v570 = vpack.c.bf16 %v529, %v529
        %v571 = vpack.c.bf16 %v530, %v530
        %v572 = vpack.c.bf16 %v531, %v531
        %v573 = vpack.c.bf16 %v532, %v532
        %v574 = vpack.c.bf16 %v533, %v533
        %v575 = vpack.c.bf16 %v534, %v534
        %v576 = vpack.c.bf16 %v535, %v535
        %v577 = vpack.c.bf16 %v536, %v536
        %v578 = vpack.c.bf16 %v537, %v537
        %v579 = vpack.c.bf16 %v538, %v538
        %v580 = vpack.c.bf16 %v539, %v539
        %v581 = vpack.c.bf16 %v540, %v540
        %v582 = vpack.c.bf16 %v541, %v541
        %v583 = vpack.c.bf16 %v542, %v542
        %v584 = vpack.c.bf16 %v543, %v543
        %v585 = vpack.c.bf16 %v544, %v544
        %v586 = vpack.c.bf16 %v545, %v545
        %v587 = vpack.c.bf16 %v546, %v546
        %v588 = vpack.c.bf16 %v547, %v547
        %v589 = vpack.c.bf16 %v548, %v548
        %v590 = vpack.c.bf16 %v549, %v549
        %v591 = vpack.c.bf16 %v550, %v550
        %v633 = vrot.slane %v551, 3
        %v634 = vrot.slane %v552, 3
        %v635 = vrot.slane %v553, 3
        %v636 = vrot.slane %v554, 3
        %v637 = vrot.slane %v555, 3
        %v638 = vrot.slane %v556, 3
        %v639 = vrot.slane %v557, 3
        %v640 = vrot.slane %v558, 3
        %v641 = vrot.slane %v559, 3
        %v642 = vrot.slane %v560, 3
        %v643 = vrot.slane %v561, 3
        %v644 = vrot.slane %v562, 3
        %v645 = vrot.slane %v563, 3
        %v646 = vrot.slane %v564, 3
        %v647 = vrot.slane %v565, 3
        %v648 = vrot.slane %v566, 3
        %v649 = vrot.slane %v567, 3
        %v650 = vrot.slane %v568, 3
        %v651 = vrot.slane %v569, 3
        %v652 = vrot.slane %v570, 3
        %v653 = vrot.slane %v571, 3
        %v654 = vrot.slane %v572, 3
        %v655 = vrot.slane %v573, 3
        %v656 = vrot.slane %v574, 3
        %v657 = vrot.slane %v575, 3
        %v658 = vrot.slane %v576, 3
        %v659 = vrot.slane %v577, 3
        %v660 = vrot.slane %v578, 3
        %v661 = vrot.slane %v579, 3
        %v662 = vrot.slane %v580, 3
        %v663 = vrot.slane %v581, 3
        %v664 = vrot.slane %v582, 3
        %v665 = vrot.slane %v583, 3
        %v666 = vrot.slane %v584, 3
        %v667 = vrot.slane %v585, 3
        %v668 = vrot.slane %v586, 3
        %v669 = vrot.slane %v587, 3
        %v670 = vrot.slane %v588, 3
        %v671 = vrot.slane %v589, 3
        %v672 = vrot.slane %v590, 3
        %v673 = vrot.slane %v591, 3
        %vm674 = vcmask 1040384
        %v677 = vsel %vm674, %v551, %v633
        %vm678 = vcmask 1041409
        %v679 = vsel %vm678, %v551, %v633
        %v681 = vrot.slane %v679, 1
        %vm682 = vcmask 1042434
        %v683 = vsel %vm682, %v551, %v633
        %v685 = vrot.slane %v683, 2
        %vm686 = vcmask 1043459
        %v687 = vsel %vm686, %v551, %v633
        %v689 = vrot.slane %v687, 3
        %v692 = vsel %vm674, %v552, %v634
        %v693 = vsel %vm678, %v552, %v634
        %v695 = vrot.slane %v693, 1
        %v696 = vsel %vm682, %v552, %v634
        %v698 = vrot.slane %v696, 2
        %v699 = vsel %vm686, %v552, %v634
        %v701 = vrot.slane %v699, 3
        %v704 = vsel %vm674, %v553, %v635
        %v705 = vsel %vm678, %v553, %v635
        %v707 = vrot.slane %v705, 1
        %v708 = vsel %vm682, %v553, %v635
        %v710 = vrot.slane %v708, 2
        %v711 = vsel %vm686, %v553, %v635
        %v713 = vrot.slane %v711, 3
        %v716 = vsel %vm674, %v554, %v636
        %v717 = vsel %vm678, %v554, %v636
        %v719 = vrot.slane %v717, 1
        %v720 = vsel %vm682, %v554, %v636
        %v722 = vrot.slane %v720, 2
        %v723 = vsel %vm686, %v554, %v636
        %v725 = vrot.slane %v723, 3
        %v728 = vsel %vm674, %v555, %v637
        %v729 = vsel %vm678, %v555, %v637
        %v731 = vrot.slane %v729, 1
        %v732 = vsel %vm682, %v555, %v637
        %v734 = vrot.slane %v732, 2
        %v735 = vsel %vm686, %v555, %v637
        %v737 = vrot.slane %v735, 3
        %v740 = vsel %vm674, %v556, %v638
        %v741 = vsel %vm678, %v556, %v638
        %v743 = vrot.slane %v741, 1
        %v744 = vsel %vm682, %v556, %v638
        %v746 = vrot.slane %v744, 2
        %v747 = vsel %vm686, %v556, %v638
        %v749 = vrot.slane %v747, 3
        %v752 = vsel %vm674, %v557, %v639
        %v753 = vsel %vm678, %v557, %v639
        %v755 = vrot.slane %v753, 1
        %v756 = vsel %vm682, %v557, %v639
        %v758 = vrot.slane %v756, 2
        %v759 = vsel %vm686, %v557, %v639
        %v761 = vrot.slane %v759, 3
        %v764 = vsel %vm674, %v558, %v640
        %v765 = vsel %vm678, %v558, %v640
        %v767 = vrot.slane %v765, 1
        %v768 = vsel %vm682, %v558, %v640
        %v770 = vrot.slane %v768, 2
        %v771 = vsel %vm686, %v558, %v640
        %v773 = vrot.slane %v771, 3
        %v776 = vsel %vm674, %v559, %v641
        %v777 = vsel %vm678, %v559, %v641
        %v779 = vrot.slane %v777, 1
        %v780 = vsel %vm682, %v559, %v641
        %v782 = vrot.slane %v780, 2
        %v783 = vsel %vm686, %v559, %v641
        %v785 = vrot.slane %v783, 3
        %v788 = vsel %vm674, %v560, %v642
        %v789 = vsel %vm678, %v560, %v642
        %v791 = vrot.slane %v789, 1
        %v792 = vsel %vm682, %v560, %v642
        %v794 = vrot.slane %v792, 2
        %v795 = vsel %vm686, %v560, %v642
        %v797 = vrot.slane %v795, 3
        %v800 = vsel %vm674, %v561, %v643
        %v801 = vsel %vm678, %v561, %v643
        %v803 = vrot.slane %v801, 1
        %v804 = vsel %vm682, %v561, %v643
        %v806 = vrot.slane %v804, 2
        %v807 = vsel %vm686, %v561, %v643
        %v809 = vrot.slane %v807, 3
        %v812 = vsel %vm674, %v562, %v644
        %v813 = vsel %vm678, %v562, %v644
        %v815 = vrot.slane %v813, 1
        %v816 = vsel %vm682, %v562, %v644
        %v818 = vrot.slane %v816, 2
        %v819 = vsel %vm686, %v562, %v644
        %v821 = vrot.slane %v819, 3
        %v824 = vsel %vm674, %v563, %v645
        %v825 = vsel %vm678, %v563, %v645
        %v827 = vrot.slane %v825, 1
        %v828 = vsel %vm682, %v563, %v645
        %v830 = vrot.slane %v828, 2
        %v831 = vsel %vm686, %v563, %v645
        %v833 = vrot.slane %v831, 3
        %v836 = vsel %vm674, %v564, %v646
        %v837 = vsel %vm678, %v564, %v646
        %v839 = vrot.slane %v837, 1
        %v840 = vsel %vm682, %v564, %v646
        %v842 = vrot.slane %v840, 2
        %v843 = vsel %vm686, %v564, %v646
        %v845 = vrot.slane %v843, 3
        %v848 = vsel %vm674, %v565, %v647
        %v849 = vsel %vm678, %v565, %v647
        %v851 = vrot.slane %v849, 1
        %v852 = vsel %vm682, %v565, %v647
        %v854 = vrot.slane %v852, 2
        %v855 = vsel %vm686, %v565, %v647
        %v857 = vrot.slane %v855, 3
        %v860 = vsel %vm674, %v566, %v648
        %v861 = vsel %vm678, %v566, %v648
        %v863 = vrot.slane %v861, 1
        %v864 = vsel %vm682, %v566, %v648
        %v866 = vrot.slane %v864, 2
        %v867 = vsel %vm686, %v566, %v648
        %v869 = vrot.slane %v867, 3
        %v872 = vsel %vm674, %v567, %v649
        %v873 = vsel %vm678, %v567, %v649
        %v875 = vrot.slane %v873, 1
        %v876 = vsel %vm682, %v567, %v649
        %v878 = vrot.slane %v876, 2
        %v879 = vsel %vm686, %v567, %v649
        %v881 = vrot.slane %v879, 3
        %v884 = vsel %vm674, %v568, %v650
        %v885 = vsel %vm678, %v568, %v650
        %v887 = vrot.slane %v885, 1
        %v888 = vsel %vm682, %v568, %v650
        %v890 = vrot.slane %v888, 2
        %v891 = vsel %vm686, %v568, %v650
        %v893 = vrot.slane %v891, 3
        %v896 = vsel %vm674, %v569, %v651
        %v897 = vsel %vm678, %v569, %v651
        %v899 = vrot.slane %v897, 1
        %v900 = vsel %vm682, %v569, %v651
        %v902 = vrot.slane %v900, 2
        %v903 = vsel %vm686, %v569, %v651
        %v905 = vrot.slane %v903, 3
        %v908 = vsel %vm674, %v570, %v652
        %v909 = vsel %vm678, %v570, %v652
        %v911 = vrot.slane %v909, 1
        %v912 = vsel %vm682, %v570, %v652
        %v914 = vrot.slane %v912, 2
        %v915 = vsel %vm686, %v570, %v652
        %v917 = vrot.slane %v915, 3
        %v920 = vsel %vm674, %v571, %v653
        %v921 = vsel %vm678, %v571, %v653
        %v923 = vrot.slane %v921, 1
        %v924 = vsel %vm682, %v571, %v653
        %v926 = vrot.slane %v924, 2
        %v927 = vsel %vm686, %v571, %v653
        %v929 = vrot.slane %v927, 3
        %v932 = vsel %vm674, %v572, %v654
        %v933 = vsel %vm678, %v572, %v654
        %v935 = vrot.slane %v933, 1
        %v936 = vsel %vm682, %v572, %v654
        %v938 = vrot.slane %v936, 2
        %v939 = vsel %vm686, %v572, %v654
        %v941 = vrot.slane %v939, 3
        %v944 = vsel %vm674, %v573, %v655
        %v945 = vsel %vm678, %v573, %v655
        %v947 = vrot.slane %v945, 1
        %v948 = vsel %vm682, %v573, %v655
        %v950 = vrot.slane %v948, 2
        %v951 = vsel %vm686, %v573, %v655
        %v953 = vrot.slane %v951, 3
        %v956 = vsel %vm674, %v574, %v656
        %v957 = vsel %vm678, %v574, %v656
        %v959 = vrot.slane %v957, 1
        %v960 = vsel %vm682, %v574, %v656
        %v962 = vrot.slane %v960, 2
        %v963 = vsel %vm686, %v574, %v656
        %v965 = vrot.slane %v963, 3
        %v968 = vsel %vm674, %v575, %v657
        %v969 = vsel %vm678, %v575, %v657
        %v971 = vrot.slane %v969, 1
        %v972 = vsel %vm682, %v575, %v657
        %v974 = vrot.slane %v972, 2
        %v975 = vsel %vm686, %v575, %v657
        %v977 = vrot.slane %v975, 3
        %v980 = vsel %vm674, %v576, %v658
        %v981 = vsel %vm678, %v576, %v658
        %v983 = vrot.slane %v981, 1
        %v984 = vsel %vm682, %v576, %v658
        %v986 = vrot.slane %v984, 2
        %v987 = vsel %vm686, %v576, %v658
        %v989 = vrot.slane %v987, 3
        %v992 = vsel %vm674, %v577, %v659
        %v993 = vsel %vm678, %v577, %v659
        %v995 = vrot.slane %v993, 1
        %v996 = vsel %vm682, %v577, %v659
        %v998 = vrot.slane %v996, 2
        %v999 = vsel %vm686, %v577, %v659
        %v1001 = vrot.slane %v999, 3
        %v1004 = vsel %vm674, %v578, %v660
        %v1005 = vsel %vm678, %v578, %v660
        %v1007 = vrot.slane %v1005, 1
        %v1008 = vsel %vm682, %v578, %v660
        %v1010 = vrot.slane %v1008, 2
        %v1011 = vsel %vm686, %v578, %v660
        %v1013 = vrot.slane %v1011, 3
        %v1016 = vsel %vm674, %v579, %v661
        %v1017 = vsel %vm678, %v579, %v661
        %v1019 = vrot.slane %v1017, 1
        %v1020 = vsel %vm682, %v579, %v661
        %v1022 = vrot.slane %v1020, 2
        %v1023 = vsel %vm686, %v579, %v661
        %v1025 = vrot.slane %v1023, 3
        %v1028 = vsel %vm674, %v580, %v662
        %v1029 = vsel %vm678, %v580, %v662
        %v1031 = vrot.slane %v1029, 1
        %v1032 = vsel %vm682, %v580, %v662
        %v1034 = vrot.slane %v1032, 2
        %v1035 = vsel %vm686, %v580, %v662
        %v1037 = vrot.slane %v1035, 3
        %v1040 = vsel %vm674, %v581, %v663
        %v1041 = vsel %vm678, %v581, %v663
        %v1043 = vrot.slane %v1041, 1
        %v1044 = vsel %vm682, %v581, %v663
        %v1046 = vrot.slane %v1044, 2
        %v1047 = vsel %vm686, %v581, %v663
        %v1049 = vrot.slane %v1047, 3
        %v1052 = vsel %vm674, %v582, %v664
        %v1053 = vsel %vm678, %v582, %v664
        %v1055 = vrot.slane %v1053, 1
        %v1056 = vsel %vm682, %v582, %v664
        %v1058 = vrot.slane %v1056, 2
        %v1059 = vsel %vm686, %v582, %v664
        %v1061 = vrot.slane %v1059, 3
        %v1064 = vsel %vm674, %v583, %v665
        %v1065 = vsel %vm678, %v583, %v665
        %v1067 = vrot.slane %v1065, 1
        %v1068 = vsel %vm682, %v583, %v665
        %v1070 = vrot.slane %v1068, 2
        %v1071 = vsel %vm686, %v583, %v665
        %v1073 = vrot.slane %v1071, 3
        %v1076 = vsel %vm674, %v584, %v666
        %v1077 = vsel %vm678, %v584, %v666
        %v1079 = vrot.slane %v1077, 1
        %v1080 = vsel %vm682, %v584, %v666
        %v1082 = vrot.slane %v1080, 2
        %v1083 = vsel %vm686, %v584, %v666
        %v1085 = vrot.slane %v1083, 3
        %v1088 = vsel %vm674, %v585, %v667
        %v1089 = vsel %vm678, %v585, %v667
        %v1091 = vrot.slane %v1089, 1
        %v1092 = vsel %vm682, %v585, %v667
        %v1094 = vrot.slane %v1092, 2
        %v1095 = vsel %vm686, %v585, %v667
        %v1097 = vrot.slane %v1095, 3
        %v1100 = vsel %vm674, %v586, %v668
        %v1101 = vsel %vm678, %v586, %v668
        %v1103 = vrot.slane %v1101, 1
        %v1104 = vsel %vm682, %v586, %v668
        %v1106 = vrot.slane %v1104, 2
        %v1107 = vsel %vm686, %v586, %v668
        %v1109 = vrot.slane %v1107, 3
        %v1112 = vsel %vm674, %v587, %v669
        %v1113 = vsel %vm678, %v587, %v669
        %v1115 = vrot.slane %v1113, 1
        %v1116 = vsel %vm682, %v587, %v669
        %v1118 = vrot.slane %v1116, 2
        %v1119 = vsel %vm686, %v587, %v669
        %v1121 = vrot.slane %v1119, 3
        %v1124 = vsel %vm674, %v588, %v670
        %v1125 = vsel %vm678, %v588, %v670
        %v1127 = vrot.slane %v1125, 1
        %v1128 = vsel %vm682, %v588, %v670
        %v1130 = vrot.slane %v1128, 2
        %v1131 = vsel %vm686, %v588, %v670
        %v1133 = vrot.slane %v1131, 3
        %v1136 = vsel %vm674, %v589, %v671
        %v1137 = vsel %vm678, %v589, %v671
        %v1139 = vrot.slane %v1137, 1
        %v1140 = vsel %vm682, %v589, %v671
        %v1142 = vrot.slane %v1140, 2
        %v1143 = vsel %vm686, %v589, %v671
        %v1145 = vrot.slane %v1143, 3
        %v1148 = vsel %vm674, %v590, %v672
        %v1149 = vsel %vm678, %v590, %v672
        %v1151 = vrot.slane %v1149, 1
        %v1152 = vsel %vm682, %v590, %v672
        %v1154 = vrot.slane %v1152, 2
        %v1155 = vsel %vm686, %v590, %v672
        %v1157 = vrot.slane %v1155, 3
        %v1160 = vsel %vm674, %v591, %v673
        %v1161 = vsel %vm678, %v591, %v673
        %v1163 = vrot.slane %v1161, 1
        %1164 = vst [vmem:[#allocation1] ss:$4 sm:$0xff] %v677
        %s1166 = scalar_lea.vmem [#allocation1], 1
        %1167 = vst [vmem:[%s1166] ss:$4 sm:$0xff] %v681
        %s1169 = scalar_lea.vmem [#allocation1], 2
        %1170 = vst [vmem:[%s1169] ss:$4 sm:$0xff] %v685
        %s1172 = scalar_lea.vmem [#allocation1], 3
        %1173 = vst [vmem:[%s1172] ss:$4 sm:$0xff] %v689
        %s1174 = scalar_lea.vmem [#allocation1], 32
        %1175 = vst [vmem:[%s1174] ss:$4 sm:$0xff] %v692
        %s1177 = scalar_lea.vmem [#allocation1], 33
        %1178 = vst [vmem:[%s1177] ss:$4 sm:$0xff] %v695
        %s1180 = scalar_lea.vmem [#allocation1], 34
        %1181 = vst [vmem:[%s1180] ss:$4 sm:$0xff] %v698
        %s1183 = scalar_lea.vmem [#allocation1], 35
        %1184 = vst [vmem:[%s1183] ss:$4 sm:$0xff] %v701
        %v1185 = vld [vmem:[#allocation1] sm:$0xff]
        %v1186 = vld [vmem:[#allocation1 + $0x20] sm:$0xff]
        %1187 = vst [vmem:[#allocation1] ss:$4 sm:$0xff] %v704
        %v1188 = vld [vmem:[#allocation1] sm:$0xff]
        %1190 = vst [vmem:[%s1174] ss:$4 sm:$0xff] %v707
        %1192 = vst [vmem:[%s1177] ss:$4 sm:$0xff] %v710
        %1194 = vst [vmem:[%s1180] ss:$4 sm:$0xff] %v713
        %1195 = vst [vmem:[%s1183] ss:$4 sm:$0xff] %v716
        %v1196 = vld [vmem:[#allocation1 + $0x20] sm:$0xff]
        %1198 = vst [vmem:[#allocation1] ss:$4 sm:$0xff] %v719
        %1200 = vst [vmem:[%s1166] ss:$4 sm:$0xff] %v722
        %1202 = vst [vmem:[%s1169] ss:$4 sm:$0xff] %v725
        %1203 = vst [vmem:[%s1172] ss:$4 sm:$0xff] %v728
        %1205 = vst [vmem:[%s1174] ss:$4 sm:$0xff] %v731
        %v1206 = vld [vmem:[#allocation1] sm:$0xff]
        %v1207 = vld [vmem:[#allocation1 + $0x20] sm:$0xff]
        %1209 = vst [vmem:[#allocation1] ss:$4 sm:$0xff] %v734
        %1211 = vst [vmem:[%s1166] ss:$4 sm:$0xff] %v737
        %1212 = vst [vmem:[%s1169] ss:$4 sm:$0xff] %v740
        %1214 = vst [vmem:[%s1172] ss:$4 sm:$0xff] %v743
        %1216 = vst [vmem:[%s1174] ss:$4 sm:$0xff] %v746
        %1218 = vst [vmem:[%s1177] ss:$4 sm:$0xff] %v749
        %1219 = vst [vmem:[%s1180] ss:$4 sm:$0xff] %v752
        %1221 = vst [vmem:[%s1183] ss:$4 sm:$0xff] %v755
        %v1222 = vld [vmem:[#allocation1] sm:$0xff]
        %v1223 = vld [vmem:[#allocation1 + $0x20] sm:$0xff]
        %1225 = vst [vmem:[#allocation1] ss:$4 sm:$0xff] %v758
        %v1226 = vld [vmem:[#allocation1] sm:$0xff]
        %1228 = vst [vmem:[%s1174] ss:$4 sm:$0xff] %v761
        %1229 = vst [vmem:[%s1177] ss:$4 sm:$0xff] %v764
        %1231 = vst [vmem:[%s1180] ss:$4 sm:$0xff] %v767
        %1233 = vst [vmem:[%s1183] ss:$4 sm:$0xff] %v770
        %v1234 = vld [vmem:[#allocation1 + $0x20] sm:$0xff]
        %1236 = vst [vmem:[#allocation1] ss:$4 sm:$0xff] %v773
        %1237 = vst [vmem:[%s1166] ss:$4 sm:$0xff] %v776
        %1239 = vst [vmem:[%s1169] ss:$4 sm:$0xff] %v779
        %1241 = vst [vmem:[%s1172] ss:$4 sm:$0xff] %v782
        %1243 = vst [vmem:[%s1174] ss:$4 sm:$0xff] %v785
        %v1244 = vld [vmem:[#allocation1] sm:$0xff]
        %v1245 = vld [vmem:[#allocation1 + $0x20] sm:$0xff]
        %1246 = vst [vmem:[#allocation1] ss:$4 sm:$0xff] %v788
        %1248 = vst [vmem:[%s1166] ss:$4 sm:$0xff] %v791
        %1250 = vst [vmem:[%s1169] ss:$4 sm:$0xff] %v794
        %1252 = vst [vmem:[%s1172] ss:$4 sm:$0xff] %v797
        %1253 = vst [vmem:[%s1174] ss:$4 sm:$0xff] %v800
        %1255 = vst [vmem:[%s1177] ss:$4 sm:$0xff] %v803
        %1257 = vst [vmem:[%s1180] ss:$4 sm:$0xff] %v806
        %1259 = vst [vmem:[%s1183] ss:$4 sm:$0xff] %v809
        %v1260 = vld [vmem:[#allocation1] sm:$0xff]
        %v1261 = vld [vmem:[#allocation1 + $0x20] sm:$0xff]
        %1262 = vst [vmem:[#allocation1] ss:$4 sm:$0xff] %v812
        %v1263 = vld [vmem:[#allocation1] sm:$0xff]
        %1265 = vst [vmem:[%s1174] ss:$4 sm:$0xff] %v815
        %1267 = vst [vmem:[%s1177] ss:$4 sm:$0xff] %v818
        %1269 = vst [vmem:[%s1180] ss:$4 sm:$0xff] %v821
        %1270 = vst [vmem:[%s1183] ss:$4 sm:$0xff] %v824
        %v1271 = vld [vmem:[#allocation1 + $0x20] sm:$0xff]
        %1273 = vst [vmem:[#allocation1] ss:$4 sm:$0xff] %v827
        %1275 = vst [vmem:[%s1166] ss:$4 sm:$0xff] %v830
        %1277 = vst [vmem:[%s1169] ss:$4 sm:$0xff] %v833
        %1278 = vst [vmem:[%s1172] ss:$4 sm:$0xff] %v836
        %1280 = vst [vmem:[%s1174] ss:$4 sm:$0xff] %v839
        %v1281 = vld [vmem:[#allocation1] sm:$0xff]
        %v1282 = vld [vmem:[#allocation1 + $0x20] sm:$0xff]
        %1284 = vst [vmem:[#allocation1] ss:$4 sm:$0xff] %v842
        %1286 = vst [vmem:[%s1166] ss:$4 sm:$0xff] %v845
        %1287 = vst [vmem:[%s1169] ss:$4 sm:$0xff] %v848
        %1289 = vst [vmem:[%s1172] ss:$4 sm:$0xff] %v851
        %1291 = vst [vmem:[%s1174] ss:$4 sm:$0xff] %v854
        %1293 = vst [vmem:[%s1177] ss:$4 sm:$0xff] %v857
        %1294 = vst [vmem:[%s1180] ss:$4 sm:$0xff] %v860
        %1296 = vst [vmem:[%s1183] ss:$4 sm:$0xff] %v863
        %v1297 = vld [vmem:[#allocation1] sm:$0xff]
        %v1298 = vld [vmem:[#allocation1 + $0x20] sm:$0xff]
        %1300 = vst [vmem:[#allocation1] ss:$4 sm:$0xff] %v866
        %v1301 = vld [vmem:[#allocation1] sm:$0xff]
        %1303 = vst [vmem:[%s1174] ss:$4 sm:$0xff] %v869
        %1304 = vst [vmem:[%s1177] ss:$4 sm:$0xff] %v872
        %1306 = vst [vmem:[%s1180] ss:$4 sm:$0xff] %v875
        %1308 = vst [vmem:[%s1183] ss:$4 sm:$0xff] %v878
        %v1309 = vld [vmem:[#allocation1 + $0x20] sm:$0xff]
        %1311 = vst [vmem:[#allocation1] ss:$4 sm:$0xff] %v881
        %1312 = vst [vmem:[%s1166] ss:$4 sm:$0xff] %v884
        %1314 = vst [vmem:[%s1169] ss:$4 sm:$0xff] %v887
        %1316 = vst [vmem:[%s1172] ss:$4 sm:$0xff] %v890
        %1318 = vst [vmem:[%s1174] ss:$4 sm:$0xff] %v893
        %v1319 = vld [vmem:[#allocation1] sm:$0xff]
        %v1320 = vld [vmem:[#allocation1 + $0x20] sm:$0xff]
        %1321 = vst [vmem:[#allocation1] ss:$4 sm:$0xff] %v896
        %1323 = vst [vmem:[%s1166] ss:$4 sm:$0xff] %v899
        %1325 = vst [vmem:[%s1169] ss:$4 sm:$0xff] %v902
        %1327 = vst [vmem:[%s1172] ss:$4 sm:$0xff] %v905
        %1328 = vst [vmem:[%s1174] ss:$4 sm:$0xff] %v908
        %1330 = vst [vmem:[%s1177] ss:$4 sm:$0xff] %v911
        %1332 = vst [vmem:[%s1180] ss:$4 sm:$0xff] %v914
        %1334 = vst [vmem:[%s1183] ss:$4 sm:$0xff] %v917
        %v1335 = vld [vmem:[#allocation1] sm:$0xff]
        %v1336 = vld [vmem:[#allocation1 + $0x20] sm:$0xff]
        %1337 = vst [vmem:[#allocation1] ss:$4 sm:$0xff] %v920
        %v1338 = vld [vmem:[#allocation1] sm:$0xff]
        %1340 = vst [vmem:[%s1174] ss:$4 sm:$0xff] %v923
        %1342 = vst [vmem:[%s1177] ss:$4 sm:$0xff] %v926
        %1344 = vst [vmem:[%s1180] ss:$4 sm:$0xff] %v929
        %1345 = vst [vmem:[%s1183] ss:$4 sm:$0xff] %v932
        %v1346 = vld [vmem:[#allocation1 + $0x20] sm:$0xff]
        %1348 = vst [vmem:[#allocation1] ss:$4 sm:$0xff] %v935
        %1350 = vst [vmem:[%s1166] ss:$4 sm:$0xff] %v938
        %1352 = vst [vmem:[%s1169] ss:$4 sm:$0xff] %v941
        %1353 = vst [vmem:[%s1172] ss:$4 sm:$0xff] %v944
        %1355 = vst [vmem:[%s1174] ss:$4 sm:$0xff] %v947
        %v1356 = vld [vmem:[#allocation1] sm:$0xff]
        %v1357 = vld [vmem:[#allocation1 + $0x20] sm:$0xff]
        %1359 = vst [vmem:[#allocation1] ss:$4 sm:$0xff] %v950
        %1361 = vst [vmem:[%s1166] ss:$4 sm:$0xff] %v953
        %1362 = vst [vmem:[%s1169] ss:$4 sm:$0xff] %v956
        %1364 = vst [vmem:[%s1172] ss:$4 sm:$0xff] %v959
        %1366 = vst [vmem:[%s1174] ss:$4 sm:$0xff] %v962
        %1368 = vst [vmem:[%s1177] ss:$4 sm:$0xff] %v965
        %1369 = vst [vmem:[%s1180] ss:$4 sm:$0xff] %v968
        %1371 = vst [vmem:[%s1183] ss:$4 sm:$0xff] %v971
        %v1372 = vld [vmem:[#allocation1] sm:$0xff]
        %v1373 = vld [vmem:[#allocation1 + $0x20] sm:$0xff]
        %1375 = vst [vmem:[#allocation1] ss:$4 sm:$0xff] %v974
        %v1376 = vld [vmem:[#allocation1] sm:$0xff]
        %1378 = vst [vmem:[%s1174] ss:$4 sm:$0xff] %v977
        %1379 = vst [vmem:[%s1177] ss:$4 sm:$0xff] %v980
        %1381 = vst [vmem:[%s1180] ss:$4 sm:$0xff] %v983
        %1383 = vst [vmem:[%s1183] ss:$4 sm:$0xff] %v986
        %v1384 = vld [vmem:[#allocation1 + $0x20] sm:$0xff]
        %1386 = vst [vmem:[#allocation1] ss:$4 sm:$0xff] %v989
        %1387 = vst [vmem:[%s1166] ss:$4 sm:$0xff] %v992
        %1389 = vst [vmem:[%s1169] ss:$4 sm:$0xff] %v995
        %1391 = vst [vmem:[%s1172] ss:$4 sm:$0xff] %v998
        %1393 = vst [vmem:[%s1174] ss:$4 sm:$0xff] %v1001
        %v1394 = vld [vmem:[#allocation1] sm:$0xff]
        %v1395 = vld [vmem:[#allocation1 + $0x20] sm:$0xff]
        %1396 = vst [vmem:[#allocation1] ss:$4 sm:$0xff] %v1004
        %1398 = vst [vmem:[%s1166] ss:$4 sm:$0xff] %v1007
        %1400 = vst [vmem:[%s1169] ss:$4 sm:$0xff] %v1010
        %1402 = vst [vmem:[%s1172] ss:$4 sm:$0xff] %v1013
        %1403 = vst [vmem:[%s1174] ss:$4 sm:$0xff] %v1016
        %1405 = vst [vmem:[%s1177] ss:$4 sm:$0xff] %v1019
        %1407 = vst [vmem:[%s1180] ss:$4 sm:$0xff] %v1022
        %1409 = vst [vmem:[%s1183] ss:$4 sm:$0xff] %v1025
        %v1410 = vld [vmem:[#allocation1] sm:$0xff]
        %v1411 = vld [vmem:[#allocation1 + $0x20] sm:$0xff]
        %1412 = vst [vmem:[#allocation1] ss:$4 sm:$0xff] %v1028
        %v1413 = vld [vmem:[#allocation1] sm:$0xff]
        %1415 = vst [vmem:[%s1174] ss:$4 sm:$0xff] %v1031
        %1417 = vst [vmem:[%s1177] ss:$4 sm:$0xff] %v1034
        %1419 = vst [vmem:[%s1180] ss:$4 sm:$0xff] %v1037
        %1420 = vst [vmem:[%s1183] ss:$4 sm:$0xff] %v1040
        %v1421 = vld [vmem:[#allocation1 + $0x20] sm:$0xff]
        %1423 = vst [vmem:[#allocation1] ss:$4 sm:$0xff] %v1043
        %1425 = vst [vmem:[%s1166] ss:$4 sm:$0xff] %v1046
        %1427 = vst [vmem:[%s1169] ss:$4 sm:$0xff] %v1049
        %1428 = vst [vmem:[%s1172] ss:$4 sm:$0xff] %v1052
        %1430 = vst [vmem:[%s1174] ss:$4 sm:$0xff] %v1055
        %v1431 = vld [vmem:[#allocation1] sm:$0xff]
        %v1432 = vld [vmem:[#allocation1 + $0x20] sm:$0xff]
        %1434 = vst [vmem:[#allocation1] ss:$4 sm:$0xff] %v1058
        %1436 = vst [vmem:[%s1166] ss:$4 sm:$0xff] %v1061
        %1437 = vst [vmem:[%s1169] ss:$4 sm:$0xff] %v1064
        %1439 = vst [vmem:[%s1172] ss:$4 sm:$0xff] %v1067
        %1441 = vst [vmem:[%s1174] ss:$4 sm:$0xff] %v1070
        %1443 = vst [vmem:[%s1177] ss:$4 sm:$0xff] %v1073
        %1444 = vst [vmem:[%s1180] ss:$4 sm:$0xff] %v1076
        %1446 = vst [vmem:[%s1183] ss:$4 sm:$0xff] %v1079
        %v1447 = vld [vmem:[#allocation1] sm:$0xff]
        %v1448 = vld [vmem:[#allocation1 + $0x20] sm:$0xff]
        %1450 = vst [vmem:[#allocation1] ss:$4 sm:$0xff] %v1082
        %v1451 = vld [vmem:[#allocation1] sm:$0xff]
        %1453 = vst [vmem:[%s1174] ss:$4 sm:$0xff] %v1085
        %1454 = vst [vmem:[%s1177] ss:$4 sm:$0xff] %v1088
        %1456 = vst [vmem:[%s1180] ss:$4 sm:$0xff] %v1091
        %1458 = vst [vmem:[%s1183] ss:$4 sm:$0xff] %v1094
        %v1459 = vld [vmem:[#allocation1 + $0x20] sm:$0xff]
        %1461 = vst [vmem:[#allocation1] ss:$4 sm:$0xff] %v1097
        %1462 = vst [vmem:[%s1166] ss:$4 sm:$0xff] %v1100
        %1464 = vst [vmem:[%s1169] ss:$4 sm:$0xff] %v1103
        %1466 = vst [vmem:[%s1172] ss:$4 sm:$0xff] %v1106
        %1468 = vst [vmem:[%s1174] ss:$4 sm:$0xff] %v1109
        %v1469 = vld [vmem:[#allocation1] sm:$0xff]
        %v1470 = vld [vmem:[#allocation1 + $0x20] sm:$0xff]
        %1471 = vst [vmem:[#allocation1] ss:$4 sm:$0xff] %v1112
        %1473 = vst [vmem:[%s1166] ss:$4 sm:$0xff] %v1115
        %1475 = vst [vmem:[%s1169] ss:$4 sm:$0xff] %v1118
        %1477 = vst [vmem:[%s1172] ss:$4 sm:$0xff] %v1121
        %1478 = vst [vmem:[%s1174] ss:$4 sm:$0xff] %v1124
        %1480 = vst [vmem:[%s1177] ss:$4 sm:$0xff] %v1127
        %1482 = vst [vmem:[%s1180] ss:$4 sm:$0xff] %v1130
        %1484 = vst [vmem:[%s1183] ss:$4 sm:$0xff] %v1133
        %v1485 = vld [vmem:[#allocation1] sm:$0xff]
        %v1486 = vld [vmem:[#allocation1 + $0x20] sm:$0xff]
        %1487 = vst [vmem:[#allocation1] ss:$4 sm:$0xff] %v1136
        %v1488 = vld [vmem:[#allocation1] sm:$0xff]
        %1490 = vst [vmem:[%s1174] ss:$4 sm:$0xff] %v1139
        %1492 = vst [vmem:[%s1177] ss:$4 sm:$0xff] %v1142
        %1494 = vst [vmem:[%s1180] ss:$4 sm:$0xff] %v1145
        %1495 = vst [vmem:[%s1183] ss:$4 sm:$0xff] %v1148
        %v1496 = vld [vmem:[#allocation1 + $0x20] sm:$0xff]
        %1498 = vst [vmem:[#allocation1] ss:$4 sm:$0xff] %v1151
        %1500 = vst [vmem:[%s1166] ss:$4 sm:$0xff] %v1154
        %1502 = vst [vmem:[%s1169] ss:$4 sm:$0xff] %v1157
        %1503 = vst [vmem:[%s1172] ss:$4 sm:$0xff] %v1160
        %1505 = vst [vmem:[%s1174] ss:$4 sm:$0xff] %v1163
        %v1506 = vld [vmem:[#allocation1] sm:$0xff]
        %v1507 = vld [vmem:[#allocation1 + $0x20] sm:$0xff]
        %1562 = vst [vmem:[#allocation2] sm:$0xf] %v1185
        %1563 = vst [vmem:[#allocation2 + $0x4] sm:$0xf] %v1186
        %1564 = vst [vmem:[#allocation2 + $0x8] sm:$0x1] %v1188
        %1565 = vst [vmem:[#allocation2 + $0xc] sm:$0xf] %v1196
        %1566 = vst [vmem:[#allocation2 + $0x10] sm:$0xf] %v1206
        %1567 = vst [vmem:[#allocation2 + $0x14] sm:$0x1] %v1207
        %1568 = vst [vmem:[#allocation2 + $0x18] sm:$0xf] %v1222
        %1569 = vst [vmem:[#allocation2 + $0x1c] sm:$0xf] %v1223
        %1570 = vst [vmem:[#allocation2 + $0x20] sm:$0x1] %v1226
        %1571 = vst [vmem:[#allocation2 + $0x24] sm:$0xf] %v1234
        %1572 = vst [vmem:[#allocation2 + $0x28] sm:$0xf] %v1244
        %1573 = vst [vmem:[#allocation2 + $0x2c] sm:$0x1] %v1245
        %1574 = vst [vmem:[#allocation2 + $0x30] sm:$0xf] %v1260
        %1575 = vst [vmem:[#allocation2 + $0x34] sm:$0xf] %v1261
        %1576 = vst [vmem:[#allocation2 + $0x38] sm:$0x1] %v1263
        %1577 = vst [vmem:[#allocation2 + $0x3c] sm:$0xf] %v1271
        %1578 = vst [vmem:[#allocation2 + $0x40] sm:$0xf] %v1281
        %1579 = vst [vmem:[#allocation2 + $0x44] sm:$0x1] %v1282
        %1580 = vst [vmem:[#allocation2 + $0x48] sm:$0xf] %v1297
        %1581 = vst [vmem:[#allocation2 + $0x4c] sm:$0xf] %v1298
        %1582 = vst [vmem:[#allocation2 + $0x50] sm:$0x1] %v1301
        %1583 = vst [vmem:[#allocation2 + $0x54] sm:$0xf] %v1309
        %1584 = vst [vmem:[#allocation2 + $0x58] sm:$0xf] %v1319
        %1585 = vst [vmem:[#allocation2 + $0x5c] sm:$0x1] %v1320
        %1586 = vst [vmem:[#allocation2 + $0x60] sm:$0xf] %v1335
        %1587 = vst [vmem:[#allocation2 + $0x64] sm:$0xf] %v1336
        %1588 = vst [vmem:[#allocation2 + $0x68] sm:$0x1] %v1338
        %1589 = vst [vmem:[#allocation2 + $0x6c] sm:$0xf] %v1346
        %1590 = vst [vmem:[#allocation2 + $0x70] sm:$0xf] %v1356
        %1591 = vst [vmem:[#allocation2 + $0x74] sm:$0x1] %v1357
        %1592 = vst [vmem:[#allocation2 + $0x78] sm:$0xf] %v1372
        %1593 = vst [vmem:[#allocation2 + $0x7c] sm:$0xf] %v1373
        %1594 = vst [vmem:[#allocation2 + $0x80] sm:$0x1] %v1376
        %1595 = vst [vmem:[#allocation2 + $0x84] sm:$0xf] %v1384
        %1596 = vst [vmem:[#allocation2 + $0x88] sm:$0xf] %v1394
        %1597 = vst [vmem:[#allocation2 + $0x8c] sm:$0x1] %v1395
        %1598 = vst [vmem:[#allocation2 + $0x90] sm:$0xf] %v1410
        %1599 = vst [vmem:[#allocation2 + $0x94] sm:$0xf] %v1411
        %1600 = vst [vmem:[#allocation2 + $0x98] sm:$0x1] %v1413
        %1601 = vst [vmem:[#allocation2 + $0x9c] sm:$0xf] %v1421
        %1602 = vst [vmem:[#allocation2 + $0xa0] sm:$0xf] %v1431
        %1603 = vst [vmem:[#allocation2 + $0xa4] sm:$0x1] %v1432
        %1604 = vst [vmem:[#allocation2 + $0xa8] sm:$0xf] %v1447
        %1605 = vst [vmem:[#allocation2 + $0xac] sm:$0xf] %v1448
        %1606 = vst [vmem:[#allocation2 + $0xb0] sm:$0x1] %v1451
        %1607 = vst [vmem:[#allocation2 + $0xb4] sm:$0xf] %v1459
        %1608 = vst [vmem:[#allocation2 + $0xb8] sm:$0xf] %v1469
        %1609 = vst [vmem:[#allocation2 + $0xbc] sm:$0x1] %v1470
        %1610 = vst [vmem:[#allocation2 + $0xc0] sm:$0xf] %v1485
        %1611 = vst [vmem:[#allocation2 + $0xc4] sm:$0xf] %v1486
        %1612 = vst [vmem:[#allocation2 + $0xc8] sm:$0x1] %v1488
        %1613 = vst [vmem:[#allocation2 + $0xcc] sm:$0xf] %v1496
        %1614 = vst [vmem:[#allocation2 + $0xd0] sm:$0xf] %v1506
        %1615 = vst [vmem:[#allocation2 + $0xd4] sm:$0x1] %v1507
        %v1616 = vld [vmem:[#allocation2] sm:$0xf]
        %v1617 = vld [vmem:[#allocation2 + $0x4] sm:$0xf]
        %v1618 = vld [vmem:[#allocation2 + $0xc] sm:$0xf]
        %v1619 = vld [vmem:[#allocation2 + $0x10] sm:$0xf]
        %v1620 = vld [vmem:[#allocation2 + $0x18] sm:$0xf]
        %v1621 = vld [vmem:[#allocation2 + $0x1c] sm:$0xf]
        %v1622 = vld [vmem:[#allocation2 + $0x24] sm:$0xf]
        %v1623 = vld [vmem:[#allocation2 + $0x28] sm:$0xf]
        %v1624 = vld [vmem:[#allocation2 + $0x30] sm:$0xf]
        %v1625 = vld [vmem:[#allocation2 + $0x34] sm:$0xf]
        %v1626 = vld [vmem:[#allocation2 + $0x3c] sm:$0xf]
        %v1627 = vld [vmem:[#allocation2 + $0x40] sm:$0xf]
        %v1628 = vld [vmem:[#allocation2 + $0x48] sm:$0xf]
        %v1629 = vld [vmem:[#allocation2 + $0x4c] sm:$0xf]
        %v1630 = vld [vmem:[#allocation2 + $0x54] sm:$0xf]
        %v1631 = vld [vmem:[#allocation2 + $0x58] sm:$0xf]
        %v1632 = vld [vmem:[#allocation2 + $0x60] sm:$0xf]
        %v1633 = vld [vmem:[#allocation2 + $0x64] sm:$0xf]
        %v1634 = vld [vmem:[#allocation2 + $0x6c] sm:$0xf]
        %v1635 = vld [vmem:[#allocation2 + $0x70] sm:$0xf]
        %v1636 = vld [vmem:[#allocation2 + $0x78] sm:$0xf]
        %v1637 = vld [vmem:[#allocation2 + $0x7c] sm:$0xf]
        %v1638 = vld [vmem:[#allocation2 + $0x84] sm:$0xf]
        %v1639 = vld [vmem:[#allocation2 + $0x88] sm:$0xf]
        %v1640 = vld [vmem:[#allocation2 + $0x90] sm:$0xf]
        %v1641 = vld [vmem:[#allocation2 + $0x94] sm:$0xf]
        %v1642 = vld [vmem:[#allocation2 + $0x9c] sm:$0xf]
        %v1643 = vld [vmem:[#allocation2 + $0xa0] sm:$0xf]
        %v1644 = vld [vmem:[#allocation2 + $0xa8] sm:$0xf]
        %v1645 = vld [vmem:[#allocation2 + $0xac] sm:$0xf]
        %v1646 = vld [vmem:[#allocation2 + $0xb4] sm:$0xf]
        %v1647 = vld [vmem:[#allocation2 + $0xb8] sm:$0xf]
        %v1648 = vld [vmem:[%s2] sm:$0xf]
        %v1649 = vld [vmem:[%s2 + $0x4] sm:$0xf]
        %v1650 = vld [vmem:[%s2 + $0x8] sm:$0xf]
        %v1651 = vld [vmem:[%s2 + $0xc] sm:$0xf]
        %v1652 = vld [vmem:[%s2 + $0x10] sm:$0xf]
        %v1653 = vld [vmem:[%s2 + $0x14] sm:$0xf]
        %v1654 = vld [vmem:[%s2 + $0x18] sm:$0xf]
        %v1655 = vld [vmem:[%s2 + $0x1c] sm:$0xf]
        %v1656 = vld [vmem:[%s2 + $0x20] sm:$0xf]
        %v1657 = vld [vmem:[%s2 + $0x24] sm:$0xf]
        %v1658 = vld [vmem:[%s2 + $0x28] sm:$0xf]
        %v1659 = vld [vmem:[%s2 + $0x2c] sm:$0xf]
        %v1660 = vld [vmem:[%s2 + $0x30] sm:$0xf]
        %v1661 = vld [vmem:[%s2 + $0x34] sm:$0xf]
        %v1662 = vld [vmem:[%s2 + $0x38] sm:$0xf]
        %v1663 = vld [vmem:[%s2 + $0x3c] sm:$0xf]
        %v1664 = vld [vmem:[#allocation2 + $0x8] sm:$0x1]
        %v1665 = vld [vmem:[#allocation2 + $0x14] sm:$0x1]
        %v1666 = vld [vmem:[#allocation2 + $0x20] sm:$0x1]
        %v1667 = vld [vmem:[#allocation2 + $0x2c] sm:$0x1]
        %v1668 = vld [vmem:[#allocation2 + $0x38] sm:$0x1]
        %v1669 = vld [vmem:[#allocation2 + $0x44] sm:$0x1]
        %v1670 = vld [vmem:[#allocation2 + $0x50] sm:$0x1]
        %v1671 = vld [vmem:[#allocation2 + $0x5c] sm:$0x1]
        %v1672 = vld [vmem:[#allocation2 + $0x68] sm:$0x1]
        %v1673 = vld [vmem:[#allocation2 + $0x74] sm:$0x1]
        %v1674 = vld [vmem:[#allocation2 + $0x80] sm:$0x1]
        %v1675 = vld [vmem:[#allocation2 + $0x8c] sm:$0x1]
        %v1676 = vld [vmem:[#allocation2 + $0x98] sm:$0x1]
        %v1677 = vld [vmem:[#allocation2 + $0xa4] sm:$0x1]
        %v1678 = vld [vmem:[#allocation2 + $0xb0] sm:$0x1]
        %v1679 = vld [vmem:[#allocation2 + $0xbc] sm:$0x1]
        %vm1680 = vsmask.f32 3328
        %vm1681 = vsmask.f32 7440
        %vm1682 = vmor %vm1680, %vm1681
        %v1684 = vshrl.u32 %v1616, 16
        %v1686 = vrot.slane %v1684, 4
        %v1687 = vshll.u32 %v1616, 16
        %v1689 = vrot.slane %v1687, 5
        %v1690 = vor.u32 %v1686, %v1689
        %v1691 = vrot.slane %v1690, 4
        %v1693 = vshll.u32 %v1617, 16
        %v1695 = vrot.slane %v1693, 5
        %v1696 = vsel %vm1682, %v1691, %v1695
        %v1697 = vshrl.u32 %v1617, 16
        %v1699 = vrot.slane %v1697, 4
        %v1700 = vor.u32 %v1699, %v1695
        %v1701 = vrot.slane %v1700, 4
        %v1703 = vshll.u32 %v1664, 16
        %v1705 = vrot.slane %v1703, 5
        %v1706 = vsel %vm1682, %v1701, %v1705
        %v1708 = vshrl.u32 %v1618, 16
        %v1710 = vrot.slane %v1708, 4
        %v1711 = vshll.u32 %v1618, 16
        %v1713 = vrot.slane %v1711, 5
        %v1714 = vor.u32 %v1710, %v1713
        %v1715 = vrot.slane %v1714, 4
        %v1717 = vshll.u32 %v1619, 16
        %v1719 = vrot.slane %v1717, 5
        %v1720 = vsel %vm1682, %v1715, %v1719
        %v1721 = vshrl.u32 %v1619, 16
        %v1723 = vrot.slane %v1721, 4
        %v1724 = vor.u32 %v1723, %v1719
        %v1725 = vrot.slane %v1724, 4
        %v1727 = vshll.u32 %v1665, 16
        %v1729 = vrot.slane %v1727, 5
        %v1730 = vsel %vm1682, %v1725, %v1729
        %v1732 = vshrl.u32 %v1620, 16
        %v1734 = vrot.slane %v1732, 4
        %v1735 = vshll.u32 %v1620, 16
        %v1737 = vrot.slane %v1735, 5
        %v1738 = vor.u32 %v1734, %v1737
        %v1739 = vrot.slane %v1738, 4
        %v1741 = vshll.u32 %v1621, 16
        %v1743 = vrot.slane %v1741, 5
        %v1744 = vsel %vm1682, %v1739, %v1743
        %v1745 = vshrl.u32 %v1621, 16
        %v1747 = vrot.slane %v1745, 4
        %v1748 = vor.u32 %v1747, %v1743
        %v1749 = vrot.slane %v1748, 4
        %v1751 = vshll.u32 %v1666, 16
        %v1753 = vrot.slane %v1751, 5
        %v1754 = vsel %vm1682, %v1749, %v1753
        %v1756 = vshrl.u32 %v1622, 16
        %v1758 = vrot.slane %v1756, 4
        %v1759 = vshll.u32 %v1622, 16
        %v1761 = vrot.slane %v1759, 5
        %v1762 = vor.u32 %v1758, %v1761
        %v1763 = vrot.slane %v1762, 4
        %v1765 = vshll.u32 %v1623, 16
        %v1767 = vrot.slane %v1765, 5
        %v1768 = vsel %vm1682, %v1763, %v1767
        %v1769 = vshrl.u32 %v1623, 16
        %v1771 = vrot.slane %v1769, 4
        %v1772 = vor.u32 %v1771, %v1767
        %v1773 = vrot.slane %v1772, 4
        %v1775 = vshll.u32 %v1667, 16
        %v1777 = vrot.slane %v1775, 5
        %v1778 = vsel %vm1682, %v1773, %v1777
        %v1780 = vshrl.u32 %v1624, 16
        %v1782 = vrot.slane %v1780, 4
        %v1783 = vshll.u32 %v1624, 16
        %v1785 = vrot.slane %v1783, 5
        %v1786 = vor.u32 %v1782, %v1785
        %v1787 = vrot.slane %v1786, 4
        %v1789 = vshll.u32 %v1625, 16
        %v1791 = vrot.slane %v1789, 5
        %v1792 = vsel %vm1682, %v1787, %v1791
        %v1793 = vshrl.u32 %v1625, 16
        %v1795 = vrot.slane %v1793, 4
        %v1796 = vor.u32 %v1795, %v1791
        %v1797 = vrot.slane %v1796, 4
        %v1799 = vshll.u32 %v1668, 16
        %v1801 = vrot.slane %v1799, 5
        %v1802 = vsel %vm1682, %v1797, %v1801
        %v1804 = vshrl.u32 %v1626, 16
        %v1806 = vrot.slane %v1804, 4
        %v1807 = vshll.u32 %v1626, 16
        %v1809 = vrot.slane %v1807, 5
        %v1810 = vor.u32 %v1806, %v1809
        %v1811 = vrot.slane %v1810, 4
        %v1813 = vshll.u32 %v1627, 16
        %v1815 = vrot.slane %v1813, 5
        %v1816 = vsel %vm1682, %v1811, %v1815
        %v1817 = vshrl.u32 %v1627, 16
        %v1819 = vrot.slane %v1817, 4
        %v1820 = vor.u32 %v1819, %v1815
        %v1821 = vrot.slane %v1820, 4
        %v1823 = vshll.u32 %v1669, 16
        %v1825 = vrot.slane %v1823, 5
        %v1826 = vsel %vm1682, %v1821, %v1825
        %v1828 = vshrl.u32 %v1628, 16
        %v1830 = vrot.slane %v1828, 4
        %v1831 = vshll.u32 %v1628, 16
        %v1833 = vrot.slane %v1831, 5
        %v1834 = vor.u32 %v1830, %v1833
        %v1835 = vrot.slane %v1834, 4
        %v1837 = vshll.u32 %v1629, 16
        %v1839 = vrot.slane %v1837, 5
        %v1840 = vsel %vm1682, %v1835, %v1839
        %v1841 = vshrl.u32 %v1629, 16
        %v1843 = vrot.slane %v1841, 4
        %v1844 = vor.u32 %v1843, %v1839
        %v1845 = vrot.slane %v1844, 4
        %v1847 = vshll.u32 %v1670, 16
        %v1849 = vrot.slane %v1847, 5
        %v1850 = vsel %vm1682, %v1845, %v1849
        %v1852 = vshrl.u32 %v1630, 16
        %v1854 = vrot.slane %v1852, 4
        %v1855 = vshll.u32 %v1630, 16
        %v1857 = vrot.slane %v1855, 5
        %v1858 = vor.u32 %v1854, %v1857
        %v1859 = vrot.slane %v1858, 4
        %v1861 = vshll.u32 %v1631, 16
        %v1863 = vrot.slane %v1861, 5
        %v1864 = vsel %vm1682, %v1859, %v1863
        %v1865 = vshrl.u32 %v1631, 16
        %v1867 = vrot.slane %v1865, 4
        %v1868 = vor.u32 %v1867, %v1863
        %v1869 = vrot.slane %v1868, 4
        %v1871 = vshll.u32 %v1671, 16
        %v1873 = vrot.slane %v1871, 5
        %v1874 = vsel %vm1682, %v1869, %v1873
        %v1876 = vshrl.u32 %v1632, 16
        %v1878 = vrot.slane %v1876, 4
        %v1879 = vshll.u32 %v1632, 16
        %v1881 = vrot.slane %v1879, 5
        %v1882 = vor.u32 %v1878, %v1881
        %v1883 = vrot.slane %v1882, 4
        %v1885 = vshll.u32 %v1633, 16
        %v1887 = vrot.slane %v1885, 5
        %v1888 = vsel %vm1682, %v1883, %v1887
        %v1889 = vshrl.u32 %v1633, 16
        %v1891 = vrot.slane %v1889, 4
        %v1892 = vor.u32 %v1891, %v1887
        %v1893 = vrot.slane %v1892, 4
        %v1895 = vshll.u32 %v1672, 16
        %v1897 = vrot.slane %v1895, 5
        %v1898 = vsel %vm1682, %v1893, %v1897
        %v1900 = vshrl.u32 %v1634, 16
        %v1902 = vrot.slane %v1900, 4
        %v1903 = vshll.u32 %v1634, 16
        %v1905 = vrot.slane %v1903, 5
        %v1906 = vor.u32 %v1902, %v1905
        %v1907 = vrot.slane %v1906, 4
        %v1909 = vshll.u32 %v1635, 16
        %v1911 = vrot.slane %v1909, 5
        %v1912 = vsel %vm1682, %v1907, %v1911
        %v1913 = vshrl.u32 %v1635, 16
        %v1915 = vrot.slane %v1913, 4
        %v1916 = vor.u32 %v1915, %v1911
        %v1917 = vrot.slane %v1916, 4
        %v1919 = vshll.u32 %v1673, 16
        %v1921 = vrot.slane %v1919, 5
        %v1922 = vsel %vm1682, %v1917, %v1921
        %v1924 = vshrl.u32 %v1636, 16
        %v1926 = vrot.slane %v1924, 4
        %v1927 = vshll.u32 %v1636, 16
        %v1929 = vrot.slane %v1927, 5
        %v1930 = vor.u32 %v1926, %v1929
        %v1931 = vrot.slane %v1930, 4
        %v1933 = vshll.u32 %v1637, 16
        %v1935 = vrot.slane %v1933, 5
        %v1936 = vsel %vm1682, %v1931, %v1935
        %v1937 = vshrl.u32 %v1637, 16
        %v1939 = vrot.slane %v1937, 4
        %v1940 = vor.u32 %v1939, %v1935
        %v1941 = vrot.slane %v1940, 4
        %v1943 = vshll.u32 %v1674, 16
        %v1945 = vrot.slane %v1943, 5
        %v1946 = vsel %vm1682, %v1941, %v1945
        %v1948 = vshrl.u32 %v1638, 16
        %v1950 = vrot.slane %v1948, 4
        %v1951 = vshll.u32 %v1638, 16
        %v1953 = vrot.slane %v1951, 5
        %v1954 = vor.u32 %v1950, %v1953
        %v1955 = vrot.slane %v1954, 4
        %v1957 = vshll.u32 %v1639, 16
        %v1959 = vrot.slane %v1957, 5
        %v1960 = vsel %vm1682, %v1955, %v1959
        %v1961 = vshrl.u32 %v1639, 16
        %v1963 = vrot.slane %v1961, 4
        %v1964 = vor.u32 %v1963, %v1959
        %v1965 = vrot.slane %v1964, 4
        %v1967 = vshll.u32 %v1675, 16
        %v1969 = vrot.slane %v1967, 5
        %v1970 = vsel %vm1682, %v1965, %v1969
        %v1972 = vshrl.u32 %v1640, 16
        %v1974 = vrot.slane %v1972, 4
        %v1975 = vshll.u32 %v1640, 16
        %v1977 = vrot.slane %v1975, 5
        %v1978 = vor.u32 %v1974, %v1977
        %v1979 = vrot.slane %v1978, 4
        %v1981 = vshll.u32 %v1641, 16
        %v1983 = vrot.slane %v1981, 5
        %v1984 = vsel %vm1682, %v1979, %v1983
        %v1985 = vshrl.u32 %v1641, 16
        %v1987 = vrot.slane %v1985, 4
        %v1988 = vor.u32 %v1987, %v1983
        %v1989 = vrot.slane %v1988, 4
        %v1991 = vshll.u32 %v1676, 16
        %v1993 = vrot.slane %v1991, 5
        %v1994 = vsel %vm1682, %v1989, %v1993
        %v1996 = vshrl.u32 %v1642, 16
        %v1998 = vrot.slane %v1996, 4
        %v1999 = vshll.u32 %v1642, 16
        %v2001 = vrot.slane %v1999, 5
        %v2002 = vor.u32 %v1998, %v2001
        %v2003 = vrot.slane %v2002, 4
        %v2005 = vshll.u32 %v1643, 16
        %v2007 = vrot.slane %v2005, 5
        %v2008 = vsel %vm1682, %v2003, %v2007
        %v2009 = vshrl.u32 %v1643, 16
        %v2011 = vrot.slane %v2009, 4
        %v2012 = vor.u32 %v2011, %v2007
        %v2013 = vrot.slane %v2012, 4
        %v2015 = vshll.u32 %v1677, 16
        %v2017 = vrot.slane %v2015, 5
        %v2018 = vsel %vm1682, %v2013, %v2017
        %v2020 = vshrl.u32 %v1644, 16
        %v2022 = vrot.slane %v2020, 4
        %v2023 = vshll.u32 %v1644, 16
        %v2025 = vrot.slane %v2023, 5
        %v2026 = vor.u32 %v2022, %v2025
        %v2027 = vrot.slane %v2026, 4
        %v2029 = vshll.u32 %v1645, 16
        %v2031 = vrot.slane %v2029, 5
        %v2032 = vsel %vm1682, %v2027, %v2031
        %v2033 = vshrl.u32 %v1645, 16
        %v2035 = vrot.slane %v2033, 4
        %v2036 = vor.u32 %v2035, %v2031
        %v2037 = vrot.slane %v2036, 4
        %v2039 = vshll.u32 %v1678, 16
        %v2041 = vrot.slane %v2039, 5
        %v2042 = vsel %vm1682, %v2037, %v2041
        %v2044 = vshrl.u32 %v1646, 16
        %v2046 = vrot.slane %v2044, 4
        %v2047 = vshll.u32 %v1646, 16
        %v2049 = vrot.slane %v2047, 5
        %v2050 = vor.u32 %v2046, %v2049
        %v2051 = vrot.slane %v2050, 4
        %v2053 = vshll.u32 %v1647, 16
        %v2055 = vrot.slane %v2053, 5
        %v2056 = vsel %vm1682, %v2051, %v2055
        %v2057 = vshrl.u32 %v1647, 16
        %v2059 = vrot.slane %v2057, 4
        %v2060 = vor.u32 %v2059, %v2055
        %v2061 = vrot.slane %v2060, 4
        %v2063 = vshll.u32 %v1679, 16
        %v2065 = vrot.slane %v2063, 5
        %v2066 = vsel %vm1682, %v2061, %v2065
        %s2067 = scalar_lea.vmem %s2, 64
        %v2068 = vld [vmem:[%s2067] sm:$0xf]
        %v2069 = vld [vmem:[%s2067 + $0x4] sm:$0xf]
        %v2070 = vld [vmem:[%s2067 + $0x8] sm:$0xf]
        %v2071 = vld [vmem:[%s2067 + $0xc] sm:$0xf]
        %v2072 = vld [vmem:[%s2067 + $0x10] sm:$0xf]
        %v2073 = vld [vmem:[%s2067 + $0x14] sm:$0xf]
        %v2074 = vld [vmem:[%s2067 + $0x18] sm:$0xf]
        %v2075 = vld [vmem:[%s2067 + $0x1c] sm:$0xf]
        %v2076 = vld [vmem:[%s2067 + $0x20] sm:$0xf]
        %v2077 = vld [vmem:[%s2067 + $0x24] sm:$0xf]
        %v2078 = vld [vmem:[%s2067 + $0x28] sm:$0xf]
        %v2079 = vld [vmem:[%s2067 + $0x2c] sm:$0xf]
        %v2080 = vld [vmem:[%s2067 + $0x30] sm:$0xf]
        %v2081 = vld [vmem:[%s2067 + $0x34] sm:$0xf]
        %v2082 = vld [vmem:[%s2067 + $0x38] sm:$0xf]
        %v2083 = vld [vmem:[%s2067 + $0x3c] sm:$0xf]
        %v2084 = vunpack.c.l.b16 %v1696
        %v2085 = vunpack.c.l.b16 %v1706
        %v2086 = vunpack.c.l.b16 %v1720
        %v2087 = vunpack.c.l.b16 %v1730
        %v2088 = vunpack.c.l.b16 %v1744
        %v2089 = vunpack.c.l.b16 %v1754
        %v2090 = vunpack.c.l.b16 %v1768
        %v2091 = vunpack.c.l.b16 %v1778
        %v2092 = vunpack.c.l.b16 %v1792
        %v2093 = vunpack.c.l.b16 %v1802
        %v2094 = vunpack.c.l.b16 %v1816
        %v2095 = vunpack.c.l.b16 %v1826
        %v2096 = vunpack.c.l.b16 %v1840
        %v2097 = vunpack.c.l.b16 %v1850
        %v2098 = vunpack.c.l.b16 %v1864
        %v2099 = vunpack.c.l.b16 %v1874
        %v2100 = vunpack.c.l.b16 %v1888
        %v2101 = vunpack.c.l.b16 %v1898
        %v2102 = vunpack.c.l.b16 %v1912
        %v2103 = vunpack.c.l.b16 %v1922
        %v2104 = vunpack.c.l.b16 %v1936
        %v2105 = vunpack.c.l.b16 %v1946
        %v2106 = vunpack.c.l.b16 %v1960
        %v2107 = vunpack.c.l.b16 %v1970
        %v2108 = vunpack.c.l.b16 %v1984
        %v2109 = vunpack.c.l.b16 %v1994
        %v2110 = vunpack.c.l.b16 %v2008
        %v2111 = vunpack.c.l.b16 %v2018
        %v2112 = vunpack.c.l.b16 %v2032
        %v2113 = vunpack.c.l.b16 %v2042
        %v2114 = vunpack.c.l.b16 %v2056
        %v2115 = vunpack.c.l.b16 %v2066
        %v2116 = vpack.c.b16 %v2085, %v2084
        %v2117 = vpack.c.b16 %v2087, %v2086
        %v2118 = vpack.c.b16 %v2089, %v2088
        %v2119 = vpack.c.b16 %v2091, %v2090
        %v2120 = vpack.c.b16 %v2093, %v2092
        %v2121 = vpack.c.b16 %v2095, %v2094
        %v2122 = vpack.c.b16 %v2097, %v2096
        %v2123 = vpack.c.b16 %v2099, %v2098
        %v2124 = vpack.c.b16 %v2101, %v2100
        %v2125 = vpack.c.b16 %v2103, %v2102
        %v2126 = vpack.c.b16 %v2105, %v2104
        %v2127 = vpack.c.b16 %v2107, %v2106
        %v2128 = vpack.c.b16 %v2109, %v2108
        %v2129 = vpack.c.b16 %v2111, %v2110
        %v2130 = vpack.c.b16 %v2113, %v2112
        %v2131 = vpack.c.b16 %v2115, %v2114
        %v2164 = vunpack.c.l.b16 %v2068
        %v2165 = vunpack.c.l.b16 %v2069
        %v2166 = vunpack.c.l.b16 %v2070
        %v2167 = vunpack.c.l.b16 %v2071
        %v2168 = vunpack.c.l.b16 %v2072
        %v2169 = vunpack.c.l.b16 %v2073
        %v2170 = vunpack.c.l.b16 %v2074
        %v2171 = vunpack.c.l.b16 %v2075
        %v2172 = vunpack.c.l.b16 %v2076
        %v2173 = vunpack.c.l.b16 %v2077
        %v2174 = vunpack.c.l.b16 %v2078
        %v2175 = vunpack.c.l.b16 %v2079
        %v2176 = vunpack.c.l.b16 %v2080
        %v2177 = vunpack.c.l.b16 %v2081
        %v2178 = vunpack.c.l.b16 %v2082
        %v2179 = vunpack.c.l.b16 %v2083
        %v2180 = vpack.c.b16 %v2165, %v2164
        %v2181 = vpack.c.b16 %v2167, %v2166
        %v2182 = vpack.c.b16 %v2169, %v2168
        %v2183 = vpack.c.b16 %v2171, %v2170
        %v2184 = vpack.c.b16 %v2173, %v2172
        %v2185 = vpack.c.b16 %v2175, %v2174
        %v2186 = vpack.c.b16 %v2177, %v2176
        %v2187 = vpack.c.b16 %v2179, %v2178
        %2196 = vmatpush.bf16.msra.mxu0 %v2187
        %2197 = vmatpush.bf16.msra.mxu0 %v2186
        %2198 = vmatpush.bf16.msra.mxu0 %v2185
        %2199 = vmatpush.bf16.msra.mxu0 %v2184
        %2200 = vmatpush.bf16.msra.mxu0 %v2183
        %2201 = vmatpush.bf16.msra.mxu0 %v2182
        %2202 = vmatpush.bf16.msra.mxu0 %v2181
        %2203 = vmatpush.bf16.msra.mxu0 %v2180
        %2204 = vmatmul.bf16.gmra.mxu0 %v2116
        %v2205 = vpop.f32.mrf.mxu0
        %v2206 = vadd.f32 0.0, %v2205
        %v2207 = vpop.f32.mrf.mxu0
        %v2208 = vadd.f32 0.0, %v2207
        %2209 = vmatmul.bf16.gmra.mxu0 %v2117
        %v2210 = vpop.f32.mrf.mxu0
        %v2211 = vadd.f32 0.0, %v2210
        %v2212 = vpop.f32.mrf.mxu0
        %v2213 = vadd.f32 0.0, %v2212
        %2214 = vmatmul.bf16.gmra.mxu0 %v2118
        %v2215 = vpop.f32.mrf.mxu0
        %v2216 = vadd.f32 0.0, %v2215
        %v2217 = vpop.f32.mrf.mxu0
        %v2218 = vadd.f32 0.0, %v2217
        %2219 = vmatmul.bf16.gmra.mxu0 %v2119
        %v2220 = vpop.f32.mrf.mxu0
        %v2221 = vadd.f32 0.0, %v2220
        %v2222 = vpop.f32.mrf.mxu0
        %v2223 = vadd.f32 0.0, %v2222
        %2224 = vmatmul.bf16.gmra.mxu0 %v2120
        %v2225 = vpop.f32.mrf.mxu0
        %v2226 = vadd.f32 0.0, %v2225
        %v2227 = vpop.f32.mrf.mxu0
        %v2228 = vadd.f32 0.0, %v2227
        %2229 = vmatmul.bf16.gmra.mxu0 %v2121
        %v2230 = vpop.f32.mrf.mxu0
        %v2231 = vadd.f32 0.0, %v2230
        %v2232 = vpop.f32.mrf.mxu0
        %v2233 = vadd.f32 0.0, %v2232
        %2234 = vmatmul.bf16.gmra.mxu0 %v2122
        %v2235 = vpop.f32.mrf.mxu0
        %v2236 = vadd.f32 0.0, %v2235
        %v2237 = vpop.f32.mrf.mxu0
        %v2238 = vadd.f32 0.0, %v2237
        %2239 = vmatmul.bf16.gmra.mxu0 %v2123
        %v2240 = vpop.f32.mrf.mxu0
        %v2241 = vadd.f32 0.0, %v2240
        %v2242 = vpop.f32.mrf.mxu0
        %v2243 = vadd.f32 0.0, %v2242
        %2244 = vmatmul.bf16.gmra.mxu0 %v2124
        %v2245 = vpop.f32.mrf.mxu0
        %v2246 = vadd.f32 0.0, %v2245
        %v2247 = vpop.f32.mrf.mxu0
        %v2248 = vadd.f32 0.0, %v2247
        %2249 = vmatmul.bf16.gmra.mxu0 %v2125
        %v2250 = vpop.f32.mrf.mxu0
        %v2251 = vadd.f32 0.0, %v2250
        %v2252 = vpop.f32.mrf.mxu0
        %v2253 = vadd.f32 0.0, %v2252
        %2254 = vmatmul.bf16.gmra.mxu0 %v2126
        %v2255 = vpop.f32.mrf.mxu0
        %v2256 = vadd.f32 0.0, %v2255
        %v2257 = vpop.f32.mrf.mxu0
        %v2258 = vadd.f32 0.0, %v2257
        %2259 = vmatmul.bf16.gmra.mxu0 %v2127
        %v2260 = vpop.f32.mrf.mxu0
        %v2261 = vadd.f32 0.0, %v2260
        %v2262 = vpop.f32.mrf.mxu0
        %v2263 = vadd.f32 0.0, %v2262
        %2264 = vmatmul.bf16.gmra.mxu0 %v2128
        %v2265 = vpop.f32.mrf.mxu0
        %v2266 = vadd.f32 0.0, %v2265
        %v2267 = vpop.f32.mrf.mxu0
        %v2268 = vadd.f32 0.0, %v2267
        %2269 = vmatmul.bf16.gmra.mxu0 %v2129
        %v2270 = vpop.f32.mrf.mxu0
        %v2271 = vadd.f32 0.0, %v2270
        %v2272 = vpop.f32.mrf.mxu0
        %v2273 = vadd.f32 0.0, %v2272
        %2274 = vmatmul.bf16.gmra.mxu0 %v2130
        %v2275 = vpop.f32.mrf.mxu0
        %v2276 = vadd.f32 0.0, %v2275
        %v2277 = vpop.f32.mrf.mxu0
        %v2278 = vadd.f32 0.0, %v2277
        %2279 = vmatmul.bf16.gmra.mxu0 %v2131
        %v2280 = vpop.f32.mrf.mxu0
        %v2281 = vadd.f32 0.0, %v2280
        %v2282 = vpop.f32.mrf.mxu0
        %v2283 = vadd.f32 0.0, %v2282
        %2284 = vdwg.mxu0
        %v2317 = vunpack.c.l.b16 %v1616
        %v2318 = vunpack.c.l.b16 %v1617
        %v2319 = vunpack.c.l.b16 %v1618
        %v2320 = vunpack.c.l.b16 %v1619
        %v2321 = vunpack.c.l.b16 %v1620
        %v2322 = vunpack.c.l.b16 %v1621
        %v2323 = vunpack.c.l.b16 %v1622
        %v2324 = vunpack.c.l.b16 %v1623
        %v2325 = vunpack.c.l.b16 %v1624
        %v2326 = vunpack.c.l.b16 %v1625
        %v2327 = vunpack.c.l.b16 %v1626
        %v2328 = vunpack.c.l.b16 %v1627
        %v2329 = vunpack.c.l.b16 %v1628
        %v2330 = vunpack.c.l.b16 %v1629
        %v2331 = vunpack.c.l.b16 %v1630
        %v2332 = vunpack.c.l.b16 %v1631
        %v2333 = vunpack.c.l.b16 %v1632
        %v2334 = vunpack.c.l.b16 %v1633
        %v2335 = vunpack.c.l.b16 %v1634
        %v2336 = vunpack.c.l.b16 %v1635
        %v2337 = vunpack.c.l.b16 %v1636
        %v2338 = vunpack.c.l.b16 %v1637
        %v2339 = vunpack.c.l.b16 %v1638
        %v2340 = vunpack.c.l.b16 %v1639
        %v2341 = vunpack.c.l.b16 %v1640
        %v2342 = vunpack.c.l.b16 %v1641
        %v2343 = vunpack.c.l.b16 %v1642
        %v2344 = vunpack.c.l.b16 %v1643
        %v2345 = vunpack.c.l.b16 %v1644
        %v2346 = vunpack.c.l.b16 %v1645
        %v2347 = vunpack.c.l.b16 %v1646
        %v2348 = vunpack.c.l.b16 %v1647
        %v2349 = vpack.c.b16 %v2318, %v2317
        %v2350 = vpack.c.b16 %v2320, %v2319
        %v2351 = vpack.c.b16 %v2322, %v2321
        %v2352 = vpack.c.b16 %v2324, %v2323
        %v2353 = vpack.c.b16 %v2326, %v2325
        %v2354 = vpack.c.b16 %v2328, %v2327
        %v2355 = vpack.c.b16 %v2330, %v2329
        %v2356 = vpack.c.b16 %v2332, %v2331
        %v2357 = vpack.c.b16 %v2334, %v2333
        %v2358 = vpack.c.b16 %v2336, %v2335
        %v2359 = vpack.c.b16 %v2338, %v2337
        %v2360 = vpack.c.b16 %v2340, %v2339
        %v2361 = vpack.c.b16 %v2342, %v2341
        %v2362 = vpack.c.b16 %v2344, %v2343
        %v2363 = vpack.c.b16 %v2346, %v2345
        %v2364 = vpack.c.b16 %v2348, %v2347
        %v2397 = vunpack.c.l.b16 %v1648
        %v2398 = vunpack.c.l.b16 %v1649
        %v2399 = vunpack.c.l.b16 %v1650
        %v2400 = vunpack.c.l.b16 %v1651
        %v2401 = vunpack.c.l.b16 %v1652
        %v2402 = vunpack.c.l.b16 %v1653
        %v2403 = vunpack.c.l.b16 %v1654
        %v2404 = vunpack.c.l.b16 %v1655
        %v2405 = vunpack.c.l.b16 %v1656
        %v2406 = vunpack.c.l.b16 %v1657
        %v2407 = vunpack.c.l.b16 %v1658
        %v2408 = vunpack.c.l.b16 %v1659
        %v2409 = vunpack.c.l.b16 %v1660
        %v2410 = vunpack.c.l.b16 %v1661
        %v2411 = vunpack.c.l.b16 %v1662
        %v2412 = vunpack.c.l.b16 %v1663
        %v2413 = vpack.c.b16 %v2398, %v2397
        %v2414 = vpack.c.b16 %v2400, %v2399
        %v2415 = vpack.c.b16 %v2402, %v2401
        %v2416 = vpack.c.b16 %v2404, %v2403
        %v2417 = vpack.c.b16 %v2406, %v2405
        %v2418 = vpack.c.b16 %v2408, %v2407
        %v2419 = vpack.c.b16 %v2410, %v2409
        %v2420 = vpack.c.b16 %v2412, %v2411
        %2429 = vmatpush.bf16.msra.mxu0 %v2420
        %2430 = vmatpush.bf16.msra.mxu0 %v2419
        %2431 = vmatpush.bf16.msra.mxu0 %v2418
        %2432 = vmatpush.bf16.msra.mxu0 %v2417
        %2433 = vmatpush.bf16.msra.mxu0 %v2416
        %2434 = vmatpush.bf16.msra.mxu0 %v2415
        %2435 = vmatpush.bf16.msra.mxu0 %v2414
        %2436 = vmatpush.bf16.msra.mxu0 %v2413
        %2437 = vmatmul.bf16.gmra.mxu0 %v2349
        %v2438 = vpop.f32.mrf.mxu0
        %v2439 = vadd.f32 %v2206, %v2438
        %v2440 = vpop.f32.mrf.mxu0
        %v2441 = vadd.f32 %v2208, %v2440
        %2442 = vmatmul.bf16.gmra.mxu0 %v2350
        %v2443 = vpop.f32.mrf.mxu0
        %v2444 = vadd.f32 %v2211, %v2443
        %v2445 = vpop.f32.mrf.mxu0
        %v2446 = vadd.f32 %v2213, %v2445
        %2447 = vmatmul.bf16.gmra.mxu0 %v2351
        %v2448 = vpop.f32.mrf.mxu0
        %v2449 = vadd.f32 %v2216, %v2448
        %v2450 = vpop.f32.mrf.mxu0
        %v2451 = vadd.f32 %v2218, %v2450
        %2452 = vmatmul.bf16.gmra.mxu0 %v2352
        %v2453 = vpop.f32.mrf.mxu0
        %v2454 = vadd.f32 %v2221, %v2453
        %v2455 = vpop.f32.mrf.mxu0
        %v2456 = vadd.f32 %v2223, %v2455
        %2457 = vmatmul.bf16.gmra.mxu0 %v2353
        %v2458 = vpop.f32.mrf.mxu0
        %v2459 = vadd.f32 %v2226, %v2458
        %v2460 = vpop.f32.mrf.mxu0
        %v2461 = vadd.f32 %v2228, %v2460
        %2462 = vmatmul.bf16.gmra.mxu0 %v2354
        %v2463 = vpop.f32.mrf.mxu0
        %v2464 = vadd.f32 %v2231, %v2463
        %v2465 = vpop.f32.mrf.mxu0
        %v2466 = vadd.f32 %v2233, %v2465
        %2467 = vmatmul.bf16.gmra.mxu0 %v2355
        %v2468 = vpop.f32.mrf.mxu0
        %v2469 = vadd.f32 %v2236, %v2468
        %v2470 = vpop.f32.mrf.mxu0
        %v2471 = vadd.f32 %v2238, %v2470
        %2472 = vmatmul.bf16.gmra.mxu0 %v2356
        %v2473 = vpop.f32.mrf.mxu0
        %v2474 = vadd.f32 %v2241, %v2473
        %v2475 = vpop.f32.mrf.mxu0
        %v2476 = vadd.f32 %v2243, %v2475
        %2477 = vmatmul.bf16.gmra.mxu0 %v2357
        %v2478 = vpop.f32.mrf.mxu0
        %v2479 = vadd.f32 %v2246, %v2478
        %v2480 = vpop.f32.mrf.mxu0
        %v2481 = vadd.f32 %v2248, %v2480
        %2482 = vmatmul.bf16.gmra.mxu0 %v2358
        %v2483 = vpop.f32.mrf.mxu0
        %v2484 = vadd.f32 %v2251, %v2483
        %v2485 = vpop.f32.mrf.mxu0
        %v2486 = vadd.f32 %v2253, %v2485
        %2487 = vmatmul.bf16.gmra.mxu0 %v2359
        %v2488 = vpop.f32.mrf.mxu0
        %v2489 = vadd.f32 %v2256, %v2488
        %v2490 = vpop.f32.mrf.mxu0
        %v2491 = vadd.f32 %v2258, %v2490
        %2492 = vmatmul.bf16.gmra.mxu0 %v2360
        %v2493 = vpop.f32.mrf.mxu0
        %v2494 = vadd.f32 %v2261, %v2493
        %v2495 = vpop.f32.mrf.mxu0
        %v2496 = vadd.f32 %v2263, %v2495
        %2497 = vmatmul.bf16.gmra.mxu0 %v2361
        %v2498 = vpop.f32.mrf.mxu0
        %v2499 = vadd.f32 %v2266, %v2498
        %v2500 = vpop.f32.mrf.mxu0
        %v2501 = vadd.f32 %v2268, %v2500
        %2502 = vmatmul.bf16.gmra.mxu0 %v2362
        %v2503 = vpop.f32.mrf.mxu0
        %v2504 = vadd.f32 %v2271, %v2503
        %v2505 = vpop.f32.mrf.mxu0
        %v2506 = vadd.f32 %v2273, %v2505
        %2507 = vmatmul.bf16.gmra.mxu0 %v2363
        %v2508 = vpop.f32.mrf.mxu0
        %v2509 = vadd.f32 %v2276, %v2508
        %v2510 = vpop.f32.mrf.mxu0
        %v2511 = vadd.f32 %v2278, %v2510
        %2512 = vmatmul.bf16.gmra.mxu0 %v2364
        %v2513 = vpop.f32.mrf.mxu0
        %v2514 = vadd.f32 %v2281, %v2513
        %v2515 = vpop.f32.mrf.mxu0
        %v2516 = vadd.f32 %v2283, %v2515
        %2517 = vdwg.mxu0
        %v2518 = vld [vmem:[#allocation2] sm:$0xe]
        %v2519 = vld [vmem:[#allocation2 + $0xc] sm:$0xe]
        %v2520 = vld [vmem:[#allocation2 + $0x18] sm:$0xe]
        %v2521 = vld [vmem:[#allocation2 + $0x24] sm:$0xe]
        %v2522 = vld [vmem:[#allocation2 + $0x30] sm:$0xe]
        %v2523 = vld [vmem:[#allocation2 + $0x3c] sm:$0xe]
        %v2524 = vld [vmem:[#allocation2 + $0x48] sm:$0xe]
        %v2525 = vld [vmem:[#allocation2 + $0x54] sm:$0xe]
        %v2526 = vld [vmem:[#allocation2 + $0x60] sm:$0xe]
        %v2527 = vld [vmem:[#allocation2 + $0x6c] sm:$0xe]
        %v2528 = vld [vmem:[#allocation2 + $0x78] sm:$0xe]
        %v2529 = vld [vmem:[#allocation2 + $0x84] sm:$0xe]
        %v2530 = vld [vmem:[#allocation2 + $0x90] sm:$0xe]
        %v2531 = vld [vmem:[#allocation2 + $0x9c] sm:$0xe]
        %v2532 = vld [vmem:[#allocation2 + $0xa8] sm:$0xe]
        %v2533 = vld [vmem:[#allocation2 + $0xb4] sm:$0xe]
        %vm2566 = vcmask 1042432
        %vm2567 = vcmask 1046532
        %vm2568 = vmor %vm2566, %vm2567
        %v2569 = vrot.slane %v2518, 5
        %v2570 = vrot.slane %v2569, 4
        %v2571 = vrot.slane %v1617, 5
        %v2572 = vsel %vm2568, %v2570, %v2571
        %v2573 = vrot.slane %v2571, 4
        %v2574 = vrot.slane %v1664, 5
        %v2575 = vsel %vm2568, %v2573, %v2574
        %v2576 = vrot.slane %v2519, 5
        %v2577 = vrot.slane %v2576, 4
        %v2578 = vrot.slane %v1619, 5
        %v2579 = vsel %vm2568, %v2577, %v2578
        %v2580 = vrot.slane %v2578, 4
        %v2581 = vrot.slane %v1665, 5
        %v2582 = vsel %vm2568, %v2580, %v2581
        %v2583 = vrot.slane %v2520, 5
        %v2584 = vrot.slane %v2583, 4
        %v2585 = vrot.slane %v1621, 5
        %v2586 = vsel %vm2568, %v2584, %v2585
        %v2587 = vrot.slane %v2585, 4
        %v2588 = vrot.slane %v1666, 5
        %v2589 = vsel %vm2568, %v2587, %v2588
        %v2590 = vrot.slane %v2521, 5
        %v2591 = vrot.slane %v2590, 4
        %v2592 = vrot.slane %v1623, 5
        %v2593 = vsel %vm2568, %v2591, %v2592
        %v2594 = vrot.slane %v2592, 4
        %v2595 = vrot.slane %v1667, 5
        %v2596 = vsel %vm2568, %v2594, %v2595
        %v2597 = vrot.slane %v2522, 5
        %v2598 = vrot.slane %v2597, 4
        %v2599 = vrot.slane %v1625, 5
        %v2600 = vsel %vm2568, %v2598, %v2599
        %v2601 = vrot.slane %v2599, 4
        %v2602 = vrot.slane %v1668, 5
        %v2603 = vsel %vm2568, %v2601, %v2602
        %v2604 = vrot.slane %v2523, 5
        %v2605 = vrot.slane %v2604, 4
        %v2606 = vrot.slane %v1627, 5
        %v2607 = vsel %vm2568, %v2605, %v2606
        %v2608 = vrot.slane %v2606, 4
        %v2609 = vrot.slane %v1669, 5
        %v2610 = vsel %vm2568, %v2608, %v2609
        %v2611 = vrot.slane %v2524, 5
        %v2612 = vrot.slane %v2611, 4
        %v2613 = vrot.slane %v1629, 5
        %v2614 = vsel %vm2568, %v2612, %v2613
        %v2615 = vrot.slane %v2613, 4
        %v2616 = vrot.slane %v1670, 5
        %v2617 = vsel %vm2568, %v2615, %v2616
        %v2618 = vrot.slane %v2525, 5
        %v2619 = vrot.slane %v2618, 4
        %v2620 = vrot.slane %v1631, 5
        %v2621 = vsel %vm2568, %v2619, %v2620
        %v2622 = vrot.slane %v2620, 4
        %v2623 = vrot.slane %v1671, 5
        %v2624 = vsel %vm2568, %v2622, %v2623
        %v2625 = vrot.slane %v2526, 5
        %v2626 = vrot.slane %v2625, 4
        %v2627 = vrot.slane %v1633, 5
        %v2628 = vsel %vm2568, %v2626, %v2627
        %v2629 = vrot.slane %v2627, 4
        %v2630 = vrot.slane %v1672, 5
        %v2631 = vsel %vm2568, %v2629, %v2630
        %v2632 = vrot.slane %v2527, 5
        %v2633 = vrot.slane %v2632, 4
        %v2634 = vrot.slane %v1635, 5
        %v2635 = vsel %vm2568, %v2633, %v2634
        %v2636 = vrot.slane %v2634, 4
        %v2637 = vrot.slane %v1673, 5
        %v2638 = vsel %vm2568, %v2636, %v2637
        %v2639 = vrot.slane %v2528, 5
        %v2640 = vrot.slane %v2639, 4
        %v2641 = vrot.slane %v1637, 5
        %v2642 = vsel %vm2568, %v2640, %v2641
        %v2643 = vrot.slane %v2641, 4
        %v2644 = vrot.slane %v1674, 5
        %v2645 = vsel %vm2568, %v2643, %v2644
        %v2646 = vrot.slane %v2529, 5
        %v2647 = vrot.slane %v2646, 4
        %v2648 = vrot.slane %v1639, 5
        %v2649 = vsel %vm2568, %v2647, %v2648
        %v2650 = vrot.slane %v2648, 4
        %v2651 = vrot.slane %v1675, 5
        %v2652 = vsel %vm2568, %v2650, %v2651
        %v2653 = vrot.slane %v2530, 5
        %v2654 = vrot.slane %v2653, 4
        %v2655 = vrot.slane %v1641, 5
        %v2656 = vsel %vm2568, %v2654, %v2655
        %v2657 = vrot.slane %v2655, 4
        %v2658 = vrot.slane %v1676, 5
        %v2659 = vsel %vm2568, %v2657, %v2658
        %v2660 = vrot.slane %v2531, 5
        %v2661 = vrot.slane %v2660, 4
        %v2662 = vrot.slane %v1643, 5
        %v2663 = vsel %vm2568, %v2661, %v2662
        %v2664 = vrot.slane %v2662, 4
        %v2665 = vrot.slane %v1677, 5
        %v2666 = vsel %vm2568, %v2664, %v2665
        %v2667 = vrot.slane %v2532, 5
        %v2668 = vrot.slane %v2667, 4
        %v2669 = vrot.slane %v1645, 5
        %v2670 = vsel %vm2568, %v2668, %v2669
        %v2671 = vrot.slane %v2669, 4
        %v2672 = vrot.slane %v1678, 5
        %v2673 = vsel %vm2568, %v2671, %v2672
        %v2674 = vrot.slane %v2533, 5
        %v2675 = vrot.slane %v2674, 4
        %v2676 = vrot.slane %v1647, 5
        %v2677 = vsel %vm2568, %v2675, %v2676
        %v2678 = vrot.slane %v2676, 4
        %v2679 = vrot.slane %v1679, 5
        %v2680 = vsel %vm2568, %v2678, %v2679
        %s2681 = scalar_lea.vmem %s2, 128
        %v2682 = vld [vmem:[%s2681] sm:$0xf]
        %v2683 = vld [vmem:[%s2681 + $0x4] sm:$0xf]
        %v2684 = vld [vmem:[%s2681 + $0x8] sm:$0xf]
        %v2685 = vld [vmem:[%s2681 + $0xc] sm:$0xf]
        %v2686 = vld [vmem:[%s2681 + $0x10] sm:$0xf]
        %v2687 = vld [vmem:[%s2681 + $0x14] sm:$0xf]
        %v2688 = vld [vmem:[%s2681 + $0x18] sm:$0xf]
        %v2689 = vld [vmem:[%s2681 + $0x1c] sm:$0xf]
        %v2690 = vld [vmem:[%s2681 + $0x20] sm:$0xf]
        %v2691 = vld [vmem:[%s2681 + $0x24] sm:$0xf]
        %v2692 = vld [vmem:[%s2681 + $0x28] sm:$0xf]
        %v2693 = vld [vmem:[%s2681 + $0x2c] sm:$0xf]
        %v2694 = vld [vmem:[%s2681 + $0x30] sm:$0xf]
        %v2695 = vld [vmem:[%s2681 + $0x34] sm:$0xf]
        %v2696 = vld [vmem:[%s2681 + $0x38] sm:$0xf]
        %v2697 = vld [vmem:[%s2681 + $0x3c] sm:$0xf]
        %v2698 = vunpack.c.l.b16 %v2572
        %v2699 = vunpack.c.l.b16 %v2575
        %v2700 = vunpack.c.l.b16 %v2579
        %v2701 = vunpack.c.l.b16 %v2582
        %v2702 = vunpack.c.l.b16 %v2586
        %v2703 = vunpack.c.l.b16 %v2589
        %v2704 = vunpack.c.l.b16 %v2593
        %v2705 = vunpack.c.l.b16 %v2596
        %v2706 = vunpack.c.l.b16 %v2600
        %v2707 = vunpack.c.l.b16 %v2603
        %v2708 = vunpack.c.l.b16 %v2607
        %v2709 = vunpack.c.l.b16 %v2610
        %v2710 = vunpack.c.l.b16 %v2614
        %v2711 = vunpack.c.l.b16 %v2617
        %v2712 = vunpack.c.l.b16 %v2621
        %v2713 = vunpack.c.l.b16 %v2624
        %v2714 = vunpack.c.l.b16 %v2628
        %v2715 = vunpack.c.l.b16 %v2631
        %v2716 = vunpack.c.l.b16 %v2635
        %v2717 = vunpack.c.l.b16 %v2638
        %v2718 = vunpack.c.l.b16 %v2642
        %v2719 = vunpack.c.l.b16 %v2645
        %v2720 = vunpack.c.l.b16 %v2649
        %v2721 = vunpack.c.l.b16 %v2652
        %v2722 = vunpack.c.l.b16 %v2656
        %v2723 = vunpack.c.l.b16 %v2659
        %v2724 = vunpack.c.l.b16 %v2663
        %v2725 = vunpack.c.l.b16 %v2666
        %v2726 = vunpack.c.l.b16 %v2670
        %v2727 = vunpack.c.l.b16 %v2673
        %v2728 = vunpack.c.l.b16 %v2677
        %v2729 = vunpack.c.l.b16 %v2680
        %v2730 = vpack.c.b16 %v2699, %v2698
        %v2731 = vpack.c.b16 %v2701, %v2700
        %v2732 = vpack.c.b16 %v2703, %v2702
        %v2733 = vpack.c.b16 %v2705, %v2704
        %v2734 = vpack.c.b16 %v2707, %v2706
        %v2735 = vpack.c.b16 %v2709, %v2708
        %v2736 = vpack.c.b16 %v2711, %v2710
        %v2737 = vpack.c.b16 %v2713, %v2712
        %v2738 = vpack.c.b16 %v2715, %v2714
        %v2739 = vpack.c.b16 %v2717, %v2716
        %v2740 = vpack.c.b16 %v2719, %v2718
        %v2741 = vpack.c.b16 %v2721, %v2720
        %v2742 = vpack.c.b16 %v2723, %v2722
        %v2743 = vpack.c.b16 %v2725, %v2724
        %v2744 = vpack.c.b16 %v2727, %v2726
        %v2745 = vpack.c.b16 %v2729, %v2728
        %v2778 = vunpack.c.l.b16 %v2682
        %v2779 = vunpack.c.l.b16 %v2683
        %v2780 = vunpack.c.l.b16 %v2684
        %v2781 = vunpack.c.l.b16 %v2685
        %v2782 = vunpack.c.l.b16 %v2686
        %v2783 = vunpack.c.l.b16 %v2687
        %v2784 = vunpack.c.l.b16 %v2688
        %v2785 = vunpack.c.l.b16 %v2689
        %v2786 = vunpack.c.l.b16 %v2690
        %v2787 = vunpack.c.l.b16 %v2691
        %v2788 = vunpack.c.l.b16 %v2692
        %v2789 = vunpack.c.l.b16 %v2693
        %v2790 = vunpack.c.l.b16 %v2694
        %v2791 = vunpack.c.l.b16 %v2695
        %v2792 = vunpack.c.l.b16 %v2696
        %v2793 = vunpack.c.l.b16 %v2697
        %v2794 = vpack.c.b16 %v2779, %v2778
        %v2795 = vpack.c.b16 %v2781, %v2780
        %v2796 = vpack.c.b16 %v2783, %v2782
        %v2797 = vpack.c.b16 %v2785, %v2784
        %v2798 = vpack.c.b16 %v2787, %v2786
        %v2799 = vpack.c.b16 %v2789, %v2788
        %v2800 = vpack.c.b16 %v2791, %v2790
        %v2801 = vpack.c.b16 %v2793, %v2792
        %2810 = vmatpush.bf16.msra.mxu0 %v2801
        %2811 = vmatpush.bf16.msra.mxu0 %v2800
        %2812 = vmatpush.bf16.msra.mxu0 %v2799
        %2813 = vmatpush.bf16.msra.mxu0 %v2798
        %2814 = vmatpush.bf16.msra.mxu0 %v2797
        %2815 = vmatpush.bf16.msra.mxu0 %v2796
        %2816 = vmatpush.bf16.msra.mxu0 %v2795
        %2817 = vmatpush.bf16.msra.mxu0 %v2794
        %2818 = vmatmul.bf16.gmra.mxu0 %v2730
        %v2819 = vpop.f32.mrf.mxu0
        %v2820 = vadd.f32 0.0, %v2819
        %v2821 = vpop.f32.mrf.mxu0
        %v2822 = vadd.f32 0.0, %v2821
        %2823 = vmatmul.bf16.gmra.mxu0 %v2731
        %v2824 = vpop.f32.mrf.mxu0
        %v2825 = vadd.f32 0.0, %v2824
        %v2826 = vpop.f32.mrf.mxu0
        %v2827 = vadd.f32 0.0, %v2826
        %2828 = vmatmul.bf16.gmra.mxu0 %v2732
        %v2829 = vpop.f32.mrf.mxu0
        %v2830 = vadd.f32 0.0, %v2829
        %v2831 = vpop.f32.mrf.mxu0
        %v2832 = vadd.f32 0.0, %v2831
        %2833 = vmatmul.bf16.gmra.mxu0 %v2733
        %v2834 = vpop.f32.mrf.mxu0
        %v2835 = vadd.f32 0.0, %v2834
        %v2836 = vpop.f32.mrf.mxu0
        %v2837 = vadd.f32 0.0, %v2836
        %2838 = vmatmul.bf16.gmra.mxu0 %v2734
        %v2839 = vpop.f32.mrf.mxu0
        %v2840 = vadd.f32 0.0, %v2839
        %v2841 = vpop.f32.mrf.mxu0
        %v2842 = vadd.f32 0.0, %v2841
        %2843 = vmatmul.bf16.gmra.mxu0 %v2735
        %v2844 = vpop.f32.mrf.mxu0
        %v2845 = vadd.f32 0.0, %v2844
        %v2846 = vpop.f32.mrf.mxu0
        %v2847 = vadd.f32 0.0, %v2846
        %2848 = vmatmul.bf16.gmra.mxu0 %v2736
        %v2849 = vpop.f32.mrf.mxu0
        %v2850 = vadd.f32 0.0, %v2849
        %v2851 = vpop.f32.mrf.mxu0
        %v2852 = vadd.f32 0.0, %v2851
        %2853 = vmatmul.bf16.gmra.mxu0 %v2737
        %v2854 = vpop.f32.mrf.mxu0
        %v2855 = vadd.f32 0.0, %v2854
        %v2856 = vpop.f32.mrf.mxu0
        %v2857 = vadd.f32 0.0, %v2856
        %2858 = vmatmul.bf16.gmra.mxu0 %v2738
        %v2859 = vpop.f32.mrf.mxu0
        %v2860 = vadd.f32 0.0, %v2859
        %v2861 = vpop.f32.mrf.mxu0
        %v2862 = vadd.f32 0.0, %v2861
        %2863 = vmatmul.bf16.gmra.mxu0 %v2739
        %v2864 = vpop.f32.mrf.mxu0
        %v2865 = vadd.f32 0.0, %v2864
        %v2866 = vpop.f32.mrf.mxu0
        %v2867 = vadd.f32 0.0, %v2866
        %2868 = vmatmul.bf16.gmra.mxu0 %v2740
        %v2869 = vpop.f32.mrf.mxu0
        %v2870 = vadd.f32 0.0, %v2869
        %v2871 = vpop.f32.mrf.mxu0
        %v2872 = vadd.f32 0.0, %v2871
        %2873 = vmatmul.bf16.gmra.mxu0 %v2741
        %v2874 = vpop.f32.mrf.mxu0
        %v2875 = vadd.f32 0.0, %v2874
        %v2876 = vpop.f32.mrf.mxu0
        %v2877 = vadd.f32 0.0, %v2876
        %2878 = vmatmul.bf16.gmra.mxu0 %v2742
        %v2879 = vpop.f32.mrf.mxu0
        %v2880 = vadd.f32 0.0, %v2879
        %v2881 = vpop.f32.mrf.mxu0
        %v2882 = vadd.f32 0.0, %v2881
        %2883 = vmatmul.bf16.gmra.mxu0 %v2743
        %v2884 = vpop.f32.mrf.mxu0
        %v2885 = vadd.f32 0.0, %v2884
        %v2886 = vpop.f32.mrf.mxu0
        %v2887 = vadd.f32 0.0, %v2886
        %2888 = vmatmul.bf16.gmra.mxu0 %v2744
        %v2889 = vpop.f32.mrf.mxu0
        %v2890 = vadd.f32 0.0, %v2889
        %v2891 = vpop.f32.mrf.mxu0
        %v2892 = vadd.f32 0.0, %v2891
        %2893 = vmatmul.bf16.gmra.mxu0 %v2745
        %v2894 = vpop.f32.mrf.mxu0
        %v2895 = vadd.f32 0.0, %v2894
        %v2896 = vpop.f32.mrf.mxu0
        %v2897 = vadd.f32 0.0, %v2896
        %2898 = vdwg.mxu0
        %v2899 = vadd.f32 %v2439, %v2820
        %v2900 = vadd.f32 %v2441, %v2822
        %v2901 = vadd.f32 %v2444, %v2825
        %v2902 = vadd.f32 %v2446, %v2827
        %v2903 = vadd.f32 %v2449, %v2830
        %v2904 = vadd.f32 %v2451, %v2832
        %v2905 = vadd.f32 %v2454, %v2835
        %v2906 = vadd.f32 %v2456, %v2837
        %v2907 = vadd.f32 %v2459, %v2840
        %v2908 = vadd.f32 %v2461, %v2842
        %v2909 = vadd.f32 %v2464, %v2845
        %v2910 = vadd.f32 %v2466, %v2847
        %v2911 = vadd.f32 %v2469, %v2850
        %v2912 = vadd.f32 %v2471, %v2852
        %v2913 = vadd.f32 %v2474, %v2855
        %v2914 = vadd.f32 %v2476, %v2857
        %v2915 = vadd.f32 %v2479, %v2860
        %v2916 = vadd.f32 %v2481, %v2862
        %v2917 = vadd.f32 %v2484, %v2865
        %v2918 = vadd.f32 %v2486, %v2867
        %v2919 = vadd.f32 %v2489, %v2870
        %v2920 = vadd.f32 %v2491, %v2872
        %v2921 = vadd.f32 %v2494, %v2875
        %v2922 = vadd.f32 %v2496, %v2877
        %v2923 = vadd.f32 %v2499, %v2880
        %v2924 = vadd.f32 %v2501, %v2882
        %v2925 = vadd.f32 %v2504, %v2885
        %v2926 = vadd.f32 %v2506, %v2887
        %v2927 = vadd.f32 %v2509, %v2890
        %v2928 = vadd.f32 %v2511, %v2892
        %v2929 = vadd.f32 %v2514, %v2895
        %v2930 = vadd.f32 %v2516, %v2897
        %s2931 = scalar_lea.vmem [#allocation2], 12
        %v2932 = vld [vmem:[%s2931] sm:$0xf]
        %v2933 = vld [vmem:[%s2931 + $0x4] sm:$0xf]
        %v2934 = vld [vmem:[%s2931 + $0xc] sm:$0xf]
        %v2935 = vld [vmem:[%s2931 + $0x10] sm:$0xf]
        %v2936 = vld [vmem:[%s2931 + $0x18] sm:$0xf]
        %v2937 = vld [vmem:[%s2931 + $0x1c] sm:$0xf]
        %v2938 = vld [vmem:[%s2931 + $0x24] sm:$0xf]
        %v2939 = vld [vmem:[%s2931 + $0x28] sm:$0xf]
        %v2940 = vld [vmem:[%s2931 + $0x30] sm:$0xf]
        %v2941 = vld [vmem:[%s2931 + $0x34] sm:$0xf]
        %v2942 = vld [vmem:[%s2931 + $0x3c] sm:$0xf]
        %v2943 = vld [vmem:[%s2931 + $0x40] sm:$0xf]
        %v2944 = vld [vmem:[%s2931 + $0x48] sm:$0xf]
        %v2945 = vld [vmem:[%s2931 + $0x4c] sm:$0xf]
        %v2946 = vld [vmem:[%s2931 + $0x54] sm:$0xf]
        %v2947 = vld [vmem:[%s2931 + $0x58] sm:$0xf]
        %v2948 = vld [vmem:[%s2931 + $0x60] sm:$0xf]
        %v2949 = vld [vmem:[%s2931 + $0x64] sm:$0xf]
        %v2950 = vld [vmem:[%s2931 + $0x6c] sm:$0xf]
        %v2951 = vld [vmem:[%s2931 + $0x70] sm:$0xf]
        %v2952 = vld [vmem:[%s2931 + $0x78] sm:$0xf]
        %v2953 = vld [vmem:[%s2931 + $0x7c] sm:$0xf]
        %v2954 = vld [vmem:[%s2931 + $0x84] sm:$0xf]
        %v2955 = vld [vmem:[%s2931 + $0x88] sm:$0xf]
        %v2956 = vld [vmem:[%s2931 + $0x90] sm:$0xf]
        %v2957 = vld [vmem:[%s2931 + $0x94] sm:$0xf]
        %v2958 = vld [vmem:[%s2931 + $0x9c] sm:$0xf]
        %v2959 = vld [vmem:[%s2931 + $0xa0] sm:$0xf]
        %v2960 = vld [vmem:[%s2931 + $0xa8] sm:$0xf]
        %v2961 = vld [vmem:[%s2931 + $0xac] sm:$0xf]
        %v2962 = vld [vmem:[%s2931 + $0xb4] sm:$0xf]
        %v2963 = vld [vmem:[%s2931 + $0xb8] sm:$0xf]
        %s2964 = scalar_lea.vmem %s2, 192
        %v2965 = vld [vmem:[%s2964] sm:$0xf]
        %v2966 = vld [vmem:[%s2964 + $0x4] sm:$0xf]
        %v2967 = vld [vmem:[%s2964 + $0x8] sm:$0xf]
        %v2968 = vld [vmem:[%s2964 + $0xc] sm:$0xf]
        %v2969 = vld [vmem:[%s2964 + $0x10] sm:$0xf]
        %v2970 = vld [vmem:[%s2964 + $0x14] sm:$0xf]
        %v2971 = vld [vmem:[%s2964 + $0x18] sm:$0xf]
        %v2972 = vld [vmem:[%s2964 + $0x1c] sm:$0xf]
        %v2973 = vld [vmem:[%s2964 + $0x20] sm:$0xf]
        %v2974 = vld [vmem:[%s2964 + $0x24] sm:$0xf]
        %v2975 = vld [vmem:[%s2964 + $0x28] sm:$0xf]
        %v2976 = vld [vmem:[%s2964 + $0x2c] sm:$0xf]
        %v2977 = vld [vmem:[%s2964 + $0x30] sm:$0xf]
        %v2978 = vld [vmem:[%s2964 + $0x34] sm:$0xf]
        %v2979 = vld [vmem:[%s2964 + $0x38] sm:$0xf]
        %v2980 = vld [vmem:[%s2964 + $0x3c] sm:$0xf]
        %v3013 = vunpack.c.l.b16 %v2932
        %v3014 = vunpack.c.l.b16 %v2933
        %v3015 = vunpack.c.l.b16 %v2934
        %v3016 = vunpack.c.l.b16 %v2935
        %v3017 = vunpack.c.l.b16 %v2936
        %v3018 = vunpack.c.l.b16 %v2937
        %v3019 = vunpack.c.l.b16 %v2938
        %v3020 = vunpack.c.l.b16 %v2939
        %v3021 = vunpack.c.l.b16 %v2940
        %v3022 = vunpack.c.l.b16 %v2941
        %v3023 = vunpack.c.l.b16 %v2942
        %v3024 = vunpack.c.l.b16 %v2943
        %v3025 = vunpack.c.l.b16 %v2944
        %v3026 = vunpack.c.l.b16 %v2945
        %v3027 = vunpack.c.l.b16 %v2946
        %v3028 = vunpack.c.l.b16 %v2947
        %v3029 = vunpack.c.l.b16 %v2948
        %v3030 = vunpack.c.l.b16 %v2949
        %v3031 = vunpack.c.l.b16 %v2950
        %v3032 = vunpack.c.l.b16 %v2951
        %v3033 = vunpack.c.l.b16 %v2952
        %v3034 = vunpack.c.l.b16 %v2953
        %v3035 = vunpack.c.l.b16 %v2954
        %v3036 = vunpack.c.l.b16 %v2955
        %v3037 = vunpack.c.l.b16 %v2956
        %v3038 = vunpack.c.l.b16 %v2957
        %v3039 = vunpack.c.l.b16 %v2958
        %v3040 = vunpack.c.l.b16 %v2959
        %v3041 = vunpack.c.l.b16 %v2960
        %v3042 = vunpack.c.l.b16 %v2961
        %v3043 = vunpack.c.l.b16 %v2962
        %v3044 = vunpack.c.l.b16 %v2963
        %v3045 = vpack.c.b16 %v3014, %v3013
        %v3046 = vpack.c.b16 %v3016, %v3015
        %v3047 = vpack.c.b16 %v3018, %v3017
        %v3048 = vpack.c.b16 %v3020, %v3019
        %v3049 = vpack.c.b16 %v3022, %v3021
        %v3050 = vpack.c.b16 %v3024, %v3023
        %v3051 = vpack.c.b16 %v3026, %v3025
        %v3052 = vpack.c.b16 %v3028, %v3027
        %v3053 = vpack.c.b16 %v3030, %v3029
        %v3054 = vpack.c.b16 %v3032, %v3031
        %v3055 = vpack.c.b16 %v3034, %v3033
        %v3056 = vpack.c.b16 %v3036, %v3035
        %v3057 = vpack.c.b16 %v3038, %v3037
        %v3058 = vpack.c.b16 %v3040, %v3039
        %v3059 = vpack.c.b16 %v3042, %v3041
        %v3060 = vpack.c.b16 %v3044, %v3043
        %v3093 = vunpack.c.l.b16 %v2965
        %v3094 = vunpack.c.l.b16 %v2966
        %v3095 = vunpack.c.l.b16 %v2967
        %v3096 = vunpack.c.l.b16 %v2968
        %v3097 = vunpack.c.l.b16 %v2969
        %v3098 = vunpack.c.l.b16 %v2970
        %v3099 = vunpack.c.l.b16 %v2971
        %v3100 = vunpack.c.l.b16 %v2972
        %v3101 = vunpack.c.l.b16 %v2973
        %v3102 = vunpack.c.l.b16 %v2974
        %v3103 = vunpack.c.l.b16 %v2975
        %v3104 = vunpack.c.l.b16 %v2976
        %v3105 = vunpack.c.l.b16 %v2977
        %v3106 = vunpack.c.l.b16 %v2978
        %v3107 = vunpack.c.l.b16 %v2979
        %v3108 = vunpack.c.l.b16 %v2980
        %v3109 = vpack.c.b16 %v3094, %v3093
        %v3110 = vpack.c.b16 %v3096, %v3095
        %v3111 = vpack.c.b16 %v3098, %v3097
        %v3112 = vpack.c.b16 %v3100, %v3099
        %v3113 = vpack.c.b16 %v3102, %v3101
        %v3114 = vpack.c.b16 %v3104, %v3103
        %v3115 = vpack.c.b16 %v3106, %v3105
        %v3116 = vpack.c.b16 %v3108, %v3107
        %3125 = vmatpush.bf16.msra.mxu0 %v3116
        %3126 = vmatpush.bf16.msra.mxu0 %v3115
        %3127 = vmatpush.bf16.msra.mxu0 %v3114
        %3128 = vmatpush.bf16.msra.mxu0 %v3113
        %3129 = vmatpush.bf16.msra.mxu0 %v3112
        %3130 = vmatpush.bf16.msra.mxu0 %v3111
        %3131 = vmatpush.bf16.msra.mxu0 %v3110
        %3132 = vmatpush.bf16.msra.mxu0 %v3109
        %3133 = vmatmul.bf16.gmra.mxu0 %v3045
        %v3134 = vpop.f32.mrf.mxu0
        %v3135 = vadd.f32 0.0, %v3134
        %v3136 = vpop.f32.mrf.mxu0
        %v3137 = vadd.f32 0.0, %v3136
        %3138 = vmatmul.bf16.gmra.mxu0 %v3046
        %v3139 = vpop.f32.mrf.mxu0
        %v3140 = vadd.f32 0.0, %v3139
        %v3141 = vpop.f32.mrf.mxu0
        %v3142 = vadd.f32 0.0, %v3141
        %3143 = vmatmul.bf16.gmra.mxu0 %v3047
        %v3144 = vpop.f32.mrf.mxu0
        %v3145 = vadd.f32 0.0, %v3144
        %v3146 = vpop.f32.mrf.mxu0
        %v3147 = vadd.f32 0.0, %v3146
        %3148 = vmatmul.bf16.gmra.mxu0 %v3048
        %v3149 = vpop.f32.mrf.mxu0
        %v3150 = vadd.f32 0.0, %v3149
        %v3151 = vpop.f32.mrf.mxu0
        %v3152 = vadd.f32 0.0, %v3151
        %3153 = vmatmul.bf16.gmra.mxu0 %v3049
        %v3154 = vpop.f32.mrf.mxu0
        %v3155 = vadd.f32 0.0, %v3154
        %v3156 = vpop.f32.mrf.mxu0
        %v3157 = vadd.f32 0.0, %v3156
        %3158 = vmatmul.bf16.gmra.mxu0 %v3050
        %v3159 = vpop.f32.mrf.mxu0
        %v3160 = vadd.f32 0.0, %v3159
        %v3161 = vpop.f32.mrf.mxu0
        %v3162 = vadd.f32 0.0, %v3161
        %3163 = vmatmul.bf16.gmra.mxu0 %v3051
        %v3164 = vpop.f32.mrf.mxu0
        %v3165 = vadd.f32 0.0, %v3164
        %v3166 = vpop.f32.mrf.mxu0
        %v3167 = vadd.f32 0.0, %v3166
        %3168 = vmatmul.bf16.gmra.mxu0 %v3052
        %v3169 = vpop.f32.mrf.mxu0
        %v3170 = vadd.f32 0.0, %v3169
        %v3171 = vpop.f32.mrf.mxu0
        %v3172 = vadd.f32 0.0, %v3171
        %3173 = vmatmul.bf16.gmra.mxu0 %v3053
        %v3174 = vpop.f32.mrf.mxu0
        %v3175 = vadd.f32 0.0, %v3174
        %v3176 = vpop.f32.mrf.mxu0
        %v3177 = vadd.f32 0.0, %v3176
        %3178 = vmatmul.bf16.gmra.mxu0 %v3054
        %v3179 = vpop.f32.mrf.mxu0
        %v3180 = vadd.f32 0.0, %v3179
        %v3181 = vpop.f32.mrf.mxu0
        %v3182 = vadd.f32 0.0, %v3181
        %3183 = vmatmul.bf16.gmra.mxu0 %v3055
        %v3184 = vpop.f32.mrf.mxu0
        %v3185 = vadd.f32 0.0, %v3184
        %v3186 = vpop.f32.mrf.mxu0
        %v3187 = vadd.f32 0.0, %v3186
        %3188 = vmatmul.bf16.gmra.mxu0 %v3056
        %v3189 = vpop.f32.mrf.mxu0
        %v3190 = vadd.f32 0.0, %v3189
        %v3191 = vpop.f32.mrf.mxu0
        %v3192 = vadd.f32 0.0, %v3191
        %3193 = vmatmul.bf16.gmra.mxu0 %v3057
        %v3194 = vpop.f32.mrf.mxu0
        %v3195 = vadd.f32 0.0, %v3194
        %v3196 = vpop.f32.mrf.mxu0
        %v3197 = vadd.f32 0.0, %v3196
        %3198 = vmatmul.bf16.gmra.mxu0 %v3058
        %v3199 = vpop.f32.mrf.mxu0
        %v3200 = vadd.f32 0.0, %v3199
        %v3201 = vpop.f32.mrf.mxu0
        %v3202 = vadd.f32 0.0, %v3201
        %3203 = vmatmul.bf16.gmra.mxu0 %v3059
        %v3204 = vpop.f32.mrf.mxu0
        %v3205 = vadd.f32 0.0, %v3204
        %v3206 = vpop.f32.mrf.mxu0
        %v3207 = vadd.f32 0.0, %v3206
        %3208 = vmatmul.bf16.gmra.mxu0 %v3060
        %v3209 = vpop.f32.mrf.mxu0
        %v3210 = vadd.f32 0.0, %v3209
        %v3211 = vpop.f32.mrf.mxu0
        %v3212 = vadd.f32 0.0, %v3211
        %3213 = vdwg.mxu0
        %v3214 = vadd.f32 %v2899, %v3135
        %v3215 = vadd.f32 %v2900, %v3137
        %v3216 = vadd.f32 %v2901, %v3140
        %v3217 = vadd.f32 %v2902, %v3142
        %v3218 = vadd.f32 %v2903, %v3145
        %v3219 = vadd.f32 %v2904, %v3147
        %v3220 = vadd.f32 %v2905, %v3150
        %v3221 = vadd.f32 %v2906, %v3152
        %v3222 = vadd.f32 %v2907, %v3155
        %v3223 = vadd.f32 %v2908, %v3157
        %v3224 = vadd.f32 %v2909, %v3160
        %v3225 = vadd.f32 %v2910, %v3162
        %v3226 = vadd.f32 %v2911, %v3165
        %v3227 = vadd.f32 %v2912, %v3167
        %v3228 = vadd.f32 %v2913, %v3170
        %v3229 = vadd.f32 %v2914, %v3172
        %v3230 = vadd.f32 %v2915, %v3175
        %v3231 = vadd.f32 %v2916, %v3177
        %v3232 = vadd.f32 %v2917, %v3180
        %v3233 = vadd.f32 %v2918, %v3182
        %v3234 = vadd.f32 %v2919, %v3185
        %v3235 = vadd.f32 %v2920, %v3187
        %v3236 = vadd.f32 %v2921, %v3190
        %v3237 = vadd.f32 %v2922, %v3192
        %v3238 = vadd.f32 %v2923, %v3195
        %v3239 = vadd.f32 %v2924, %v3197
        %v3240 = vadd.f32 %v2925, %v3200
        %v3241 = vadd.f32 %v2926, %v3202
        %v3242 = vadd.f32 %v2927, %v3205
        %v3243 = vadd.f32 %v2928, %v3207
        %v3244 = vadd.f32 %v2929, %v3210
        %v3245 = vadd.f32 %v2930, %v3212
        %v3246 = vld [vmem:[%s2931] sm:$0xf]
        %v3247 = vld [vmem:[%s2931 + $0x4] sm:$0xf]
        %v3248 = vld [vmem:[%s2931 + $0x8] sm:$0x1]
        %v3249 = vld [vmem:[%s2931 + $0xc] sm:$0xf]
        %v3250 = vld [vmem:[%s2931 + $0x10] sm:$0xf]
        %v3251 = vld [vmem:[%s2931 + $0x14] sm:$0x1]
        %v3252 = vld [vmem:[%s2931 + $0x18] sm:$0xf]
        %v3253 = vld [vmem:[%s2931 + $0x1c] sm:$0xf]
        %v3254 = vld [vmem:[%s2931 + $0x20] sm:$0x1]
        %v3255 = vld [vmem:[%s2931 + $0x24] sm:$0xf]
        %v3256 = vld [vmem:[%s2931 + $0x28] sm:$0xf]
        %v3257 = vld [vmem:[%s2931 + $0x2c] sm:$0x1]
        %v3258 = vld [vmem:[%s2931 + $0x30] sm:$0xf]
        %v3259 = vld [vmem:[%s2931 + $0x34] sm:$0xf]
        %v3260 = vld [vmem:[%s2931 + $0x38] sm:$0x1]
        %v3261 = vld [vmem:[%s2931 + $0x3c] sm:$0xf]
        %v3262 = vld [vmem:[%s2931 + $0x40] sm:$0xf]
        %v3263 = vld [vmem:[%s2931 + $0x44] sm:$0x1]
        %v3264 = vld [vmem:[%s2931 + $0x48] sm:$0xf]
        %v3265 = vld [vmem:[%s2931 + $0x4c] sm:$0xf]
        %v3266 = vld [vmem:[%s2931 + $0x50] sm:$0x1]
        %v3267 = vld [vmem:[%s2931 + $0x54] sm:$0xf]
        %v3268 = vld [vmem:[%s2931 + $0x58] sm:$0xf]
        %v3269 = vld [vmem:[%s2931 + $0x5c] sm:$0x1]
        %v3270 = vld [vmem:[%s2931 + $0x60] sm:$0xf]
        %v3271 = vld [vmem:[%s2931 + $0x64] sm:$0xf]
        %v3272 = vld [vmem:[%s2931 + $0x68] sm:$0x1]
        %v3273 = vld [vmem:[%s2931 + $0x6c] sm:$0xf]
        %v3274 = vld [vmem:[%s2931 + $0x70] sm:$0xf]
        %v3275 = vld [vmem:[%s2931 + $0x74] sm:$0x1]
        %v3276 = vld [vmem:[%s2931 + $0x78] sm:$0xf]
        %v3277 = vld [vmem:[%s2931 + $0x7c] sm:$0xf]
        %v3278 = vld [vmem:[%s2931 + $0x80] sm:$0x1]
        %v3279 = vld [vmem:[%s2931 + $0x84] sm:$0xf]
        %v3280 = vld [vmem:[%s2931 + $0x88] sm:$0xf]
        %v3281 = vld [vmem:[%s2931 + $0x8c] sm:$0x1]
        %v3282 = vld [vmem:[%s2931 + $0x90] sm:$0xf]
        %v3283 = vld [vmem:[%s2931 + $0x94] sm:$0xf]
        %v3284 = vld [vmem:[%s2931 + $0x98] sm:$0x1]
        %v3285 = vld [vmem:[%s2931 + $0x9c] sm:$0xf]
        %v3286 = vld [vmem:[%s2931 + $0xa0] sm:$0xf]
        %v3287 = vld [vmem:[%s2931 + $0xa4] sm:$0x1]
        %v3288 = vld [vmem:[%s2931 + $0xa8] sm:$0xf]
        %v3289 = vld [vmem:[%s2931 + $0xac] sm:$0xf]
        %v3290 = vld [vmem:[%s2931 + $0xb0] sm:$0x1]
        %v3291 = vld [vmem:[%s2931 + $0xb4] sm:$0xf]
        %v3292 = vld [vmem:[%s2931 + $0xb8] sm:$0xf]
        %v3293 = vld [vmem:[%s2931 + $0xbc] sm:$0x1]
        %v3295 = vshrl.u32 %v3246, 16
        %v3297 = vrot.slane %v3295, 4
        %v3298 = vshll.u32 %v3246, 16
        %v3300 = vrot.slane %v3298, 5
        %v3301 = vor.u32 %v3297, %v3300
        %v3302 = vrot.slane %v3301, 4
        %v3304 = vshll.u32 %v3247, 16
        %v3306 = vrot.slane %v3304, 5
        %v3307 = vsel %vm1682, %v3302, %v3306
        %v3308 = vshrl.u32 %v3247, 16
        %v3310 = vrot.slane %v3308, 4
        %v3311 = vor.u32 %v3310, %v3306
        %v3312 = vrot.slane %v3311, 4
        %v3314 = vshll.u32 %v3248, 16
        %v3316 = vrot.slane %v3314, 5
        %v3317 = vsel %vm1682, %v3312, %v3316
        %v3319 = vshrl.u32 %v3249, 16
        %v3321 = vrot.slane %v3319, 4
        %v3322 = vshll.u32 %v3249, 16
        %v3324 = vrot.slane %v3322, 5
        %v3325 = vor.u32 %v3321, %v3324
        %v3326 = vrot.slane %v3325, 4
        %v3328 = vshll.u32 %v3250, 16
        %v3330 = vrot.slane %v3328, 5
        %v3331 = vsel %vm1682, %v3326, %v3330
        %v3332 = vshrl.u32 %v3250, 16
        %v3334 = vrot.slane %v3332, 4
        %v3335 = vor.u32 %v3334, %v3330
        %v3336 = vrot.slane %v3335, 4
        %v3338 = vshll.u32 %v3251, 16
        %v3340 = vrot.slane %v3338, 5
        %v3341 = vsel %vm1682, %v3336, %v3340
        %v3343 = vshrl.u32 %v3252, 16
        %v3345 = vrot.slane %v3343, 4
        %v3346 = vshll.u32 %v3252, 16
        %v3348 = vrot.slane %v3346, 5
        %v3349 = vor.u32 %v3345, %v3348
        %v3350 = vrot.slane %v3349, 4
        %v3352 = vshll.u32 %v3253, 16
        %v3354 = vrot.slane %v3352, 5
        %v3355 = vsel %vm1682, %v3350, %v3354
        %v3356 = vshrl.u32 %v3253, 16
        %v3358 = vrot.slane %v3356, 4
        %v3359 = vor.u32 %v3358, %v3354
        %v3360 = vrot.slane %v3359, 4
        %v3362 = vshll.u32 %v3254, 16
        %v3364 = vrot.slane %v3362, 5
        %v3365 = vsel %vm1682, %v3360, %v3364
        %v3367 = vshrl.u32 %v3255, 16
        %v3369 = vrot.slane %v3367, 4
        %v3370 = vshll.u32 %v3255, 16
        %v3372 = vrot.slane %v3370, 5
        %v3373 = vor.u32 %v3369, %v3372
        %v3374 = vrot.slane %v3373, 4
        %v3376 = vshll.u32 %v3256, 16
        %v3378 = vrot.slane %v3376, 5
        %v3379 = vsel %vm1682, %v3374, %v3378
        %v3380 = vshrl.u32 %v3256, 16
        %v3382 = vrot.slane %v3380, 4
        %v3383 = vor.u32 %v3382, %v3378
        %v3384 = vrot.slane %v3383, 4
        %v3386 = vshll.u32 %v3257, 16
        %v3388 = vrot.slane %v3386, 5
        %v3389 = vsel %vm1682, %v3384, %v3388
        %v3391 = vshrl.u32 %v3258, 16
        %v3393 = vrot.slane %v3391, 4
        %v3394 = vshll.u32 %v3258, 16
        %v3396 = vrot.slane %v3394, 5
        %v3397 = vor.u32 %v3393, %v3396
        %v3398 = vrot.slane %v3397, 4
        %v3400 = vshll.u32 %v3259, 16
        %v3402 = vrot.slane %v3400, 5
        %v3403 = vsel %vm1682, %v3398, %v3402
        %v3404 = vshrl.u32 %v3259, 16
        %v3406 = vrot.slane %v3404, 4
        %v3407 = vor.u32 %v3406, %v3402
        %v3408 = vrot.slane %v3407, 4
        %v3410 = vshll.u32 %v3260, 16
        %v3412 = vrot.slane %v3410, 5
        %v3413 = vsel %vm1682, %v3408, %v3412
        %v3415 = vshrl.u32 %v3261, 16
        %v3417 = vrot.slane %v3415, 4
        %v3418 = vshll.u32 %v3261, 16
        %v3420 = vrot.slane %v3418, 5
        %v3421 = vor.u32 %v3417, %v3420
        %v3422 = vrot.slane %v3421, 4
        %v3424 = vshll.u32 %v3262, 16
        %v3426 = vrot.slane %v3424, 5
        %v3427 = vsel %vm1682, %v3422, %v3426
        %v3428 = vshrl.u32 %v3262, 16
        %v3430 = vrot.slane %v3428, 4
        %v3431 = vor.u32 %v3430, %v3426
        %v3432 = vrot.slane %v3431, 4
        %v3434 = vshll.u32 %v3263, 16
        %v3436 = vrot.slane %v3434, 5
        %v3437 = vsel %vm1682, %v3432, %v3436
        %v3439 = vshrl.u32 %v3264, 16
        %v3441 = vrot.slane %v3439, 4
        %v3442 = vshll.u32 %v3264, 16
        %v3444 = vrot.slane %v3442, 5
        %v3445 = vor.u32 %v3441, %v3444
        %v3446 = vrot.slane %v3445, 4
        %v3448 = vshll.u32 %v3265, 16
        %v3450 = vrot.slane %v3448, 5
        %v3451 = vsel %vm1682, %v3446, %v3450
        %v3452 = vshrl.u32 %v3265, 16
        %v3454 = vrot.slane %v3452, 4
        %v3455 = vor.u32 %v3454, %v3450
        %v3456 = vrot.slane %v3455, 4
        %v3458 = vshll.u32 %v3266, 16
        %v3460 = vrot.slane %v3458, 5
        %v3461 = vsel %vm1682, %v3456, %v3460
        %v3463 = vshrl.u32 %v3267, 16
        %v3465 = vrot.slane %v3463, 4
        %v3466 = vshll.u32 %v3267, 16
        %v3468 = vrot.slane %v3466, 5
        %v3469 = vor.u32 %v3465, %v3468
        %v3470 = vrot.slane %v3469, 4
        %v3472 = vshll.u32 %v3268, 16
        %v3474 = vrot.slane %v3472, 5
        %v3475 = vsel %vm1682, %v3470, %v3474
        %v3476 = vshrl.u32 %v3268, 16
        %v3478 = vrot.slane %v3476, 4
        %v3479 = vor.u32 %v3478, %v3474
        %v3480 = vrot.slane %v3479, 4
        %v3482 = vshll.u32 %v3269, 16
        %v3484 = vrot.slane %v3482, 5
        %v3485 = vsel %vm1682, %v3480, %v3484
        %v3487 = vshrl.u32 %v3270, 16
        %v3489 = vrot.slane %v3487, 4
        %v3490 = vshll.u32 %v3270, 16
        %v3492 = vrot.slane %v3490, 5
        %v3493 = vor.u32 %v3489, %v3492
        %v3494 = vrot.slane %v3493, 4
        %v3496 = vshll.u32 %v3271, 16
        %v3498 = vrot.slane %v3496, 5
        %v3499 = vsel %vm1682, %v3494, %v3498
        %v3500 = vshrl.u32 %v3271, 16
        %v3502 = vrot.slane %v3500, 4
        %v3503 = vor.u32 %v3502, %v3498
        %v3504 = vrot.slane %v3503, 4
        %v3506 = vshll.u32 %v3272, 16
        %v3508 = vrot.slane %v3506, 5
        %v3509 = vsel %vm1682, %v3504, %v3508
        %v3511 = vshrl.u32 %v3273, 16
        %v3513 = vrot.slane %v3511, 4
        %v3514 = vshll.u32 %v3273, 16
        %v3516 = vrot.slane %v3514, 5
        %v3517 = vor.u32 %v3513, %v3516
        %v3518 = vrot.slane %v3517, 4
        %v3520 = vshll.u32 %v3274, 16
        %v3522 = vrot.slane %v3520, 5
        %v3523 = vsel %vm1682, %v3518, %v3522
        %v3524 = vshrl.u32 %v3274, 16
        %v3526 = vrot.slane %v3524, 4
        %v3527 = vor.u32 %v3526, %v3522
        %v3528 = vrot.slane %v3527, 4
        %v3530 = vshll.u32 %v3275, 16
        %v3532 = vrot.slane %v3530, 5
        %v3533 = vsel %vm1682, %v3528, %v3532
        %v3535 = vshrl.u32 %v3276, 16
        %v3537 = vrot.slane %v3535, 4
        %v3538 = vshll.u32 %v3276, 16
        %v3540 = vrot.slane %v3538, 5
        %v3541 = vor.u32 %v3537, %v3540
        %v3542 = vrot.slane %v3541, 4
        %v3544 = vshll.u32 %v3277, 16
        %v3546 = vrot.slane %v3544, 5
        %v3547 = vsel %vm1682, %v3542, %v3546
        %v3548 = vshrl.u32 %v3277, 16
        %v3550 = vrot.slane %v3548, 4
        %v3551 = vor.u32 %v3550, %v3546
        %v3552 = vrot.slane %v3551, 4
        %v3554 = vshll.u32 %v3278, 16
        %v3556 = vrot.slane %v3554, 5
        %v3557 = vsel %vm1682, %v3552, %v3556
        %v3559 = vshrl.u32 %v3279, 16
        %v3561 = vrot.slane %v3559, 4
        %v3562 = vshll.u32 %v3279, 16
        %v3564 = vrot.slane %v3562, 5
        %v3565 = vor.u32 %v3561, %v3564
        %v3566 = vrot.slane %v3565, 4
        %v3568 = vshll.u32 %v3280, 16
        %v3570 = vrot.slane %v3568, 5
        %v3571 = vsel %vm1682, %v3566, %v3570
        %v3572 = vshrl.u32 %v3280, 16
        %v3574 = vrot.slane %v3572, 4
        %v3575 = vor.u32 %v3574, %v3570
        %v3576 = vrot.slane %v3575, 4
        %v3578 = vshll.u32 %v3281, 16
        %v3580 = vrot.slane %v3578, 5
        %v3581 = vsel %vm1682, %v3576, %v3580
        %v3583 = vshrl.u32 %v3282, 16
        %v3585 = vrot.slane %v3583, 4
        %v3586 = vshll.u32 %v3282, 16
        %v3588 = vrot.slane %v3586, 5
        %v3589 = vor.u32 %v3585, %v3588
        %v3590 = vrot.slane %v3589, 4
        %v3592 = vshll.u32 %v3283, 16
        %v3594 = vrot.slane %v3592, 5
        %v3595 = vsel %vm1682, %v3590, %v3594
        %v3596 = vshrl.u32 %v3283, 16
        %v3598 = vrot.slane %v3596, 4
        %v3599 = vor.u32 %v3598, %v3594
        %v3600 = vrot.slane %v3599, 4
        %v3602 = vshll.u32 %v3284, 16
        %v3604 = vrot.slane %v3602, 5
        %v3605 = vsel %vm1682, %v3600, %v3604
        %v3607 = vshrl.u32 %v3285, 16
        %v3609 = vrot.slane %v3607, 4
        %v3610 = vshll.u32 %v3285, 16
        %v3612 = vrot.slane %v3610, 5
        %v3613 = vor.u32 %v3609, %v3612
        %v3614 = vrot.slane %v3613, 4
        %v3616 = vshll.u32 %v3286, 16
        %v3618 = vrot.slane %v3616, 5
        %v3619 = vsel %vm1682, %v3614, %v3618
        %v3620 = vshrl.u32 %v3286, 16
        %v3622 = vrot.slane %v3620, 4
        %v3623 = vor.u32 %v3622, %v3618
        %v3624 = vrot.slane %v3623, 4
        %v3626 = vshll.u32 %v3287, 16
        %v3628 = vrot.slane %v3626, 5
        %v3629 = vsel %vm1682, %v3624, %v3628
        %v3631 = vshrl.u32 %v3288, 16
        %v3633 = vrot.slane %v3631, 4
        %v3634 = vshll.u32 %v3288, 16
        %v3636 = vrot.slane %v3634, 5
        %v3637 = vor.u32 %v3633, %v3636
        %v3638 = vrot.slane %v3637, 4
        %v3640 = vshll.u32 %v3289, 16
        %v3642 = vrot.slane %v3640, 5
        %v3643 = vsel %vm1682, %v3638, %v3642
        %v3644 = vshrl.u32 %v3289, 16
        %v3646 = vrot.slane %v3644, 4
        %v3647 = vor.u32 %v3646, %v3642
        %v3648 = vrot.slane %v3647, 4
        %v3650 = vshll.u32 %v3290, 16
        %v3652 = vrot.slane %v3650, 5
        %v3653 = vsel %vm1682, %v3648, %v3652
        %v3655 = vshrl.u32 %v3291, 16
        %v3657 = vrot.slane %v3655, 4
        %v3658 = vshll.u32 %v3291, 16
        %v3660 = vrot.slane %v3658, 5
        %v3661 = vor.u32 %v3657, %v3660
        %v3662 = vrot.slane %v3661, 4
        %v3664 = vshll.u32 %v3292, 16
        %v3666 = vrot.slane %v3664, 5
        %v3667 = vsel %vm1682, %v3662, %v3666
        %v3668 = vshrl.u32 %v3292, 16
        %v3670 = vrot.slane %v3668, 4
        %v3671 = vor.u32 %v3670, %v3666
        %v3672 = vrot.slane %v3671, 4
        %v3674 = vshll.u32 %v3293, 16
        %v3676 = vrot.slane %v3674, 5
        %v3677 = vsel %vm1682, %v3672, %v3676
        %s3678 = scalar_lea.vmem %s2, 256
        %v3679 = vld [vmem:[%s3678] sm:$0xf]
        %v3680 = vld [vmem:[%s3678 + $0x4] sm:$0xf]
        %v3681 = vld [vmem:[%s3678 + $0x8] sm:$0xf]
        %v3682 = vld [vmem:[%s3678 + $0xc] sm:$0xf]
        %v3683 = vld [vmem:[%s3678 + $0x10] sm:$0xf]
        %v3684 = vld [vmem:[%s3678 + $0x14] sm:$0xf]
        %v3685 = vld [vmem:[%s3678 + $0x18] sm:$0xf]
        %v3686 = vld [vmem:[%s3678 + $0x1c] sm:$0xf]
        %v3687 = vld [vmem:[%s3678 + $0x20] sm:$0xf]
        %v3688 = vld [vmem:[%s3678 + $0x24] sm:$0xf]
        %v3689 = vld [vmem:[%s3678 + $0x28] sm:$0xf]
        %v3690 = vld [vmem:[%s3678 + $0x2c] sm:$0xf]
        %v3691 = vld [vmem:[%s3678 + $0x30] sm:$0xf]
        %v3692 = vld [vmem:[%s3678 + $0x34] sm:$0xf]
        %v3693 = vld [vmem:[%s3678 + $0x38] sm:$0xf]
        %v3694 = vld [vmem:[%s3678 + $0x3c] sm:$0xf]
        %v3695 = vunpack.c.l.b16 %v3307
        %v3696 = vunpack.c.l.b16 %v3317
        %v3697 = vunpack.c.l.b16 %v3331
        %v3698 = vunpack.c.l.b16 %v3341
        %v3699 = vunpack.c.l.b16 %v3355
        %v3700 = vunpack.c.l.b16 %v3365
        %v3701 = vunpack.c.l.b16 %v3379
        %v3702 = vunpack.c.l.b16 %v3389
        %v3703 = vunpack.c.l.b16 %v3403
        %v3704 = vunpack.c.l.b16 %v3413
        %v3705 = vunpack.c.l.b16 %v3427
        %v3706 = vunpack.c.l.b16 %v3437
        %v3707 = vunpack.c.l.b16 %v3451
        %v3708 = vunpack.c.l.b16 %v3461
        %v3709 = vunpack.c.l.b16 %v3475
        %v3710 = vunpack.c.l.b16 %v3485
        %v3711 = vunpack.c.l.b16 %v3499
        %v3712 = vunpack.c.l.b16 %v3509
        %v3713 = vunpack.c.l.b16 %v3523
        %v3714 = vunpack.c.l.b16 %v3533
        %v3715 = vunpack.c.l.b16 %v3547
        %v3716 = vunpack.c.l.b16 %v3557
        %v3717 = vunpack.c.l.b16 %v3571
        %v3718 = vunpack.c.l.b16 %v3581
        %v3719 = vunpack.c.l.b16 %v3595
        %v3720 = vunpack.c.l.b16 %v3605
        %v3721 = vunpack.c.l.b16 %v3619
        %v3722 = vunpack.c.l.b16 %v3629
        %v3723 = vunpack.c.l.b16 %v3643
        %v3724 = vunpack.c.l.b16 %v3653
        %v3725 = vunpack.c.l.b16 %v3667
        %v3726 = vunpack.c.l.b16 %v3677
        %v3727 = vpack.c.b16 %v3696, %v3695
        %v3728 = vpack.c.b16 %v3698, %v3697
        %v3729 = vpack.c.b16 %v3700, %v3699
        %v3730 = vpack.c.b16 %v3702, %v3701
        %v3731 = vpack.c.b16 %v3704, %v3703
        %v3732 = vpack.c.b16 %v3706, %v3705
        %v3733 = vpack.c.b16 %v3708, %v3707
        %v3734 = vpack.c.b16 %v3710, %v3709
        %v3735 = vpack.c.b16 %v3712, %v3711
        %v3736 = vpack.c.b16 %v3714, %v3713
        %v3737 = vpack.c.b16 %v3716, %v3715
        %v3738 = vpack.c.b16 %v3718, %v3717
        %v3739 = vpack.c.b16 %v3720, %v3719
        %v3740 = vpack.c.b16 %v3722, %v3721
        %v3741 = vpack.c.b16 %v3724, %v3723
        %v3742 = vpack.c.b16 %v3726, %v3725
        %v3775 = vunpack.c.l.b16 %v3679
        %v3776 = vunpack.c.l.b16 %v3680
        %v3777 = vunpack.c.l.b16 %v3681
        %v3778 = vunpack.c.l.b16 %v3682
        %v3779 = vunpack.c.l.b16 %v3683
        %v3780 = vunpack.c.l.b16 %v3684
        %v3781 = vunpack.c.l.b16 %v3685
        %v3782 = vunpack.c.l.b16 %v3686
        %v3783 = vunpack.c.l.b16 %v3687
        %v3784 = vunpack.c.l.b16 %v3688
        %v3785 = vunpack.c.l.b16 %v3689
        %v3786 = vunpack.c.l.b16 %v3690
        %v3787 = vunpack.c.l.b16 %v3691
        %v3788 = vunpack.c.l.b16 %v3692
        %v3789 = vunpack.c.l.b16 %v3693
        %v3790 = vunpack.c.l.b16 %v3694
        %v3791 = vpack.c.b16 %v3776, %v3775
        %v3792 = vpack.c.b16 %v3778, %v3777
        %v3793 = vpack.c.b16 %v3780, %v3779
        %v3794 = vpack.c.b16 %v3782, %v3781
        %v3795 = vpack.c.b16 %v3784, %v3783
        %v3796 = vpack.c.b16 %v3786, %v3785
        %v3797 = vpack.c.b16 %v3788, %v3787
        %v3798 = vpack.c.b16 %v3790, %v3789
        %3807 = vmatpush.bf16.msra.mxu0 %v3798
        %3808 = vmatpush.bf16.msra.mxu0 %v3797
        %3809 = vmatpush.bf16.msra.mxu0 %v3796
        %3810 = vmatpush.bf16.msra.mxu0 %v3795
        %3811 = vmatpush.bf16.msra.mxu0 %v3794
        %3812 = vmatpush.bf16.msra.mxu0 %v3793
        %3813 = vmatpush.bf16.msra.mxu0 %v3792
        %3814 = vmatpush.bf16.msra.mxu0 %v3791
        %3815 = vmatmul.bf16.gmra.mxu0 %v3727
        %v3816 = vpop.f32.mrf.mxu0
        %v3817 = vadd.f32 0.0, %v3816
        %v3818 = vpop.f32.mrf.mxu0
        %v3819 = vadd.f32 0.0, %v3818
        %3820 = vmatmul.bf16.gmra.mxu0 %v3728
        %v3821 = vpop.f32.mrf.mxu0
        %v3822 = vadd.f32 0.0, %v3821
        %v3823 = vpop.f32.mrf.mxu0
        %v3824 = vadd.f32 0.0, %v3823
        %3825 = vmatmul.bf16.gmra.mxu0 %v3729
        %v3826 = vpop.f32.mrf.mxu0
        %v3827 = vadd.f32 0.0, %v3826
        %v3828 = vpop.f32.mrf.mxu0
        %v3829 = vadd.f32 0.0, %v3828
        %3830 = vmatmul.bf16.gmra.mxu0 %v3730
        %v3831 = vpop.f32.mrf.mxu0
        %v3832 = vadd.f32 0.0, %v3831
        %v3833 = vpop.f32.mrf.mxu0
        %v3834 = vadd.f32 0.0, %v3833
        %3835 = vmatmul.bf16.gmra.mxu0 %v3731
        %v3836 = vpop.f32.mrf.mxu0
        %v3837 = vadd.f32 0.0, %v3836
        %v3838 = vpop.f32.mrf.mxu0
        %v3839 = vadd.f32 0.0, %v3838
        %3840 = vmatmul.bf16.gmra.mxu0 %v3732
        %v3841 = vpop.f32.mrf.mxu0
        %v3842 = vadd.f32 0.0, %v3841
        %v3843 = vpop.f32.mrf.mxu0
        %v3844 = vadd.f32 0.0, %v3843
        %3845 = vmatmul.bf16.gmra.mxu0 %v3733
        %v3846 = vpop.f32.mrf.mxu0
        %v3847 = vadd.f32 0.0, %v3846
        %v3848 = vpop.f32.mrf.mxu0
        %v3849 = vadd.f32 0.0, %v3848
        %3850 = vmatmul.bf16.gmra.mxu0 %v3734
        %v3851 = vpop.f32.mrf.mxu0
        %v3852 = vadd.f32 0.0, %v3851
        %v3853 = vpop.f32.mrf.mxu0
        %v3854 = vadd.f32 0.0, %v3853
        %3855 = vmatmul.bf16.gmra.mxu0 %v3735
        %v3856 = vpop.f32.mrf.mxu0
        %v3857 = vadd.f32 0.0, %v3856
        %v3858 = vpop.f32.mrf.mxu0
        %v3859 = vadd.f32 0.0, %v3858
        %3860 = vmatmul.bf16.gmra.mxu0 %v3736
        %v3861 = vpop.f32.mrf.mxu0
        %v3862 = vadd.f32 0.0, %v3861
        %v3863 = vpop.f32.mrf.mxu0
        %v3864 = vadd.f32 0.0, %v3863
        %3865 = vmatmul.bf16.gmra.mxu0 %v3737
        %v3866 = vpop.f32.mrf.mxu0
        %v3867 = vadd.f32 0.0, %v3866
        %v3868 = vpop.f32.mrf.mxu0
        %v3869 = vadd.f32 0.0, %v3868
        %3870 = vmatmul.bf16.gmra.mxu0 %v3738
        %v3871 = vpop.f32.mrf.mxu0
        %v3872 = vadd.f32 0.0, %v3871
        %v3873 = vpop.f32.mrf.mxu0
        %v3874 = vadd.f32 0.0, %v3873
        %3875 = vmatmul.bf16.gmra.mxu0 %v3739
        %v3876 = vpop.f32.mrf.mxu0
        %v3877 = vadd.f32 0.0, %v3876
        %v3878 = vpop.f32.mrf.mxu0
        %v3879 = vadd.f32 0.0, %v3878
        %3880 = vmatmul.bf16.gmra.mxu0 %v3740
        %v3881 = vpop.f32.mrf.mxu0
        %v3882 = vadd.f32 0.0, %v3881
        %v3883 = vpop.f32.mrf.mxu0
        %v3884 = vadd.f32 0.0, %v3883
        %3885 = vmatmul.bf16.gmra.mxu0 %v3741
        %v3886 = vpop.f32.mrf.mxu0
        %v3887 = vadd.f32 0.0, %v3886
        %v3888 = vpop.f32.mrf.mxu0
        %v3889 = vadd.f32 0.0, %v3888
        %3890 = vmatmul.bf16.gmra.mxu0 %v3742
        %v3891 = vpop.f32.mrf.mxu0
        %v3892 = vadd.f32 0.0, %v3891
        %v3893 = vpop.f32.mrf.mxu0
        %v3894 = vadd.f32 0.0, %v3893
        %3895 = vdwg.mxu0
        %v3896 = vadd.f32 %v3214, %v3817
        %v3897 = vadd.f32 %v3215, %v3819
        %v3898 = vadd.f32 %v3216, %v3822
        %v3899 = vadd.f32 %v3217, %v3824
        %v3900 = vadd.f32 %v3218, %v3827
        %v3901 = vadd.f32 %v3219, %v3829
        %v3902 = vadd.f32 %v3220, %v3832
        %v3903 = vadd.f32 %v3221, %v3834
        %v3904 = vadd.f32 %v3222, %v3837
        %v3905 = vadd.f32 %v3223, %v3839
        %v3906 = vadd.f32 %v3224, %v3842
        %v3907 = vadd.f32 %v3225, %v3844
        %v3908 = vadd.f32 %v3226, %v3847
        %v3909 = vadd.f32 %v3227, %v3849
        %v3910 = vadd.f32 %v3228, %v3852
        %v3911 = vadd.f32 %v3229, %v3854
        %v3912 = vadd.f32 %v3230, %v3857
        %v3913 = vadd.f32 %v3231, %v3859
        %v3914 = vadd.f32 %v3232, %v3862
        %v3915 = vadd.f32 %v3233, %v3864
        %v3916 = vadd.f32 %v3234, %v3867
        %v3917 = vadd.f32 %v3235, %v3869
        %v3918 = vadd.f32 %v3236, %v3872
        %v3919 = vadd.f32 %v3237, %v3874
        %v3920 = vadd.f32 %v3238, %v3877
        %v3921 = vadd.f32 %v3239, %v3879
        %v3922 = vadd.f32 %v3240, %v3882
        %v3923 = vadd.f32 %v3241, %v3884
        %v3924 = vadd.f32 %v3242, %v3887
        %v3925 = vadd.f32 %v3243, %v3889
        %v3926 = vadd.f32 %v3244, %v3892
        %v3927 = vadd.f32 %v3245, %v3894
        %v3928 = vld [vmem:[%s2931] sm:$0xe]
        %v3929 = vld [vmem:[%s2931 + $0xc] sm:$0xe]
        %v3930 = vld [vmem:[%s2931 + $0x18] sm:$0xe]
        %v3931 = vld [vmem:[%s2931 + $0x24] sm:$0xe]
        %v3932 = vld [vmem:[%s2931 + $0x30] sm:$0xe]
        %v3933 = vld [vmem:[%s2931 + $0x3c] sm:$0xe]
        %v3934 = vld [vmem:[%s2931 + $0x48] sm:$0xe]
        %v3935 = vld [vmem:[%s2931 + $0x54] sm:$0xe]
        %v3936 = vld [vmem:[%s2931 + $0x60] sm:$0xe]
        %v3937 = vld [vmem:[%s2931 + $0x6c] sm:$0xe]
        %v3938 = vld [vmem:[%s2931 + $0x78] sm:$0xe]
        %v3939 = vld [vmem:[%s2931 + $0x84] sm:$0xe]
        %v3940 = vld [vmem:[%s2931 + $0x90] sm:$0xe]
        %v3941 = vld [vmem:[%s2931 + $0x9c] sm:$0xe]
        %v3942 = vld [vmem:[%s2931 + $0xa8] sm:$0xe]
        %v3943 = vld [vmem:[%s2931 + $0xb4] sm:$0xe]
        %v3992 = vrot.slane %v3928, 5
        %v3993 = vrot.slane %v3992, 4
        %v3994 = vrot.slane %v3247, 5
        %v3995 = vsel %vm2568, %v3993, %v3994
        %v3996 = vrot.slane %v3994, 4
        %v3997 = vrot.slane %v3248, 5
        %v3998 = vsel %vm2568, %v3996, %v3997
        %v3999 = vrot.slane %v3929, 5
        %v4000 = vrot.slane %v3999, 4
        %v4001 = vrot.slane %v3250, 5
        %v4002 = vsel %vm2568, %v4000, %v4001
        %v4003 = vrot.slane %v4001, 4
        %v4004 = vrot.slane %v3251, 5
        %v4005 = vsel %vm2568, %v4003, %v4004
        %v4006 = vrot.slane %v3930, 5
        %v4007 = vrot.slane %v4006, 4
        %v4008 = vrot.slane %v3253, 5
        %v4009 = vsel %vm2568, %v4007, %v4008
        %v4010 = vrot.slane %v4008, 4
        %v4011 = vrot.slane %v3254, 5
        %v4012 = vsel %vm2568, %v4010, %v4011
        %v4013 = vrot.slane %v3931, 5
        %v4014 = vrot.slane %v4013, 4
        %v4015 = vrot.slane %v3256, 5
        %v4016 = vsel %vm2568, %v4014, %v4015
        %v4017 = vrot.slane %v4015, 4
        %v4018 = vrot.slane %v3257, 5
        %v4019 = vsel %vm2568, %v4017, %v4018
        %v4020 = vrot.slane %v3932, 5
        %v4021 = vrot.slane %v4020, 4
        %v4022 = vrot.slane %v3259, 5
        %v4023 = vsel %vm2568, %v4021, %v4022
        %v4024 = vrot.slane %v4022, 4
        %v4025 = vrot.slane %v3260, 5
        %v4026 = vsel %vm2568, %v4024, %v4025
        %v4027 = vrot.slane %v3933, 5
        %v4028 = vrot.slane %v4027, 4
        %v4029 = vrot.slane %v3262, 5
        %v4030 = vsel %vm2568, %v4028, %v4029
        %v4031 = vrot.slane %v4029, 4
        %v4032 = vrot.slane %v3263, 5
        %v4033 = vsel %vm2568, %v4031, %v4032
        %v4034 = vrot.slane %v3934, 5
        %v4035 = vrot.slane %v4034, 4
        %v4036 = vrot.slane %v3265, 5
        %v4037 = vsel %vm2568, %v4035, %v4036
        %v4038 = vrot.slane %v4036, 4
        %v4039 = vrot.slane %v3266, 5
        %v4040 = vsel %vm2568, %v4038, %v4039
        %v4041 = vrot.slane %v3935, 5
        %v4042 = vrot.slane %v4041, 4
        %v4043 = vrot.slane %v3268, 5
        %v4044 = vsel %vm2568, %v4042, %v4043
        %v4045 = vrot.slane %v4043, 4
        %v4046 = vrot.slane %v3269, 5
        %v4047 = vsel %vm2568, %v4045, %v4046
        %v4048 = vrot.slane %v3936, 5
        %v4049 = vrot.slane %v4048, 4
        %v4050 = vrot.slane %v3271, 5
        %v4051 = vsel %vm2568, %v4049, %v4050
        %v4052 = vrot.slane %v4050, 4
        %v4053 = vrot.slane %v3272, 5
        %v4054 = vsel %vm2568, %v4052, %v4053
        %v4055 = vrot.slane %v3937, 5
        %v4056 = vrot.slane %v4055, 4
        %v4057 = vrot.slane %v3274, 5
        %v4058 = vsel %vm2568, %v4056, %v4057
        %v4059 = vrot.slane %v4057, 4
        %v4060 = vrot.slane %v3275, 5
        %v4061 = vsel %vm2568, %v4059, %v4060
        %v4062 = vrot.slane %v3938, 5
        %v4063 = vrot.slane %v4062, 4
        %v4064 = vrot.slane %v3277, 5
        %v4065 = vsel %vm2568, %v4063, %v4064
        %v4066 = vrot.slane %v4064, 4
        %v4067 = vrot.slane %v3278, 5
        %v4068 = vsel %vm2568, %v4066, %v4067
        %v4069 = vrot.slane %v3939, 5
        %v4070 = vrot.slane %v4069, 4
        %v4071 = vrot.slane %v3280, 5
        %v4072 = vsel %vm2568, %v4070, %v4071
        %v4073 = vrot.slane %v4071, 4
        %v4074 = vrot.slane %v3281, 5
        %v4075 = vsel %vm2568, %v4073, %v4074
        %v4076 = vrot.slane %v3940, 5
        %v4077 = vrot.slane %v4076, 4
        %v4078 = vrot.slane %v3283, 5
        %v4079 = vsel %vm2568, %v4077, %v4078
        %v4080 = vrot.slane %v4078, 4
        %v4081 = vrot.slane %v3284, 5
        %v4082 = vsel %vm2568, %v4080, %v4081
        %v4083 = vrot.slane %v3941, 5
        %v4084 = vrot.slane %v4083, 4
        %v4085 = vrot.slane %v3286, 5
        %v4086 = vsel %vm2568, %v4084, %v4085
        %v4087 = vrot.slane %v4085, 4
        %v4088 = vrot.slane %v3287, 5
        %v4089 = vsel %vm2568, %v4087, %v4088
        %v4090 = vrot.slane %v3942, 5
        %v4091 = vrot.slane %v4090, 4
        %v4092 = vrot.slane %v3289, 5
        %v4093 = vsel %vm2568, %v4091, %v4092
        %v4094 = vrot.slane %v4092, 4
        %v4095 = vrot.slane %v3290, 5
        %v4096 = vsel %vm2568, %v4094, %v4095
        %v4097 = vrot.slane %v3943, 5
        %v4098 = vrot.slane %v4097, 4
        %v4099 = vrot.slane %v3292, 5
        %v4100 = vsel %vm2568, %v4098, %v4099
        %v4101 = vrot.slane %v4099, 4
        %v4102 = vrot.slane %v3293, 5
        %v4103 = vsel %vm2568, %v4101, %v4102
        %s4104 = scalar_lea.vmem %s2, 320
        %v4105 = vld [vmem:[%s4104] sm:$0xf]
        %v4106 = vld [vmem:[%s4104 + $0x4] sm:$0xf]
        %v4107 = vld [vmem:[%s4104 + $0x8] sm:$0xf]
        %v4108 = vld [vmem:[%s4104 + $0xc] sm:$0xf]
        %v4109 = vld [vmem:[%s4104 + $0x10] sm:$0xf]
        %v4110 = vld [vmem:[%s4104 + $0x14] sm:$0xf]
        %v4111 = vld [vmem:[%s4104 + $0x18] sm:$0xf]
        %v4112 = vld [vmem:[%s4104 + $0x1c] sm:$0xf]
        %v4113 = vld [vmem:[%s4104 + $0x20] sm:$0xf]
        %v4114 = vld [vmem:[%s4104 + $0x24] sm:$0xf]
        %v4115 = vld [vmem:[%s4104 + $0x28] sm:$0xf]
        %v4116 = vld [vmem:[%s4104 + $0x2c] sm:$0xf]
        %v4117 = vld [vmem:[%s4104 + $0x30] sm:$0xf]
        %v4118 = vld [vmem:[%s4104 + $0x34] sm:$0xf]
        %v4119 = vld [vmem:[%s4104 + $0x38] sm:$0xf]
        %v4120 = vld [vmem:[%s4104 + $0x3c] sm:$0xf]
        %v4121 = vunpack.c.l.b16 %v3995
        %v4122 = vunpack.c.l.b16 %v3998
        %v4123 = vunpack.c.l.b16 %v4002
        %v4124 = vunpack.c.l.b16 %v4005
        %v4125 = vunpack.c.l.b16 %v4009
        %v4126 = vunpack.c.l.b16 %v4012
        %v4127 = vunpack.c.l.b16 %v4016
        %v4128 = vunpack.c.l.b16 %v4019
        %v4129 = vunpack.c.l.b16 %v4023
        %v4130 = vunpack.c.l.b16 %v4026
        %v4131 = vunpack.c.l.b16 %v4030
        %v4132 = vunpack.c.l.b16 %v4033
        %v4133 = vunpack.c.l.b16 %v4037
        %v4134 = vunpack.c.l.b16 %v4040
        %v4135 = vunpack.c.l.b16 %v4044
        %v4136 = vunpack.c.l.b16 %v4047
        %v4137 = vunpack.c.l.b16 %v4051
        %v4138 = vunpack.c.l.b16 %v4054
        %v4139 = vunpack.c.l.b16 %v4058
        %v4140 = vunpack.c.l.b16 %v4061
        %v4141 = vunpack.c.l.b16 %v4065
        %v4142 = vunpack.c.l.b16 %v4068
        %v4143 = vunpack.c.l.b16 %v4072
        %v4144 = vunpack.c.l.b16 %v4075
        %v4145 = vunpack.c.l.b16 %v4079
        %v4146 = vunpack.c.l.b16 %v4082
        %v4147 = vunpack.c.l.b16 %v4086
        %v4148 = vunpack.c.l.b16 %v4089
        %v4149 = vunpack.c.l.b16 %v4093
        %v4150 = vunpack.c.l.b16 %v4096
        %v4151 = vunpack.c.l.b16 %v4100
        %v4152 = vunpack.c.l.b16 %v4103
        %v4153 = vpack.c.b16 %v4122, %v4121
        %v4154 = vpack.c.b16 %v4124, %v4123
        %v4155 = vpack.c.b16 %v4126, %v4125
        %v4156 = vpack.c.b16 %v4128, %v4127
        %v4157 = vpack.c.b16 %v4130, %v4129
        %v4158 = vpack.c.b16 %v4132, %v4131
        %v4159 = vpack.c.b16 %v4134, %v4133
        %v4160 = vpack.c.b16 %v4136, %v4135
        %v4161 = vpack.c.b16 %v4138, %v4137
        %v4162 = vpack.c.b16 %v4140, %v4139
        %v4163 = vpack.c.b16 %v4142, %v4141
        %v4164 = vpack.c.b16 %v4144, %v4143
        %v4165 = vpack.c.b16 %v4146, %v4145
        %v4166 = vpack.c.b16 %v4148, %v4147
        %v4167 = vpack.c.b16 %v4150, %v4149
        %v4168 = vpack.c.b16 %v4152, %v4151
        %v4201 = vunpack.c.l.b16 %v4105
        %v4202 = vunpack.c.l.b16 %v4106
        %v4203 = vunpack.c.l.b16 %v4107
        %v4204 = vunpack.c.l.b16 %v4108
        %v4205 = vunpack.c.l.b16 %v4109
        %v4206 = vunpack.c.l.b16 %v4110
        %v4207 = vunpack.c.l.b16 %v4111
        %v4208 = vunpack.c.l.b16 %v4112
        %v4209 = vunpack.c.l.b16 %v4113
        %v4210 = vunpack.c.l.b16 %v4114
        %v4211 = vunpack.c.l.b16 %v4115
        %v4212 = vunpack.c.l.b16 %v4116
        %v4213 = vunpack.c.l.b16 %v4117
        %v4214 = vunpack.c.l.b16 %v4118
        %v4215 = vunpack.c.l.b16 %v4119
        %v4216 = vunpack.c.l.b16 %v4120
        %v4217 = vpack.c.b16 %v4202, %v4201
        %v4218 = vpack.c.b16 %v4204, %v4203
        %v4219 = vpack.c.b16 %v4206, %v4205
        %v4220 = vpack.c.b16 %v4208, %v4207
        %v4221 = vpack.c.b16 %v4210, %v4209
        %v4222 = vpack.c.b16 %v4212, %v4211
        %v4223 = vpack.c.b16 %v4214, %v4213
        %v4224 = vpack.c.b16 %v4216, %v4215
        %4233 = vmatpush.bf16.msra.mxu0 %v4224
        %4234 = vmatpush.bf16.msra.mxu0 %v4223
        %4235 = vmatpush.bf16.msra.mxu0 %v4222
        %4236 = vmatpush.bf16.msra.mxu0 %v4221
        %4237 = vmatpush.bf16.msra.mxu0 %v4220
        %4238 = vmatpush.bf16.msra.mxu0 %v4219
        %4239 = vmatpush.bf16.msra.mxu0 %v4218
        %4240 = vmatpush.bf16.msra.mxu0 %v4217
        %4241 = vmatmul.bf16.gmra.mxu0 %v4153
        %v4242 = vpop.f32.mrf.mxu0
        %v4243 = vadd.f32 0.0, %v4242
        %v4244 = vpop.f32.mrf.mxu0
        %v4245 = vadd.f32 0.0, %v4244
        %4246 = vmatmul.bf16.gmra.mxu0 %v4154
        %v4247 = vpop.f32.mrf.mxu0
        %v4248 = vadd.f32 0.0, %v4247
        %v4249 = vpop.f32.mrf.mxu0
        %v4250 = vadd.f32 0.0, %v4249
        %4251 = vmatmul.bf16.gmra.mxu0 %v4155
        %v4252 = vpop.f32.mrf.mxu0
        %v4253 = vadd.f32 0.0, %v4252
        %v4254 = vpop.f32.mrf.mxu0
        %v4255 = vadd.f32 0.0, %v4254
        %4256 = vmatmul.bf16.gmra.mxu0 %v4156
        %v4257 = vpop.f32.mrf.mxu0
        %v4258 = vadd.f32 0.0, %v4257
        %v4259 = vpop.f32.mrf.mxu0
        %v4260 = vadd.f32 0.0, %v4259
        %4261 = vmatmul.bf16.gmra.mxu0 %v4157
        %v4262 = vpop.f32.mrf.mxu0
        %v4263 = vadd.f32 0.0, %v4262
        %v4264 = vpop.f32.mrf.mxu0
        %v4265 = vadd.f32 0.0, %v4264
        %4266 = vmatmul.bf16.gmra.mxu0 %v4158
        %v4267 = vpop.f32.mrf.mxu0
        %v4268 = vadd.f32 0.0, %v4267
        %v4269 = vpop.f32.mrf.mxu0
        %v4270 = vadd.f32 0.0, %v4269
        %4271 = vmatmul.bf16.gmra.mxu0 %v4159
        %v4272 = vpop.f32.mrf.mxu0
        %v4273 = vadd.f32 0.0, %v4272
        %v4274 = vpop.f32.mrf.mxu0
        %v4275 = vadd.f32 0.0, %v4274
        %4276 = vmatmul.bf16.gmra.mxu0 %v4160
        %v4277 = vpop.f32.mrf.mxu0
        %v4278 = vadd.f32 0.0, %v4277
        %v4279 = vpop.f32.mrf.mxu0
        %v4280 = vadd.f32 0.0, %v4279
        %4281 = vmatmul.bf16.gmra.mxu0 %v4161
        %v4282 = vpop.f32.mrf.mxu0
        %v4283 = vadd.f32 0.0, %v4282
        %v4284 = vpop.f32.mrf.mxu0
        %v4285 = vadd.f32 0.0, %v4284
        %4286 = vmatmul.bf16.gmra.mxu0 %v4162
        %v4287 = vpop.f32.mrf.mxu0
        %v4288 = vadd.f32 0.0, %v4287
        %v4289 = vpop.f32.mrf.mxu0
        %v4290 = vadd.f32 0.0, %v4289
        %4291 = vmatmul.bf16.gmra.mxu0 %v4163
        %v4292 = vpop.f32.mrf.mxu0
        %v4293 = vadd.f32 0.0, %v4292
        %v4294 = vpop.f32.mrf.mxu0
        %v4295 = vadd.f32 0.0, %v4294
        %4296 = vmatmul.bf16.gmra.mxu0 %v4164
        %v4297 = vpop.f32.mrf.mxu0
        %v4298 = vadd.f32 0.0, %v4297
        %v4299 = vpop.f32.mrf.mxu0
        %v4300 = vadd.f32 0.0, %v4299
        %4301 = vmatmul.bf16.gmra.mxu0 %v4165
        %v4302 = vpop.f32.mrf.mxu0
        %v4303 = vadd.f32 0.0, %v4302
        %v4304 = vpop.f32.mrf.mxu0
        %v4305 = vadd.f32 0.0, %v4304
        %4306 = vmatmul.bf16.gmra.mxu0 %v4166
        %v4307 = vpop.f32.mrf.mxu0
        %v4308 = vadd.f32 0.0, %v4307
        %v4309 = vpop.f32.mrf.mxu0
        %v4310 = vadd.f32 0.0, %v4309
        %4311 = vmatmul.bf16.gmra.mxu0 %v4167
        %v4312 = vpop.f32.mrf.mxu0
        %v4313 = vadd.f32 0.0, %v4312
        %v4314 = vpop.f32.mrf.mxu0
        %v4315 = vadd.f32 0.0, %v4314
        %4316 = vmatmul.bf16.gmra.mxu0 %v4168
        %v4317 = vpop.f32.mrf.mxu0
        %v4318 = vadd.f32 0.0, %v4317
        %v4319 = vpop.f32.mrf.mxu0
        %v4320 = vadd.f32 0.0, %v4319
        %4321 = vdwg.mxu0
        %v4322 = vadd.f32 %v3896, %v4243
        %v4323 = vadd.f32 %v3897, %v4245
        %v4324 = vadd.f32 %v3898, %v4248
        %v4325 = vadd.f32 %v3899, %v4250
        %v4326 = vadd.f32 %v3900, %v4253
        %v4327 = vadd.f32 %v3901, %v4255
        %v4328 = vadd.f32 %v3902, %v4258
        %v4329 = vadd.f32 %v3903, %v4260
        %v4330 = vadd.f32 %v3904, %v4263
        %v4331 = vadd.f32 %v3905, %v4265
        %v4332 = vadd.f32 %v3906, %v4268
        %v4333 = vadd.f32 %v3907, %v4270
        %v4334 = vadd.f32 %v3908, %v4273
        %v4335 = vadd.f32 %v3909, %v4275
        %v4336 = vadd.f32 %v3910, %v4278
        %v4337 = vadd.f32 %v3911, %v4280
        %v4338 = vadd.f32 %v3912, %v4283
        %v4339 = vadd.f32 %v3913, %v4285
        %v4340 = vadd.f32 %v3914, %v4288
        %v4341 = vadd.f32 %v3915, %v4290
        %v4342 = vadd.f32 %v3916, %v4293
        %v4343 = vadd.f32 %v3917, %v4295
        %v4344 = vadd.f32 %v3918, %v4298
        %v4345 = vadd.f32 %v3919, %v4300
        %v4346 = vadd.f32 %v3920, %v4303
        %v4347 = vadd.f32 %v3921, %v4305
        %v4348 = vadd.f32 %v3922, %v4308
        %v4349 = vadd.f32 %v3923, %v4310
        %v4350 = vadd.f32 %v3924, %v4313
        %v4351 = vadd.f32 %v3925, %v4315
        %v4352 = vadd.f32 %v3926, %v4318
        %v4353 = vadd.f32 %v3927, %v4320
        %s4354 = scalar_lea.vmem [#allocation2], 24
        %v4355 = vld [vmem:[%s4354] sm:$0xf]
        %v4356 = vld [vmem:[%s4354 + $0x4] sm:$0xf]
        %v4357 = vld [vmem:[%s4354 + $0xc] sm:$0xf]
        %v4358 = vld [vmem:[%s4354 + $0x10] sm:$0xf]
        %v4359 = vld [vmem:[%s4354 + $0x18] sm:$0xf]
        %v4360 = vld [vmem:[%s4354 + $0x1c] sm:$0xf]
        %v4361 = vld [vmem:[%s4354 + $0x24] sm:$0xf]
        %v4362 = vld [vmem:[%s4354 + $0x28] sm:$0xf]
        %v4363 = vld [vmem:[%s4354 + $0x30] sm:$0xf]
        %v4364 = vld [vmem:[%s4354 + $0x34] sm:$0xf]
        %v4365 = vld [vmem:[%s4354 + $0x3c] sm:$0xf]
        %v4366 = vld [vmem:[%s4354 + $0x40] sm:$0xf]
        %v4367 = vld [vmem:[%s4354 + $0x48] sm:$0xf]
        %v4368 = vld [vmem:[%s4354 + $0x4c] sm:$0xf]
        %v4369 = vld [vmem:[%s4354 + $0x54] sm:$0xf]
        %v4370 = vld [vmem:[%s4354 + $0x58] sm:$0xf]
        %v4371 = vld [vmem:[%s4354 + $0x60] sm:$0xf]
        %v4372 = vld [vmem:[%s4354 + $0x64] sm:$0xf]
        %v4373 = vld [vmem:[%s4354 + $0x6c] sm:$0xf]
        %v4374 = vld [vmem:[%s4354 + $0x70] sm:$0xf]
        %v4375 = vld [vmem:[%s4354 + $0x78] sm:$0xf]
        %v4376 = vld [vmem:[%s4354 + $0x7c] sm:$0xf]
        %v4377 = vld [vmem:[%s4354 + $0x84] sm:$0xf]
        %v4378 = vld [vmem:[%s4354 + $0x88] sm:$0xf]
        %v4379 = vld [vmem:[%s4354 + $0x90] sm:$0xf]
        %v4380 = vld [vmem:[%s4354 + $0x94] sm:$0xf]
        %v4381 = vld [vmem:[%s4354 + $0x9c] sm:$0xf]
        %v4382 = vld [vmem:[%s4354 + $0xa0] sm:$0xf]
        %v4383 = vld [vmem:[%s4354 + $0xa8] sm:$0xf]
        %v4384 = vld [vmem:[%s4354 + $0xac] sm:$0xf]
        %v4385 = vld [vmem:[%s4354 + $0xb4] sm:$0xf]
        %v4386 = vld [vmem:[%s4354 + $0xb8] sm:$0xf]
        %s4387 = scalar_lea.vmem %s2, 384
        %v4388 = vld [vmem:[%s4387] sm:$0xf]
        %v4389 = vld [vmem:[%s4387 + $0x4] sm:$0xf]
        %v4390 = vld [vmem:[%s4387 + $0x8] sm:$0xf]
        %v4391 = vld [vmem:[%s4387 + $0xc] sm:$0xf]
        %v4392 = vld [vmem:[%s4387 + $0x10] sm:$0xf]
        %v4393 = vld [vmem:[%s4387 + $0x14] sm:$0xf]
        %v4394 = vld [vmem:[%s4387 + $0x18] sm:$0xf]
        %v4395 = vld [vmem:[%s4387 + $0x1c] sm:$0xf]
        %v4396 = vld [vmem:[%s4387 + $0x20] sm:$0xf]
        %v4397 = vld [vmem:[%s4387 + $0x24] sm:$0xf]
        %v4398 = vld [vmem:[%s4387 + $0x28] sm:$0xf]
        %v4399 = vld [vmem:[%s4387 + $0x2c] sm:$0xf]
        %v4400 = vld [vmem:[%s4387 + $0x30] sm:$0xf]
        %v4401 = vld [vmem:[%s4387 + $0x34] sm:$0xf]
        %v4402 = vld [vmem:[%s4387 + $0x38] sm:$0xf]
        %v4403 = vld [vmem:[%s4387 + $0x3c] sm:$0xf]
        %v4436 = vunpack.c.l.b16 %v4355
        %v4437 = vunpack.c.l.b16 %v4356
        %v4438 = vunpack.c.l.b16 %v4357
        %v4439 = vunpack.c.l.b16 %v4358
        %v4440 = vunpack.c.l.b16 %v4359
        %v4441 = vunpack.c.l.b16 %v4360
        %v4442 = vunpack.c.l.b16 %v4361
        %v4443 = vunpack.c.l.b16 %v4362
        %v4444 = vunpack.c.l.b16 %v4363
        %v4445 = vunpack.c.l.b16 %v4364
        %v4446 = vunpack.c.l.b16 %v4365
        %v4447 = vunpack.c.l.b16 %v4366
        %v4448 = vunpack.c.l.b16 %v4367
        %v4449 = vunpack.c.l.b16 %v4368
        %v4450 = vunpack.c.l.b16 %v4369
        %v4451 = vunpack.c.l.b16 %v4370
        %v4452 = vunpack.c.l.b16 %v4371
        %v4453 = vunpack.c.l.b16 %v4372
        %v4454 = vunpack.c.l.b16 %v4373
        %v4455 = vunpack.c.l.b16 %v4374
        %v4456 = vunpack.c.l.b16 %v4375
        %v4457 = vunpack.c.l.b16 %v4376
        %v4458 = vunpack.c.l.b16 %v4377
        %v4459 = vunpack.c.l.b16 %v4378
        %v4460 = vunpack.c.l.b16 %v4379
        %v4461 = vunpack.c.l.b16 %v4380
        %v4462 = vunpack.c.l.b16 %v4381
        %v4463 = vunpack.c.l.b16 %v4382
        %v4464 = vunpack.c.l.b16 %v4383
        %v4465 = vunpack.c.l.b16 %v4384
        %v4466 = vunpack.c.l.b16 %v4385
        %v4467 = vunpack.c.l.b16 %v4386
        %v4468 = vpack.c.b16 %v4437, %v4436
        %v4469 = vpack.c.b16 %v4439, %v4438
        %v4470 = vpack.c.b16 %v4441, %v4440
        %v4471 = vpack.c.b16 %v4443, %v4442
        %v4472 = vpack.c.b16 %v4445, %v4444
        %v4473 = vpack.c.b16 %v4447, %v4446
        %v4474 = vpack.c.b16 %v4449, %v4448
        %v4475 = vpack.c.b16 %v4451, %v4450
        %v4476 = vpack.c.b16 %v4453, %v4452
        %v4477 = vpack.c.b16 %v4455, %v4454
        %v4478 = vpack.c.b16 %v4457, %v4456
        %v4479 = vpack.c.b16 %v4459, %v4458
        %v4480 = vpack.c.b16 %v4461, %v4460
        %v4481 = vpack.c.b16 %v4463, %v4462
        %v4482 = vpack.c.b16 %v4465, %v4464
        %v4483 = vpack.c.b16 %v4467, %v4466
        %v4516 = vunpack.c.l.b16 %v4388
        %v4517 = vunpack.c.l.b16 %v4389
        %v4518 = vunpack.c.l.b16 %v4390
        %v4519 = vunpack.c.l.b16 %v4391
        %v4520 = vunpack.c.l.b16 %v4392
        %v4521 = vunpack.c.l.b16 %v4393
        %v4522 = vunpack.c.l.b16 %v4394
        %v4523 = vunpack.c.l.b16 %v4395
        %v4524 = vunpack.c.l.b16 %v4396
        %v4525 = vunpack.c.l.b16 %v4397
        %v4526 = vunpack.c.l.b16 %v4398
        %v4527 = vunpack.c.l.b16 %v4399
        %v4528 = vunpack.c.l.b16 %v4400
        %v4529 = vunpack.c.l.b16 %v4401
        %v4530 = vunpack.c.l.b16 %v4402
        %v4531 = vunpack.c.l.b16 %v4403
        %v4532 = vpack.c.b16 %v4517, %v4516
        %v4533 = vpack.c.b16 %v4519, %v4518
        %v4534 = vpack.c.b16 %v4521, %v4520
        %v4535 = vpack.c.b16 %v4523, %v4522
        %v4536 = vpack.c.b16 %v4525, %v4524
        %v4537 = vpack.c.b16 %v4527, %v4526
        %v4538 = vpack.c.b16 %v4529, %v4528
        %v4539 = vpack.c.b16 %v4531, %v4530
        %4548 = vmatpush.bf16.msra.mxu0 %v4539
        %4549 = vmatpush.bf16.msra.mxu0 %v4538
        %4550 = vmatpush.bf16.msra.mxu0 %v4537
        %4551 = vmatpush.bf16.msra.mxu0 %v4536
        %4552 = vmatpush.bf16.msra.mxu0 %v4535
        %4553 = vmatpush.bf16.msra.mxu0 %v4534
        %4554 = vmatpush.bf16.msra.mxu0 %v4533
        %4555 = vmatpush.bf16.msra.mxu0 %v4532
        %4556 = vmatmul.bf16.gmra.mxu0 %v4468
        %v4557 = vpop.f32.mrf.mxu0
        %v4558 = vadd.f32 0.0, %v4557
        %v4559 = vpop.f32.mrf.mxu0
        %v4560 = vadd.f32 0.0, %v4559
        %4561 = vmatmul.bf16.gmra.mxu0 %v4469
        %v4562 = vpop.f32.mrf.mxu0
        %v4563 = vadd.f32 0.0, %v4562
        %v4564 = vpop.f32.mrf.mxu0
        %v4565 = vadd.f32 0.0, %v4564
        %4566 = vmatmul.bf16.gmra.mxu0 %v4470
        %v4567 = vpop.f32.mrf.mxu0
        %v4568 = vadd.f32 0.0, %v4567
        %v4569 = vpop.f32.mrf.mxu0
        %v4570 = vadd.f32 0.0, %v4569
        %4571 = vmatmul.bf16.gmra.mxu0 %v4471
        %v4572 = vpop.f32.mrf.mxu0
        %v4573 = vadd.f32 0.0, %v4572
        %v4574 = vpop.f32.mrf.mxu0
        %v4575 = vadd.f32 0.0, %v4574
        %4576 = vmatmul.bf16.gmra.mxu0 %v4472
        %v4577 = vpop.f32.mrf.mxu0
        %v4578 = vadd.f32 0.0, %v4577
        %v4579 = vpop.f32.mrf.mxu0
        %v4580 = vadd.f32 0.0, %v4579
        %4581 = vmatmul.bf16.gmra.mxu0 %v4473
        %v4582 = vpop.f32.mrf.mxu0
        %v4583 = vadd.f32 0.0, %v4582
        %v4584 = vpop.f32.mrf.mxu0
        %v4585 = vadd.f32 0.0, %v4584
        %4586 = vmatmul.bf16.gmra.mxu0 %v4474
        %v4587 = vpop.f32.mrf.mxu0
        %v4588 = vadd.f32 0.0, %v4587
        %v4589 = vpop.f32.mrf.mxu0
        %v4590 = vadd.f32 0.0, %v4589
        %4591 = vmatmul.bf16.gmra.mxu0 %v4475
        %v4592 = vpop.f32.mrf.mxu0
        %v4593 = vadd.f32 0.0, %v4592
        %v4594 = vpop.f32.mrf.mxu0
        %v4595 = vadd.f32 0.0, %v4594
        %4596 = vmatmul.bf16.gmra.mxu0 %v4476
        %v4597 = vpop.f32.mrf.mxu0
        %v4598 = vadd.f32 0.0, %v4597
        %v4599 = vpop.f32.mrf.mxu0
        %v4600 = vadd.f32 0.0, %v4599
        %4601 = vmatmul.bf16.gmra.mxu0 %v4477
        %v4602 = vpop.f32.mrf.mxu0
        %v4603 = vadd.f32 0.0, %v4602
        %v4604 = vpop.f32.mrf.mxu0
        %v4605 = vadd.f32 0.0, %v4604
        %4606 = vmatmul.bf16.gmra.mxu0 %v4478
        %v4607 = vpop.f32.mrf.mxu0
        %v4608 = vadd.f32 0.0, %v4607
        %v4609 = vpop.f32.mrf.mxu0
        %v4610 = vadd.f32 0.0, %v4609
        %4611 = vmatmul.bf16.gmra.mxu0 %v4479
        %v4612 = vpop.f32.mrf.mxu0
        %v4613 = vadd.f32 0.0, %v4612
        %v4614 = vpop.f32.mrf.mxu0
        %v4615 = vadd.f32 0.0, %v4614
        %4616 = vmatmul.bf16.gmra.mxu0 %v4480
        %v4617 = vpop.f32.mrf.mxu0
        %v4618 = vadd.f32 0.0, %v4617
        %v4619 = vpop.f32.mrf.mxu0
        %v4620 = vadd.f32 0.0, %v4619
        %4621 = vmatmul.bf16.gmra.mxu0 %v4481
        %v4622 = vpop.f32.mrf.mxu0
        %v4623 = vadd.f32 0.0, %v4622
        %v4624 = vpop.f32.mrf.mxu0
        %v4625 = vadd.f32 0.0, %v4624
        %4626 = vmatmul.bf16.gmra.mxu0 %v4482
        %v4627 = vpop.f32.mrf.mxu0
        %v4628 = vadd.f32 0.0, %v4627
        %v4629 = vpop.f32.mrf.mxu0
        %v4630 = vadd.f32 0.0, %v4629
        %4631 = vmatmul.bf16.gmra.mxu0 %v4483
        %v4632 = vpop.f32.mrf.mxu0
        %v4633 = vadd.f32 0.0, %v4632
        %v4634 = vpop.f32.mrf.mxu0
        %v4635 = vadd.f32 0.0, %v4634
        %4636 = vdwg.mxu0
        %v4637 = vadd.f32 %v4322, %v4558
        %v4638 = vadd.f32 %v4323, %v4560
        %v4639 = vadd.f32 %v4324, %v4563
        %v4640 = vadd.f32 %v4325, %v4565
        %v4641 = vadd.f32 %v4326, %v4568
        %v4642 = vadd.f32 %v4327, %v4570
        %v4643 = vadd.f32 %v4328, %v4573
        %v4644 = vadd.f32 %v4329, %v4575
        %v4645 = vadd.f32 %v4330, %v4578
        %v4646 = vadd.f32 %v4331, %v4580
        %v4647 = vadd.f32 %v4332, %v4583
        %v4648 = vadd.f32 %v4333, %v4585
        %v4649 = vadd.f32 %v4334, %v4588
        %v4650 = vadd.f32 %v4335, %v4590
        %v4651 = vadd.f32 %v4336, %v4593
        %v4652 = vadd.f32 %v4337, %v4595
        %v4653 = vadd.f32 %v4338, %v4598
        %v4654 = vadd.f32 %v4339, %v4600
        %v4655 = vadd.f32 %v4340, %v4603
        %v4656 = vadd.f32 %v4341, %v4605
        %v4657 = vadd.f32 %v4342, %v4608
        %v4658 = vadd.f32 %v4343, %v4610
        %v4659 = vadd.f32 %v4344, %v4613
        %v4660 = vadd.f32 %v4345, %v4615
        %v4661 = vadd.f32 %v4346, %v4618
        %v4662 = vadd.f32 %v4347, %v4620
        %v4663 = vadd.f32 %v4348, %v4623
        %v4664 = vadd.f32 %v4349, %v4625
        %v4665 = vadd.f32 %v4350, %v4628
        %v4666 = vadd.f32 %v4351, %v4630
        %v4667 = vadd.f32 %v4352, %v4633
        %v4668 = vadd.f32 %v4353, %v4635
        %v4669 = vld [vmem:[%s4354] sm:$0xf]
        %v4670 = vld [vmem:[%s4354 + $0x4] sm:$0xf]
        %v4671 = vld [vmem:[%s4354 + $0x8] sm:$0x1]
        %v4672 = vld [vmem:[%s4354 + $0xc] sm:$0xf]
        %v4673 = vld [vmem:[%s4354 + $0x10] sm:$0xf]
        %v4674 = vld [vmem:[%s4354 + $0x14] sm:$0x1]
        %v4675 = vld [vmem:[%s4354 + $0x18] sm:$0xf]
        %v4676 = vld [vmem:[%s4354 + $0x1c] sm:$0xf]
        %v4677 = vld [vmem:[%s4354 + $0x20] sm:$0x1]
        %v4678 = vld [vmem:[%s4354 + $0x24] sm:$0xf]
        %v4679 = vld [vmem:[%s4354 + $0x28] sm:$0xf]
        %v4680 = vld [vmem:[%s4354 + $0x2c] sm:$0x1]
        %v4681 = vld [vmem:[%s4354 + $0x30] sm:$0xf]
        %v4682 = vld [vmem:[%s4354 + $0x34] sm:$0xf]
        %v4683 = vld [vmem:[%s4354 + $0x38] sm:$0x1]
        %v4684 = vld [vmem:[%s4354 + $0x3c] sm:$0xf]
        %v4685 = vld [vmem:[%s4354 + $0x40] sm:$0xf]
        %v4686 = vld [vmem:[%s4354 + $0x44] sm:$0x1]
        %v4687 = vld [vmem:[%s4354 + $0x48] sm:$0xf]
        %v4688 = vld [vmem:[%s4354 + $0x4c] sm:$0xf]
        %v4689 = vld [vmem:[%s4354 + $0x50] sm:$0x1]
        %v4690 = vld [vmem:[%s4354 + $0x54] sm:$0xf]
        %v4691 = vld [vmem:[%s4354 + $0x58] sm:$0xf]
        %v4692 = vld [vmem:[%s4354 + $0x5c] sm:$0x1]
        %v4693 = vld [vmem:[%s4354 + $0x60] sm:$0xf]
        %v4694 = vld [vmem:[%s4354 + $0x64] sm:$0xf]
        %v4695 = vld [vmem:[%s4354 + $0x68] sm:$0x1]
        %v4696 = vld [vmem:[%s4354 + $0x6c] sm:$0xf]
        %v4697 = vld [vmem:[%s4354 + $0x70] sm:$0xf]
        %v4698 = vld [vmem:[%s4354 + $0x74] sm:$0x1]
        %v4699 = vld [vmem:[%s4354 + $0x78] sm:$0xf]
        %v4700 = vld [vmem:[%s4354 + $0x7c] sm:$0xf]
        %v4701 = vld [vmem:[%s4354 + $0x80] sm:$0x1]
        %v4702 = vld [vmem:[%s4354 + $0x84] sm:$0xf]
        %v4703 = vld [vmem:[%s4354 + $0x88] sm:$0xf]
        %v4704 = vld [vmem:[%s4354 + $0x8c] sm:$0x1]
        %v4705 = vld [vmem:[%s4354 + $0x90] sm:$0xf]
        %v4706 = vld [vmem:[%s4354 + $0x94] sm:$0xf]
        %v4707 = vld [vmem:[%s4354 + $0x98] sm:$0x1]
        %v4708 = vld [vmem:[%s4354 + $0x9c] sm:$0xf]
        %v4709 = vld [vmem:[%s4354 + $0xa0] sm:$0xf]
        %v4710 = vld [vmem:[%s4354 + $0xa4] sm:$0x1]
        %v4711 = vld [vmem:[%s4354 + $0xa8] sm:$0xf]
        %v4712 = vld [vmem:[%s4354 + $0xac] sm:$0xf]
        %v4713 = vld [vmem:[%s4354 + $0xb0] sm:$0x1]
        %v4714 = vld [vmem:[%s4354 + $0xb4] sm:$0xf]
        %v4715 = vld [vmem:[%s4354 + $0xb8] sm:$0xf]
        %v4716 = vld [vmem:[%s4354 + $0xbc] sm:$0x1]
        %v4718 = vshrl.u32 %v4669, 16
        %v4720 = vrot.slane %v4718, 4
        %v4721 = vshll.u32 %v4669, 16
        %v4723 = vrot.slane %v4721, 5
        %v4724 = vor.u32 %v4720, %v4723
        %v4725 = vrot.slane %v4724, 4
        %v4727 = vshll.u32 %v4670, 16
        %v4729 = vrot.slane %v4727, 5
        %v4730 = vsel %vm1682, %v4725, %v4729
        %v4731 = vshrl.u32 %v4670, 16
        %v4733 = vrot.slane %v4731, 4
        %v4734 = vor.u32 %v4733, %v4729
        %v4735 = vrot.slane %v4734, 4
        %v4737 = vshll.u32 %v4671, 16
        %v4739 = vrot.slane %v4737, 5
        %v4740 = vsel %vm1682, %v4735, %v4739
        %v4742 = vshrl.u32 %v4672, 16
        %v4744 = vrot.slane %v4742, 4
        %v4745 = vshll.u32 %v4672, 16
        %v4747 = vrot.slane %v4745, 5
        %v4748 = vor.u32 %v4744, %v4747
        %v4749 = vrot.slane %v4748, 4
        %v4751 = vshll.u32 %v4673, 16
        %v4753 = vrot.slane %v4751, 5
        %v4754 = vsel %vm1682, %v4749, %v4753
        %v4755 = vshrl.u32 %v4673, 16
        %v4757 = vrot.slane %v4755, 4
        %v4758 = vor.u32 %v4757, %v4753
        %v4759 = vrot.slane %v4758, 4
        %v4761 = vshll.u32 %v4674, 16
        %v4763 = vrot.slane %v4761, 5
        %v4764 = vsel %vm1682, %v4759, %v4763
        %v4766 = vshrl.u32 %v4675, 16
        %v4768 = vrot.slane %v4766, 4
        %v4769 = vshll.u32 %v4675, 16
        %v4771 = vrot.slane %v4769, 5
        %v4772 = vor.u32 %v4768, %v4771
        %v4773 = vrot.slane %v4772, 4
        %v4775 = vshll.u32 %v4676, 16
        %v4777 = vrot.slane %v4775, 5
        %v4778 = vsel %vm1682, %v4773, %v4777
        %v4779 = vshrl.u32 %v4676, 16
        %v4781 = vrot.slane %v4779, 4
        %v4782 = vor.u32 %v4781, %v4777
        %v4783 = vrot.slane %v4782, 4
        %v4785 = vshll.u32 %v4677, 16
        %v4787 = vrot.slane %v4785, 5
        %v4788 = vsel %vm1682, %v4783, %v4787
        %v4790 = vshrl.u32 %v4678, 16
        %v4792 = vrot.slane %v4790, 4
        %v4793 = vshll.u32 %v4678, 16
        %v4795 = vrot.slane %v4793, 5
        %v4796 = vor.u32 %v4792, %v4795
        %v4797 = vrot.slane %v4796, 4
        %v4799 = vshll.u32 %v4679, 16
        %v4801 = vrot.slane %v4799, 5
        %v4802 = vsel %vm1682, %v4797, %v4801
        %v4803 = vshrl.u32 %v4679, 16
        %v4805 = vrot.slane %v4803, 4
        %v4806 = vor.u32 %v4805, %v4801
        %v4807 = vrot.slane %v4806, 4
        %v4809 = vshll.u32 %v4680, 16
        %v4811 = vrot.slane %v4809, 5
        %v4812 = vsel %vm1682, %v4807, %v4811
        %v4814 = vshrl.u32 %v4681, 16
        %v4816 = vrot.slane %v4814, 4
        %v4817 = vshll.u32 %v4681, 16
        %v4819 = vrot.slane %v4817, 5
        %v4820 = vor.u32 %v4816, %v4819
        %v4821 = vrot.slane %v4820, 4
        %v4823 = vshll.u32 %v4682, 16
        %v4825 = vrot.slane %v4823, 5
        %v4826 = vsel %vm1682, %v4821, %v4825
        %v4827 = vshrl.u32 %v4682, 16
        %v4829 = vrot.slane %v4827, 4
        %v4830 = vor.u32 %v4829, %v4825
        %v4831 = vrot.slane %v4830, 4
        %v4833 = vshll.u32 %v4683, 16
        %v4835 = vrot.slane %v4833, 5
        %v4836 = vsel %vm1682, %v4831, %v4835
        %v4838 = vshrl.u32 %v4684, 16
        %v4840 = vrot.slane %v4838, 4
        %v4841 = vshll.u32 %v4684, 16
        %v4843 = vrot.slane %v4841, 5
        %v4844 = vor.u32 %v4840, %v4843
        %v4845 = vrot.slane %v4844, 4
        %v4847 = vshll.u32 %v4685, 16
        %v4849 = vrot.slane %v4847, 5
        %v4850 = vsel %vm1682, %v4845, %v4849
        %v4851 = vshrl.u32 %v4685, 16
        %v4853 = vrot.slane %v4851, 4
        %v4854 = vor.u32 %v4853, %v4849
        %v4855 = vrot.slane %v4854, 4
        %v4857 = vshll.u32 %v4686, 16
        %v4859 = vrot.slane %v4857, 5
        %v4860 = vsel %vm1682, %v4855, %v4859
        %v4862 = vshrl.u32 %v4687, 16
        %v4864 = vrot.slane %v4862, 4
        %v4865 = vshll.u32 %v4687, 16
        %v4867 = vrot.slane %v4865, 5
        %v4868 = vor.u32 %v4864, %v4867
        %v4869 = vrot.slane %v4868, 4
        %v4871 = vshll.u32 %v4688, 16
        %v4873 = vrot.slane %v4871, 5
        %v4874 = vsel %vm1682, %v4869, %v4873
        %v4875 = vshrl.u32 %v4688, 16
        %v4877 = vrot.slane %v4875, 4
        %v4878 = vor.u32 %v4877, %v4873
        %v4879 = vrot.slane %v4878, 4
        %v4881 = vshll.u32 %v4689, 16
        %v4883 = vrot.slane %v4881, 5
        %v4884 = vsel %vm1682, %v4879, %v4883
        %v4886 = vshrl.u32 %v4690, 16
        %v4888 = vrot.slane %v4886, 4
        %v4889 = vshll.u32 %v4690, 16
        %v4891 = vrot.slane %v4889, 5
        %v4892 = vor.u32 %v4888, %v4891
        %v4893 = vrot.slane %v4892, 4
        %v4895 = vshll.u32 %v4691, 16
        %v4897 = vrot.slane %v4895, 5
        %v4898 = vsel %vm1682, %v4893, %v4897
        %v4899 = vshrl.u32 %v4691, 16
        %v4901 = vrot.slane %v4899, 4
        %v4902 = vor.u32 %v4901, %v4897
        %v4903 = vrot.slane %v4902, 4
        %v4905 = vshll.u32 %v4692, 16
        %v4907 = vrot.slane %v4905, 5
        %v4908 = vsel %vm1682, %v4903, %v4907
        %v4910 = vshrl.u32 %v4693, 16
        %v4912 = vrot.slane %v4910, 4
        %v4913 = vshll.u32 %v4693, 16
        %v4915 = vrot.slane %v4913, 5
        %v4916 = vor.u32 %v4912, %v4915
        %v4917 = vrot.slane %v4916, 4
        %v4919 = vshll.u32 %v4694, 16
        %v4921 = vrot.slane %v4919, 5
        %v4922 = vsel %vm1682, %v4917, %v4921
        %v4923 = vshrl.u32 %v4694, 16
        %v4925 = vrot.slane %v4923, 4
        %v4926 = vor.u32 %v4925, %v4921
        %v4927 = vrot.slane %v4926, 4
        %v4929 = vshll.u32 %v4695, 16
        %v4931 = vrot.slane %v4929, 5
        %v4932 = vsel %vm1682, %v4927, %v4931
        %v4934 = vshrl.u32 %v4696, 16
        %v4936 = vrot.slane %v4934, 4
        %v4937 = vshll.u32 %v4696, 16
        %v4939 = vrot.slane %v4937, 5
        %v4940 = vor.u32 %v4936, %v4939
        %v4941 = vrot.slane %v4940, 4
        %v4943 = vshll.u32 %v4697, 16
        %v4945 = vrot.slane %v4943, 5
        %v4946 = vsel %vm1682, %v4941, %v4945
        %v4947 = vshrl.u32 %v4697, 16
        %v4949 = vrot.slane %v4947, 4
        %v4950 = vor.u32 %v4949, %v4945
        %v4951 = vrot.slane %v4950, 4
        %v4953 = vshll.u32 %v4698, 16
        %v4955 = vrot.slane %v4953, 5
        %v4956 = vsel %vm1682, %v4951, %v4955
        %v4958 = vshrl.u32 %v4699, 16
        %v4960 = vrot.slane %v4958, 4
        %v4961 = vshll.u32 %v4699, 16
        %v4963 = vrot.slane %v4961, 5
        %v4964 = vor.u32 %v4960, %v4963
        %v4965 = vrot.slane %v4964, 4
        %v4967 = vshll.u32 %v4700, 16
        %v4969 = vrot.slane %v4967, 5
        %v4970 = vsel %vm1682, %v4965, %v4969
        %v4971 = vshrl.u32 %v4700, 16
        %v4973 = vrot.slane %v4971, 4
        %v4974 = vor.u32 %v4973, %v4969
        %v4975 = vrot.slane %v4974, 4
        %v4977 = vshll.u32 %v4701, 16
        %v4979 = vrot.slane %v4977, 5
        %v4980 = vsel %vm1682, %v4975, %v4979
        %v4982 = vshrl.u32 %v4702, 16
        %v4984 = vrot.slane %v4982, 4
        %v4985 = vshll.u32 %v4702, 16
        %v4987 = vrot.slane %v4985, 5
        %v4988 = vor.u32 %v4984, %v4987
        %v4989 = vrot.slane %v4988, 4
        %v4991 = vshll.u32 %v4703, 16
        %v4993 = vrot.slane %v4991, 5
        %v4994 = vsel %vm1682, %v4989, %v4993
        %v4995 = vshrl.u32 %v4703, 16
        %v4997 = vrot.slane %v4995, 4
        %v4998 = vor.u32 %v4997, %v4993
        %v4999 = vrot.slane %v4998, 4
        %v5001 = vshll.u32 %v4704, 16
        %v5003 = vrot.slane %v5001, 5
        %v5004 = vsel %vm1682, %v4999, %v5003
        %v5006 = vshrl.u32 %v4705, 16
        %v5008 = vrot.slane %v5006, 4
        %v5009 = vshll.u32 %v4705, 16
        %v5011 = vrot.slane %v5009, 5
        %v5012 = vor.u32 %v5008, %v5011
        %v5013 = vrot.slane %v5012, 4
        %v5015 = vshll.u32 %v4706, 16
        %v5017 = vrot.slane %v5015, 5
        %v5018 = vsel %vm1682, %v5013, %v5017
        %v5019 = vshrl.u32 %v4706, 16
        %v5021 = vrot.slane %v5019, 4
        %v5022 = vor.u32 %v5021, %v5017
        %v5023 = vrot.slane %v5022, 4
        %v5025 = vshll.u32 %v4707, 16
        %v5027 = vrot.slane %v5025, 5
        %v5028 = vsel %vm1682, %v5023, %v5027
        %v5030 = vshrl.u32 %v4708, 16
        %v5032 = vrot.slane %v5030, 4
        %v5033 = vshll.u32 %v4708, 16
        %v5035 = vrot.slane %v5033, 5
        %v5036 = vor.u32 %v5032, %v5035
        %v5037 = vrot.slane %v5036, 4
        %v5039 = vshll.u32 %v4709, 16
        %v5041 = vrot.slane %v5039, 5
        %v5042 = vsel %vm1682, %v5037, %v5041
        %v5043 = vshrl.u32 %v4709, 16
        %v5045 = vrot.slane %v5043, 4
        %v5046 = vor.u32 %v5045, %v5041
        %v5047 = vrot.slane %v5046, 4
        %v5049 = vshll.u32 %v4710, 16
        %v5051 = vrot.slane %v5049, 5
        %v5052 = vsel %vm1682, %v5047, %v5051
        %v5054 = vshrl.u32 %v4711, 16
        %v5056 = vrot.slane %v5054, 4
        %v5057 = vshll.u32 %v4711, 16
        %v5059 = vrot.slane %v5057, 5
        %v5060 = vor.u32 %v5056, %v5059
        %v5061 = vrot.slane %v5060, 4
        %v5063 = vshll.u32 %v4712, 16
        %v5065 = vrot.slane %v5063, 5
        %v5066 = vsel %vm1682, %v5061, %v5065
        %v5067 = vshrl.u32 %v4712, 16
        %v5069 = vrot.slane %v5067, 4
        %v5070 = vor.u32 %v5069, %v5065
        %v5071 = vrot.slane %v5070, 4
        %v5073 = vshll.u32 %v4713, 16
        %v5075 = vrot.slane %v5073, 5
        %v5076 = vsel %vm1682, %v5071, %v5075
        %v5078 = vshrl.u32 %v4714, 16
        %v5080 = vrot.slane %v5078, 4
        %v5081 = vshll.u32 %v4714, 16
        %v5083 = vrot.slane %v5081, 5
        %v5084 = vor.u32 %v5080, %v5083
        %v5085 = vrot.slane %v5084, 4
        %v5087 = vshll.u32 %v4715, 16
        %v5089 = vrot.slane %v5087, 5
        %v5090 = vsel %vm1682, %v5085, %v5089
        %v5091 = vshrl.u32 %v4715, 16
        %v5093 = vrot.slane %v5091, 4
        %v5094 = vor.u32 %v5093, %v5089
        %v5095 = vrot.slane %v5094, 4
        %v5097 = vshll.u32 %v4716, 16
        %v5099 = vrot.slane %v5097, 5
        %v5100 = vsel %vm1682, %v5095, %v5099
        %s5101 = scalar_lea.vmem %s2, 448
        %v5102 = vld [vmem:[%s5101] sm:$0xf]
        %v5103 = vld [vmem:[%s5101 + $0x4] sm:$0xf]
        %v5104 = vld [vmem:[%s5101 + $0x8] sm:$0xf]
        %v5105 = vld [vmem:[%s5101 + $0xc] sm:$0xf]
        %v5106 = vld [vmem:[%s5101 + $0x10] sm:$0xf]
        %v5107 = vld [vmem:[%s5101 + $0x14] sm:$0xf]
        %v5108 = vld [vmem:[%s5101 + $0x18] sm:$0xf]
        %v5109 = vld [vmem:[%s5101 + $0x1c] sm:$0xf]
        %v5110 = vld [vmem:[%s5101 + $0x20] sm:$0xf]
        %v5111 = vld [vmem:[%s5101 + $0x24] sm:$0xf]
        %v5112 = vld [vmem:[%s5101 + $0x28] sm:$0xf]
        %v5113 = vld [vmem:[%s5101 + $0x2c] sm:$0xf]
        %v5114 = vld [vmem:[%s5101 + $0x30] sm:$0xf]
        %v5115 = vld [vmem:[%s5101 + $0x34] sm:$0xf]
        %v5116 = vld [vmem:[%s5101 + $0x38] sm:$0xf]
        %v5117 = vld [vmem:[%s5101 + $0x3c] sm:$0xf]
        %v5118 = vunpack.c.l.b16 %v4730
        %v5119 = vunpack.c.l.b16 %v4740
        %v5120 = vunpack.c.l.b16 %v4754
        %v5121 = vunpack.c.l.b16 %v4764
        %v5122 = vunpack.c.l.b16 %v4778
        %v5123 = vunpack.c.l.b16 %v4788
        %v5124 = vunpack.c.l.b16 %v4802
        %v5125 = vunpack.c.l.b16 %v4812
        %v5126 = vunpack.c.l.b16 %v4826
        %v5127 = vunpack.c.l.b16 %v4836
        %v5128 = vunpack.c.l.b16 %v4850
        %v5129 = vunpack.c.l.b16 %v4860
        %v5130 = vunpack.c.l.b16 %v4874
        %v5131 = vunpack.c.l.b16 %v4884
        %v5132 = vunpack.c.l.b16 %v4898
        %v5133 = vunpack.c.l.b16 %v4908
        %v5134 = vunpack.c.l.b16 %v4922
        %v5135 = vunpack.c.l.b16 %v4932
        %v5136 = vunpack.c.l.b16 %v4946
        %v5137 = vunpack.c.l.b16 %v4956
        %v5138 = vunpack.c.l.b16 %v4970
        %v5139 = vunpack.c.l.b16 %v4980
        %v5140 = vunpack.c.l.b16 %v4994
        %v5141 = vunpack.c.l.b16 %v5004
        %v5142 = vunpack.c.l.b16 %v5018
        %v5143 = vunpack.c.l.b16 %v5028
        %v5144 = vunpack.c.l.b16 %v5042
        %v5145 = vunpack.c.l.b16 %v5052
        %v5146 = vunpack.c.l.b16 %v5066
        %v5147 = vunpack.c.l.b16 %v5076
        %v5148 = vunpack.c.l.b16 %v5090
        %v5149 = vunpack.c.l.b16 %v5100
        %v5150 = vpack.c.b16 %v5119, %v5118
        %v5151 = vpack.c.b16 %v5121, %v5120
        %v5152 = vpack.c.b16 %v5123, %v5122
        %v5153 = vpack.c.b16 %v5125, %v5124
        %v5154 = vpack.c.b16 %v5127, %v5126
        %v5155 = vpack.c.b16 %v5129, %v5128
        %v5156 = vpack.c.b16 %v5131, %v5130
        %v5157 = vpack.c.b16 %v5133, %v5132
        %v5158 = vpack.c.b16 %v5135, %v5134
        %v5159 = vpack.c.b16 %v5137, %v5136
        %v5160 = vpack.c.b16 %v5139, %v5138
        %v5161 = vpack.c.b16 %v5141, %v5140
        %v5162 = vpack.c.b16 %v5143, %v5142
        %v5163 = vpack.c.b16 %v5145, %v5144
        %v5164 = vpack.c.b16 %v5147, %v5146
        %v5165 = vpack.c.b16 %v5149, %v5148
        %v5198 = vunpack.c.l.b16 %v5102
        %v5199 = vunpack.c.l.b16 %v5103
        %v5200 = vunpack.c.l.b16 %v5104
        %v5201 = vunpack.c.l.b16 %v5105
        %v5202 = vunpack.c.l.b16 %v5106
        %v5203 = vunpack.c.l.b16 %v5107
        %v5204 = vunpack.c.l.b16 %v5108
        %v5205 = vunpack.c.l.b16 %v5109
        %v5206 = vunpack.c.l.b16 %v5110
        %v5207 = vunpack.c.l.b16 %v5111
        %v5208 = vunpack.c.l.b16 %v5112
        %v5209 = vunpack.c.l.b16 %v5113
        %v5210 = vunpack.c.l.b16 %v5114
        %v5211 = vunpack.c.l.b16 %v5115
        %v5212 = vunpack.c.l.b16 %v5116
        %v5213 = vunpack.c.l.b16 %v5117
        %v5214 = vpack.c.b16 %v5199, %v5198
        %v5215 = vpack.c.b16 %v5201, %v5200
        %v5216 = vpack.c.b16 %v5203, %v5202
        %v5217 = vpack.c.b16 %v5205, %v5204
        %v5218 = vpack.c.b16 %v5207, %v5206
        %v5219 = vpack.c.b16 %v5209, %v5208
        %v5220 = vpack.c.b16 %v5211, %v5210
        %v5221 = vpack.c.b16 %v5213, %v5212
        %5230 = vmatpush.bf16.msra.mxu0 %v5221
        %5231 = vmatpush.bf16.msra.mxu0 %v5220
        %5232 = vmatpush.bf16.msra.mxu0 %v5219
        %5233 = vmatpush.bf16.msra.mxu0 %v5218
        %5234 = vmatpush.bf16.msra.mxu0 %v5217
        %5235 = vmatpush.bf16.msra.mxu0 %v5216
        %5236 = vmatpush.bf16.msra.mxu0 %v5215
        %5237 = vmatpush.bf16.msra.mxu0 %v5214
        %5238 = vmatmul.bf16.gmra.mxu0 %v5150
        %v5239 = vpop.f32.mrf.mxu0
        %v5240 = vadd.f32 0.0, %v5239
        %v5241 = vpop.f32.mrf.mxu0
        %v5242 = vadd.f32 0.0, %v5241
        %5243 = vmatmul.bf16.gmra.mxu0 %v5151
        %v5244 = vpop.f32.mrf.mxu0
        %v5245 = vadd.f32 0.0, %v5244
        %v5246 = vpop.f32.mrf.mxu0
        %v5247 = vadd.f32 0.0, %v5246
        %5248 = vmatmul.bf16.gmra.mxu0 %v5152
        %v5249 = vpop.f32.mrf.mxu0
        %v5250 = vadd.f32 0.0, %v5249
        %v5251 = vpop.f32.mrf.mxu0
        %v5252 = vadd.f32 0.0, %v5251
        %5253 = vmatmul.bf16.gmra.mxu0 %v5153
        %v5254 = vpop.f32.mrf.mxu0
        %v5255 = vadd.f32 0.0, %v5254
        %v5256 = vpop.f32.mrf.mxu0
        %v5257 = vadd.f32 0.0, %v5256
        %5258 = vmatmul.bf16.gmra.mxu0 %v5154
        %v5259 = vpop.f32.mrf.mxu0
        %v5260 = vadd.f32 0.0, %v5259
        %v5261 = vpop.f32.mrf.mxu0
        %v5262 = vadd.f32 0.0, %v5261
        %5263 = vmatmul.bf16.gmra.mxu0 %v5155
        %v5264 = vpop.f32.mrf.mxu0
        %v5265 = vadd.f32 0.0, %v5264
        %v5266 = vpop.f32.mrf.mxu0
        %v5267 = vadd.f32 0.0, %v5266
        %5268 = vmatmul.bf16.gmra.mxu0 %v5156
        %v5269 = vpop.f32.mrf.mxu0
        %v5270 = vadd.f32 0.0, %v5269
        %v5271 = vpop.f32.mrf.mxu0
        %v5272 = vadd.f32 0.0, %v5271
        %5273 = vmatmul.bf16.gmra.mxu0 %v5157
        %v5274 = vpop.f32.mrf.mxu0
        %v5275 = vadd.f32 0.0, %v5274
        %v5276 = vpop.f32.mrf.mxu0
        %v5277 = vadd.f32 0.0, %v5276
        %5278 = vmatmul.bf16.gmra.mxu0 %v5158
        %v5279 = vpop.f32.mrf.mxu0
        %v5280 = vadd.f32 0.0, %v5279
        %v5281 = vpop.f32.mrf.mxu0
        %v5282 = vadd.f32 0.0, %v5281
        %5283 = vmatmul.bf16.gmra.mxu0 %v5159
        %v5284 = vpop.f32.mrf.mxu0
        %v5285 = vadd.f32 0.0, %v5284
        %v5286 = vpop.f32.mrf.mxu0
        %v5287 = vadd.f32 0.0, %v5286
        %5288 = vmatmul.bf16.gmra.mxu0 %v5160
        %v5289 = vpop.f32.mrf.mxu0
        %v5290 = vadd.f32 0.0, %v5289
        %v5291 = vpop.f32.mrf.mxu0
        %v5292 = vadd.f32 0.0, %v5291
        %5293 = vmatmul.bf16.gmra.mxu0 %v5161
        %v5294 = vpop.f32.mrf.mxu0
        %v5295 = vadd.f32 0.0, %v5294
        %v5296 = vpop.f32.mrf.mxu0
        %v5297 = vadd.f32 0.0, %v5296
        %5298 = vmatmul.bf16.gmra.mxu0 %v5162
        %v5299 = vpop.f32.mrf.mxu0
        %v5300 = vadd.f32 0.0, %v5299
        %v5301 = vpop.f32.mrf.mxu0
        %v5302 = vadd.f32 0.0, %v5301
        %5303 = vmatmul.bf16.gmra.mxu0 %v5163
        %v5304 = vpop.f32.mrf.mxu0
        %v5305 = vadd.f32 0.0, %v5304
        %v5306 = vpop.f32.mrf.mxu0
        %v5307 = vadd.f32 0.0, %v5306
        %5308 = vmatmul.bf16.gmra.mxu0 %v5164
        %v5309 = vpop.f32.mrf.mxu0
        %v5310 = vadd.f32 0.0, %v5309
        %v5311 = vpop.f32.mrf.mxu0
        %v5312 = vadd.f32 0.0, %v5311
        %5313 = vmatmul.bf16.gmra.mxu0 %v5165
        %v5314 = vpop.f32.mrf.mxu0
        %v5315 = vadd.f32 0.0, %v5314
        %v5316 = vpop.f32.mrf.mxu0
        %v5317 = vadd.f32 0.0, %v5316
        %5318 = vdwg.mxu0
        %v5319 = vadd.f32 %v4637, %v5240
        %v5320 = vadd.f32 %v4638, %v5242
        %v5321 = vadd.f32 %v4639, %v5245
        %v5322 = vadd.f32 %v4640, %v5247
        %v5323 = vadd.f32 %v4641, %v5250
        %v5324 = vadd.f32 %v4642, %v5252
        %v5325 = vadd.f32 %v4643, %v5255
        %v5326 = vadd.f32 %v4644, %v5257
        %v5327 = vadd.f32 %v4645, %v5260
        %v5328 = vadd.f32 %v4646, %v5262
        %v5329 = vadd.f32 %v4647, %v5265
        %v5330 = vadd.f32 %v4648, %v5267
        %v5331 = vadd.f32 %v4649, %v5270
        %v5332 = vadd.f32 %v4650, %v5272
        %v5333 = vadd.f32 %v4651, %v5275
        %v5334 = vadd.f32 %v4652, %v5277
        %v5335 = vadd.f32 %v4653, %v5280
        %v5336 = vadd.f32 %v4654, %v5282
        %v5337 = vadd.f32 %v4655, %v5285
        %v5338 = vadd.f32 %v4656, %v5287
        %v5339 = vadd.f32 %v4657, %v5290
        %v5340 = vadd.f32 %v4658, %v5292
        %v5341 = vadd.f32 %v4659, %v5295
        %v5342 = vadd.f32 %v4660, %v5297
        %v5343 = vadd.f32 %v4661, %v5300
        %v5344 = vadd.f32 %v4662, %v5302
        %v5345 = vadd.f32 %v4663, %v5305
        %v5346 = vadd.f32 %v4664, %v5307
        %v5347 = vadd.f32 %v4665, %v5310
        %v5348 = vadd.f32 %v4666, %v5312
        %v5349 = vadd.f32 %v4667, %v5315
        %v5350 = vadd.f32 %v4668, %v5317
        %v5351 = vld [vmem:[%s4354] sm:$0xe]
        %v5352 = vld [vmem:[%s4354 + $0xc] sm:$0xe]
        %v5353 = vld [vmem:[%s4354 + $0x18] sm:$0xe]
        %v5354 = vld [vmem:[%s4354 + $0x24] sm:$0xe]
        %v5355 = vld [vmem:[%s4354 + $0x30] sm:$0xe]
        %v5356 = vld [vmem:[%s4354 + $0x3c] sm:$0xe]
        %v5357 = vld [vmem:[%s4354 + $0x48] sm:$0xe]
        %v5358 = vld [vmem:[%s4354 + $0x54] sm:$0xe]
        %v5359 = vld [vmem:[%s4354 + $0x60] sm:$0xe]
        %v5360 = vld [vmem:[%s4354 + $0x6c] sm:$0xe]
        %v5361 = vld [vmem:[%s4354 + $0x78] sm:$0xe]
        %v5362 = vld [vmem:[%s4354 + $0x84] sm:$0xe]
        %v5363 = vld [vmem:[%s4354 + $0x90] sm:$0xe]
        %v5364 = vld [vmem:[%s4354 + $0x9c] sm:$0xe]
        %v5365 = vld [vmem:[%s4354 + $0xa8] sm:$0xe]
        %v5366 = vld [vmem:[%s4354 + $0xb4] sm:$0xe]
        %v5415 = vrot.slane %v5351, 5
        %v5416 = vrot.slane %v5415, 4
        %v5417 = vrot.slane %v4670, 5
        %v5418 = vsel %vm2568, %v5416, %v5417
        %v5419 = vrot.slane %v5417, 4
        %v5420 = vrot.slane %v4671, 5
        %v5421 = vsel %vm2568, %v5419, %v5420
        %v5422 = vrot.slane %v5352, 5
        %v5423 = vrot.slane %v5422, 4
        %v5424 = vrot.slane %v4673, 5
        %v5425 = vsel %vm2568, %v5423, %v5424
        %v5426 = vrot.slane %v5424, 4
        %v5427 = vrot.slane %v4674, 5
        %v5428 = vsel %vm2568, %v5426, %v5427
        %v5429 = vrot.slane %v5353, 5
        %v5430 = vrot.slane %v5429, 4
        %v5431 = vrot.slane %v4676, 5
        %v5432 = vsel %vm2568, %v5430, %v5431
        %v5433 = vrot.slane %v5431, 4
        %v5434 = vrot.slane %v4677, 5
        %v5435 = vsel %vm2568, %v5433, %v5434
        %v5436 = vrot.slane %v5354, 5
        %v5437 = vrot.slane %v5436, 4
        %v5438 = vrot.slane %v4679, 5
        %v5439 = vsel %vm2568, %v5437, %v5438
        %v5440 = vrot.slane %v5438, 4
        %v5441 = vrot.slane %v4680, 5
        %v5442 = vsel %vm2568, %v5440, %v5441
        %v5443 = vrot.slane %v5355, 5
        %v5444 = vrot.slane %v5443, 4
        %v5445 = vrot.slane %v4682, 5
        %v5446 = vsel %vm2568, %v5444, %v5445
        %v5447 = vrot.slane %v5445, 4
        %v5448 = vrot.slane %v4683, 5
        %v5449 = vsel %vm2568, %v5447, %v5448
        %v5450 = vrot.slane %v5356, 5
        %v5451 = vrot.slane %v5450, 4
        %v5452 = vrot.slane %v4685, 5
        %v5453 = vsel %vm2568, %v5451, %v5452
        %v5454 = vrot.slane %v5452, 4
        %v5455 = vrot.slane %v4686, 5
        %v5456 = vsel %vm2568, %v5454, %v5455
        %v5457 = vrot.slane %v5357, 5
        %v5458 = vrot.slane %v5457, 4
        %v5459 = vrot.slane %v4688, 5
        %v5460 = vsel %vm2568, %v5458, %v5459
        %v5461 = vrot.slane %v5459, 4
        %v5462 = vrot.slane %v4689, 5
        %v5463 = vsel %vm2568, %v5461, %v5462
        %v5464 = vrot.slane %v5358, 5
        %v5465 = vrot.slane %v5464, 4
        %v5466 = vrot.slane %v4691, 5
        %v5467 = vsel %vm2568, %v5465, %v5466
        %v5468 = vrot.slane %v5466, 4
        %v5469 = vrot.slane %v4692, 5
        %v5470 = vsel %vm2568, %v5468, %v5469
        %v5471 = vrot.slane %v5359, 5
        %v5472 = vrot.slane %v5471, 4
        %v5473 = vrot.slane %v4694, 5
        %v5474 = vsel %vm2568, %v5472, %v5473
        %v5475 = vrot.slane %v5473, 4
        %v5476 = vrot.slane %v4695, 5
        %v5477 = vsel %vm2568, %v5475, %v5476
        %v5478 = vrot.slane %v5360, 5
        %v5479 = vrot.slane %v5478, 4
        %v5480 = vrot.slane %v4697, 5
        %v5481 = vsel %vm2568, %v5479, %v5480
        %v5482 = vrot.slane %v5480, 4
        %v5483 = vrot.slane %v4698, 5
        %v5484 = vsel %vm2568, %v5482, %v5483
        %v5485 = vrot.slane %v5361, 5
        %v5486 = vrot.slane %v5485, 4
        %v5487 = vrot.slane %v4700, 5
        %v5488 = vsel %vm2568, %v5486, %v5487
        %v5489 = vrot.slane %v5487, 4
        %v5490 = vrot.slane %v4701, 5
        %v5491 = vsel %vm2568, %v5489, %v5490
        %v5492 = vrot.slane %v5362, 5
        %v5493 = vrot.slane %v5492, 4
        %v5494 = vrot.slane %v4703, 5
        %v5495 = vsel %vm2568, %v5493, %v5494
        %v5496 = vrot.slane %v5494, 4
        %v5497 = vrot.slane %v4704, 5
        %v5498 = vsel %vm2568, %v5496, %v5497
        %v5499 = vrot.slane %v5363, 5
        %v5500 = vrot.slane %v5499, 4
        %v5501 = vrot.slane %v4706, 5
        %v5502 = vsel %vm2568, %v5500, %v5501
        %v5503 = vrot.slane %v5501, 4
        %v5504 = vrot.slane %v4707, 5
        %v5505 = vsel %vm2568, %v5503, %v5504
        %v5506 = vrot.slane %v5364, 5
        %v5507 = vrot.slane %v5506, 4
        %v5508 = vrot.slane %v4709, 5
        %v5509 = vsel %vm2568, %v5507, %v5508
        %v5510 = vrot.slane %v5508, 4
        %v5511 = vrot.slane %v4710, 5
        %v5512 = vsel %vm2568, %v5510, %v5511
        %v5513 = vrot.slane %v5365, 5
        %v5514 = vrot.slane %v5513, 4
        %v5515 = vrot.slane %v4712, 5
        %v5516 = vsel %vm2568, %v5514, %v5515
        %v5517 = vrot.slane %v5515, 4
        %v5518 = vrot.slane %v4713, 5
        %v5519 = vsel %vm2568, %v5517, %v5518
        %v5520 = vrot.slane %v5366, 5
        %v5521 = vrot.slane %v5520, 4
        %v5522 = vrot.slane %v4715, 5
        %v5523 = vsel %vm2568, %v5521, %v5522
        %v5524 = vrot.slane %v5522, 4
        %v5525 = vrot.slane %v4716, 5
        %v5526 = vsel %vm2568, %v5524, %v5525
        %s5527 = scalar_lea.vmem %s2, 512
        %v5528 = vld [vmem:[%s5527] sm:$0xf]
        %v5529 = vld [vmem:[%s5527 + $0x4] sm:$0xf]
        %v5530 = vld [vmem:[%s5527 + $0x8] sm:$0xf]
        %v5531 = vld [vmem:[%s5527 + $0xc] sm:$0xf]
        %v5532 = vld [vmem:[%s5527 + $0x10] sm:$0xf]
        %v5533 = vld [vmem:[%s5527 + $0x14] sm:$0xf]
        %v5534 = vld [vmem:[%s5527 + $0x18] sm:$0xf]
        %v5535 = vld [vmem:[%s5527 + $0x1c] sm:$0xf]
        %v5536 = vld [vmem:[%s5527 + $0x20] sm:$0xf]
        %v5537 = vld [vmem:[%s5527 + $0x24] sm:$0xf]
        %v5538 = vld [vmem:[%s5527 + $0x28] sm:$0xf]
        %v5539 = vld [vmem:[%s5527 + $0x2c] sm:$0xf]
        %v5540 = vld [vmem:[%s5527 + $0x30] sm:$0xf]
        %v5541 = vld [vmem:[%s5527 + $0x34] sm:$0xf]
        %v5542 = vld [vmem:[%s5527 + $0x38] sm:$0xf]
        %v5543 = vld [vmem:[%s5527 + $0x3c] sm:$0xf]
        %v5544 = vunpack.c.l.b16 %v5418
        %v5545 = vunpack.c.l.b16 %v5421
        %v5546 = vunpack.c.l.b16 %v5425
        %v5547 = vunpack.c.l.b16 %v5428
        %v5548 = vunpack.c.l.b16 %v5432
        %v5549 = vunpack.c.l.b16 %v5435
        %v5550 = vunpack.c.l.b16 %v5439
        %v5551 = vunpack.c.l.b16 %v5442
        %v5552 = vunpack.c.l.b16 %v5446
        %v5553 = vunpack.c.l.b16 %v5449
        %v5554 = vunpack.c.l.b16 %v5453
        %v5555 = vunpack.c.l.b16 %v5456
        %v5556 = vunpack.c.l.b16 %v5460
        %v5557 = vunpack.c.l.b16 %v5463
        %v5558 = vunpack.c.l.b16 %v5467
        %v5559 = vunpack.c.l.b16 %v5470
        %v5560 = vunpack.c.l.b16 %v5474
        %v5561 = vunpack.c.l.b16 %v5477
        %v5562 = vunpack.c.l.b16 %v5481
        %v5563 = vunpack.c.l.b16 %v5484
        %v5564 = vunpack.c.l.b16 %v5488
        %v5565 = vunpack.c.l.b16 %v5491
        %v5566 = vunpack.c.l.b16 %v5495
        %v5567 = vunpack.c.l.b16 %v5498
        %v5568 = vunpack.c.l.b16 %v5502
        %v5569 = vunpack.c.l.b16 %v5505
        %v5570 = vunpack.c.l.b16 %v5509
        %v5571 = vunpack.c.l.b16 %v5512
        %v5572 = vunpack.c.l.b16 %v5516
        %v5573 = vunpack.c.l.b16 %v5519
        %v5574 = vunpack.c.l.b16 %v5523
        %v5575 = vunpack.c.l.b16 %v5526
        %v5576 = vpack.c.b16 %v5545, %v5544
        %v5577 = vpack.c.b16 %v5547, %v5546
        %v5578 = vpack.c.b16 %v5549, %v5548
        %v5579 = vpack.c.b16 %v5551, %v5550
        %v5580 = vpack.c.b16 %v5553, %v5552
        %v5581 = vpack.c.b16 %v5555, %v5554
        %v5582 = vpack.c.b16 %v5557, %v5556
        %v5583 = vpack.c.b16 %v5559, %v5558
        %v5584 = vpack.c.b16 %v5561, %v5560
        %v5585 = vpack.c.b16 %v5563, %v5562
        %v5586 = vpack.c.b16 %v5565, %v5564
        %v5587 = vpack.c.b16 %v5567, %v5566
        %v5588 = vpack.c.b16 %v5569, %v5568
        %v5589 = vpack.c.b16 %v5571, %v5570
        %v5590 = vpack.c.b16 %v5573, %v5572
        %v5591 = vpack.c.b16 %v5575, %v5574
        %v5624 = vunpack.c.l.b16 %v5528
        %v5625 = vunpack.c.l.b16 %v5529
        %v5626 = vunpack.c.l.b16 %v5530
        %v5627 = vunpack.c.l.b16 %v5531
        %v5628 = vunpack.c.l.b16 %v5532
        %v5629 = vunpack.c.l.b16 %v5533
        %v5630 = vunpack.c.l.b16 %v5534
        %v5631 = vunpack.c.l.b16 %v5535
        %v5632 = vunpack.c.l.b16 %v5536
        %v5633 = vunpack.c.l.b16 %v5537
        %v5634 = vunpack.c.l.b16 %v5538
        %v5635 = vunpack.c.l.b16 %v5539
        %v5636 = vunpack.c.l.b16 %v5540
        %v5637 = vunpack.c.l.b16 %v5541
        %v5638 = vunpack.c.l.b16 %v5542
        %v5639 = vunpack.c.l.b16 %v5543
        %v5640 = vpack.c.b16 %v5625, %v5624
        %v5641 = vpack.c.b16 %v5627, %v5626
        %v5642 = vpack.c.b16 %v5629, %v5628
        %v5643 = vpack.c.b16 %v5631, %v5630
        %v5644 = vpack.c.b16 %v5633, %v5632
        %v5645 = vpack.c.b16 %v5635, %v5634
        %v5646 = vpack.c.b16 %v5637, %v5636
        %v5647 = vpack.c.b16 %v5639, %v5638
        %5656 = vmatpush.bf16.msra.mxu0 %v5647
        %5657 = vmatpush.bf16.msra.mxu0 %v5646
        %5658 = vmatpush.bf16.msra.mxu0 %v5645
        %5659 = vmatpush.bf16.msra.mxu0 %v5644
        %5660 = vmatpush.bf16.msra.mxu0 %v5643
        %5661 = vmatpush.bf16.msra.mxu0 %v5642
        %5662 = vmatpush.bf16.msra.mxu0 %v5641
        %5663 = vmatpush.bf16.msra.mxu0 %v5640
        %5664 = vmatmul.bf16.gmra.mxu0 %v5576
        %v5665 = vpop.f32.mrf.mxu0
        %v5666 = vadd.f32 0.0, %v5665
        %v5667 = vpop.f32.mrf.mxu0
        %v5668 = vadd.f32 0.0, %v5667
        %5669 = vmatmul.bf16.gmra.mxu0 %v5577
        %v5670 = vpop.f32.mrf.mxu0
        %v5671 = vadd.f32 0.0, %v5670
        %v5672 = vpop.f32.mrf.mxu0
        %v5673 = vadd.f32 0.0, %v5672
        %5674 = vmatmul.bf16.gmra.mxu0 %v5578
        %v5675 = vpop.f32.mrf.mxu0
        %v5676 = vadd.f32 0.0, %v5675
        %v5677 = vpop.f32.mrf.mxu0
        %v5678 = vadd.f32 0.0, %v5677
        %5679 = vmatmul.bf16.gmra.mxu0 %v5579
        %v5680 = vpop.f32.mrf.mxu0
        %v5681 = vadd.f32 0.0, %v5680
        %v5682 = vpop.f32.mrf.mxu0
        %v5683 = vadd.f32 0.0, %v5682
        %5684 = vmatmul.bf16.gmra.mxu0 %v5580
        %v5685 = vpop.f32.mrf.mxu0
        %v5686 = vadd.f32 0.0, %v5685
        %v5687 = vpop.f32.mrf.mxu0
        %v5688 = vadd.f32 0.0, %v5687
        %5689 = vmatmul.bf16.gmra.mxu0 %v5581
        %v5690 = vpop.f32.mrf.mxu0
        %v5691 = vadd.f32 0.0, %v5690
        %v5692 = vpop.f32.mrf.mxu0
        %v5693 = vadd.f32 0.0, %v5692
        %5694 = vmatmul.bf16.gmra.mxu0 %v5582
        %v5695 = vpop.f32.mrf.mxu0
        %v5696 = vadd.f32 0.0, %v5695
        %v5697 = vpop.f32.mrf.mxu0
        %v5698 = vadd.f32 0.0, %v5697
        %5699 = vmatmul.bf16.gmra.mxu0 %v5583
        %v5700 = vpop.f32.mrf.mxu0
        %v5701 = vadd.f32 0.0, %v5700
        %v5702 = vpop.f32.mrf.mxu0
        %v5703 = vadd.f32 0.0, %v5702
        %5704 = vmatmul.bf16.gmra.mxu0 %v5584
        %v5705 = vpop.f32.mrf.mxu0
        %v5706 = vadd.f32 0.0, %v5705
        %v5707 = vpop.f32.mrf.mxu0
        %v5708 = vadd.f32 0.0, %v5707
        %5709 = vmatmul.bf16.gmra.mxu0 %v5585
        %v5710 = vpop.f32.mrf.mxu0
        %v5711 = vadd.f32 0.0, %v5710
        %v5712 = vpop.f32.mrf.mxu0
        %v5713 = vadd.f32 0.0, %v5712
        %5714 = vmatmul.bf16.gmra.mxu0 %v5586
        %v5715 = vpop.f32.mrf.mxu0
        %v5716 = vadd.f32 0.0, %v5715
        %v5717 = vpop.f32.mrf.mxu0
        %v5718 = vadd.f32 0.0, %v5717
        %5719 = vmatmul.bf16.gmra.mxu0 %v5587
        %v5720 = vpop.f32.mrf.mxu0
        %v5721 = vadd.f32 0.0, %v5720
        %v5722 = vpop.f32.mrf.mxu0
        %v5723 = vadd.f32 0.0, %v5722
        %5724 = vmatmul.bf16.gmra.mxu0 %v5588
        %v5725 = vpop.f32.mrf.mxu0
        %v5726 = vadd.f32 0.0, %v5725
        %v5727 = vpop.f32.mrf.mxu0
        %v5728 = vadd.f32 0.0, %v5727
        %5729 = vmatmul.bf16.gmra.mxu0 %v5589
        %v5730 = vpop.f32.mrf.mxu0
        %v5731 = vadd.f32 0.0, %v5730
        %v5732 = vpop.f32.mrf.mxu0
        %v5733 = vadd.f32 0.0, %v5732
        %5734 = vmatmul.bf16.gmra.mxu0 %v5590
        %v5735 = vpop.f32.mrf.mxu0
        %v5736 = vadd.f32 0.0, %v5735
        %v5737 = vpop.f32.mrf.mxu0
        %v5738 = vadd.f32 0.0, %v5737
        %5739 = vmatmul.bf16.gmra.mxu0 %v5591
        %v5740 = vpop.f32.mrf.mxu0
        %v5741 = vadd.f32 0.0, %v5740
        %v5742 = vpop.f32.mrf.mxu0
        %v5743 = vadd.f32 0.0, %v5742
        %5744 = vdwg.mxu0
        %v5745 = vadd.f32 %v5319, %v5666
        %v5746 = vadd.f32 %v5320, %v5668
        %v5747 = vadd.f32 %v5321, %v5671
        %v5748 = vadd.f32 %v5322, %v5673
        %v5749 = vadd.f32 %v5323, %v5676
        %v5750 = vadd.f32 %v5324, %v5678
        %v5751 = vadd.f32 %v5325, %v5681
        %v5752 = vadd.f32 %v5326, %v5683
        %v5753 = vadd.f32 %v5327, %v5686
        %v5754 = vadd.f32 %v5328, %v5688
        %v5755 = vadd.f32 %v5329, %v5691
        %v5756 = vadd.f32 %v5330, %v5693
        %v5757 = vadd.f32 %v5331, %v5696
        %v5758 = vadd.f32 %v5332, %v5698
        %v5759 = vadd.f32 %v5333, %v5701
        %v5760 = vadd.f32 %v5334, %v5703
        %v5761 = vadd.f32 %v5335, %v5706
        %v5762 = vadd.f32 %v5336, %v5708
        %v5763 = vadd.f32 %v5337, %v5711
        %v5764 = vadd.f32 %v5338, %v5713
        %v5765 = vadd.f32 %v5339, %v5716
        %v5766 = vadd.f32 %v5340, %v5718
        %v5767 = vadd.f32 %v5341, %v5721
        %v5768 = vadd.f32 %v5342, %v5723
        %v5769 = vadd.f32 %v5343, %v5726
        %v5770 = vadd.f32 %v5344, %v5728
        %v5771 = vadd.f32 %v5345, %v5731
        %v5772 = vadd.f32 %v5346, %v5733
        %v5773 = vadd.f32 %v5347, %v5736
        %v5774 = vadd.f32 %v5348, %v5738
        %v5775 = vadd.f32 %v5349, %v5741
        %v5776 = vadd.f32 %v5350, %v5743
        %v5777 = vmax.f32 %v5745, 0.0
        %v5778 = vmax.f32 %v5746, 0.0
        %v5779 = vmax.f32 %v5747, 0.0
        %v5780 = vmax.f32 %v5748, 0.0
        %v5781 = vmax.f32 %v5749, 0.0
        %v5782 = vmax.f32 %v5750, 0.0
        %v5783 = vmax.f32 %v5751, 0.0
        %v5784 = vmax.f32 %v5752, 0.0
        %v5785 = vmax.f32 %v5753, 0.0
        %v5786 = vmax.f32 %v5754, 0.0
        %v5787 = vmax.f32 %v5755, 0.0
        %v5788 = vmax.f32 %v5756, 0.0
        %v5789 = vmax.f32 %v5757, 0.0
        %v5790 = vmax.f32 %v5758, 0.0
        %v5791 = vmax.f32 %v5759, 0.0
        %v5792 = vmax.f32 %v5760, 0.0
        %v5793 = vmax.f32 %v5761, 0.0
        %v5794 = vmax.f32 %v5762, 0.0
        %v5795 = vmax.f32 %v5763, 0.0
        %v5796 = vmax.f32 %v5764, 0.0
        %v5797 = vmax.f32 %v5765, 0.0
        %v5798 = vmax.f32 %v5766, 0.0
        %v5799 = vmax.f32 %v5767, 0.0
        %v5800 = vmax.f32 %v5768, 0.0
        %v5801 = vmax.f32 %v5769, 0.0
        %v5802 = vmax.f32 %v5770, 0.0
        %v5803 = vmax.f32 %v5771, 0.0
        %v5804 = vmax.f32 %v5772, 0.0
        %v5805 = vmax.f32 %v5773, 0.0
        %v5806 = vmax.f32 %v5774, 0.0
        %v5807 = vmax.f32 %v5775, 0.0
        %v5808 = vmax.f32 %v5776, 0.0
        %v5809 = vadd.f32 %v5777, %v5778
        %v5810 = vadd.f32 %v5809, %v5779
        %v5811 = vadd.f32 %v5810, %v5780
        %v5812 = vadd.f32 %v5811, %v5781
        %v5813 = vadd.f32 %v5812, %v5782
        %v5814 = vadd.f32 %v5813, %v5783
        %v5815 = vadd.f32 %v5814, %v5784
        %v5816 = vadd.f32 %v5815, %v5785
        %v5817 = vadd.f32 %v5816, %v5786
        %v5818 = vadd.f32 %v5817, %v5787
        %v5819 = vadd.f32 %v5818, %v5788
        %v5820 = vadd.f32 %v5819, %v5789
        %v5821 = vadd.f32 %v5820, %v5790
        %v5822 = vadd.f32 %v5821, %v5791
        %v5823 = vadd.f32 %v5822, %v5792
        %v5824 = vadd.f32 %v5823, %v5793
        %v5825 = vadd.f32 %v5824, %v5794
        %v5826 = vadd.f32 %v5825, %v5795
        %v5827 = vadd.f32 %v5826, %v5796
        %v5828 = vadd.f32 %v5827, %v5797
        %v5829 = vadd.f32 %v5828, %v5798
        %v5830 = vadd.f32 %v5829, %v5799
        %v5831 = vadd.f32 %v5830, %v5800
        %v5832 = vadd.f32 %v5831, %v5801
        %v5833 = vadd.f32 %v5832, %v5802
        %v5834 = vadd.f32 %v5833, %v5803
        %v5835 = vadd.f32 %v5834, %v5804
        %v5836 = vadd.f32 %v5835, %v5805
        %v5837 = vadd.f32 %v5836, %v5806
        %v5838 = vadd.f32 %v5837, %v5807
        %v5839 = vadd.f32 %v5838, %v5808
        %v5840 = vrot.slane %v5839, 4
        %v5841 = vadd.f32 %v5839, %v5840
        %v5842 = vrot.slane %v5841, 2
        %v5843 = vadd.f32 %v5841, %v5842
        %v5844 = vrot.slane %v5843, 1
        %v5845 = vadd.f32 %v5843, %v5844
        %v5846 = vmul.f32 %v5845, 0.00390625
        %5847 = vst [vmem:[%s162] sm:$0x1] %v5846
        %s5848 = sand.u32 %s93, 1
        %s5849 = scalar_lea.sflag [#allocation4], %s5848
        %s5850 = sand.u32 %s93, 1
        %s5851 = scalar_lea.vmem [#allocation3], %s5850
        // Predicated region
        $region33: #{cnn_backbone_forward.1} parent=31 // pred_check
          %p5852 = pneg %p103
        $region34: #{cnn_backbone_forward.1} parent=31 // pred_check_branch
          %5854 = sbr.rel (%p5852) target = $region36
        $region35: #{cnn_backbone_forward.1} parent=31 // pred_region
          %5856 = vsyncadd %s5849, 0
          %s5857 = scalar_lea.hbm %s3, %s17
          %s5859 = sshll.u32 %s5851, 4
          %s5860 = int_to_ptr.vmem [resolvable:$true] %s5859
          %s5861 = sshll.u32 %s5857, 4
          %s5862 = int_to_ptr.hbm [resolvable:$true] %s5861
          %5864 = dma.vmem_to_hbm [thread:$0]  %s5860, 16, %s5862, %s5849
        $region36: #{cnn_backbone_forward.1} parent=31 // pred_fallthru
          _
      $region32: #{cnn_backbone_forward.1} parent=5 // pred_fallthru
        _
      %p5865 = scmp.le.s32.totalorder 2, %s12
      // Predicated region
      $region37: #{cnn_backbone_forward.1} parent=5 // pred_check
        %p5866 = pneg %p5865
      $region38: #{cnn_backbone_forward.1} parent=5 // pred_check_branch
        %5868 = sbr.rel (%p5866) target = $region40
      $region39: #{cnn_backbone_forward.1} parent=5 // pred_region
        %s5869 = ssub.s32 %s12, 2
        // Predicated region
        $region41: #{cnn_backbone_forward.1} parent=39 // pred_check
          %p5870 = pneg %p109
        $region42: #{cnn_backbone_forward.1} parent=39 // pred_check_branch
          %5872 = sbr.rel (%p5870) target = $region44
        $region43: #{cnn_backbone_forward.1} parent=39 // pred_region
          %s5873 = sand.u32 %s94, 1
          %s5874 = scalar_lea.sflag [#allocation4], %s5873
          %s5875 = sand.u32 %s94, 1
          %s5876 = scalar_lea.vmem [#allocation3], %s5875
          %5878 = dma.done %s5874, 16
        $region44: #{cnn_backbone_forward.1} parent=39 // pred_fallthru
          _
      $region40: #{cnn_backbone_forward.1} parent=5 // pred_fallthru
        _
    $region6: #{cnn_backbone_forward.1} parent=1 // loop_footer
      %s16 = sadd.s32 1, %s12
    $region7: #{cnn_backbone_forward.1} parent=1 // loop_footer_branch
      %11 = sbr.rel target = $region3
    $region8: #{cnn_backbone_forward.1} parent=1 // loop_exit
      _
    %5879 = vsyncpa [#allocation4], 1
    %s5880 = scalar_lea.sflag [#allocation4], 1
    %5881 = vsyncpa %s5880, 1

</llo_original>
